<compile_context>
chip_gen: v7x
topology: tpu7x:2x2x1
jax: 0.10.0
libtpu: 0.0.40
codegen_flags: <defaults>
</compile_context>

<pallas_src>
import functools

import jax
import jax.numpy as jnp
import numpy as np
from jax.experimental import pallas as pl
from jax.experimental.pallas import tpu as pltpu


# ----------------------------------------------------------------- small helpers
def _layer_norm(y, g, b, eps):
    mean = jnp.mean(y, axis=-1, keepdims=True)
    c = y - mean
    var = jnp.mean(c * c, axis=-1, keepdims=True)
    return c * jax.lax.rsqrt(var + eps) * g + b


# ----------------------------------------------------------------- fused decoder-layer kernel
def _decoder_layer_kernel(
    # activations / masks (per-batch blocks)
    x_ref, enc_ref, dmask_ref, xmask_ref,
    # self-attention params (full-width weights, 1/scale pre-folded into wq/bq)
    swq_ref, swk_ref, swv_ref, swo_ref, sbq_ref, sbk_ref, sbv_ref, sbo_ref,
    # encoder-decoder attention params
    cwq_ref, cwk_ref, cwv_ref, cwo_ref, cbq_ref, cbk_ref, cbv_ref, cbo_ref,
    # feed-forward params
    w1_ref, b1_ref, w2_ref, b2_ref,
    # LayerNorm params
    ln1g_ref, ln1b_ref, ln2g_ref, ln2b_ref, ln3g_ref, ln3b_ref,
    # outputs
    out_ref, adec_ref, axdec_ref,
    *, n_heads, eps):

    f32 = jnp.float32
    bf16 = jnp.bfloat16
    H = n_heads

    def mha(xq_bf, xkv_bf, mask, wq_r, wk_r, wv_r, wo_r, bq_r, bk_r, bv_r, bo_r, attn_ref):
        Lq, D = xq_bf.shape
        dh = D // H

        # Lane-dense full-width projections: (L, D) @ (D, D) keeps the MXU full.
        # (1/scale already folded into wq/bq by the wrapper.)
        Q = jnp.dot(xq_bf, wq_r[...], preferred_element_type=f32) + bq_r[...]
        K = jnp.dot(xkv_bf, wk_r[...], preferred_element_type=f32) + bk_r[...]
        V = jnp.dot(xkv_bf, wv_r[...], preferred_element_type=f32) + bv_r[...]

        def split_heads(t):                     # (L, D) f32 -> (H, L, dh) bf16
            parts = [t[:, h * dh:(h + 1) * dh] for h in range(H)]
            return jnp.stack(parts, axis=0).astype(bf16)

        Qh, Kh, Vh = split_heads(Q), split_heads(K), split_heads(V)

        # Head-batched score / context matmuls (per-head is intrinsic to MHA here).
        s = jnp.einsum("hqe,hke->hqk", Qh, Kh, preferred_element_type=f32)   # (H, Lq, Lk)
        s = jnp.where(mask[None, :, :] > 0.5, -1e10, s)      # mask shared across heads
        s = s - jnp.max(s, axis=-1, keepdims=True)
        e = jnp.exp(s)
        w = e / jnp.sum(e, axis=-1, keepdims=True)           # exact softmax (probs are outputs)
        attn_ref[0] = w.astype(attn_ref.dtype)               # bf16 writeback

        ctx = jnp.einsum("hqk,hke->hqe", w.astype(bf16), Vh,
                         preferred_element_type=f32)          # (H, Lq, dh) f32
        ctx_flat = jnp.concatenate([ctx[h] for h in range(H)], axis=-1)   # (Lq, D)
        # Single wide output projection (K = H*dh = D) instead of H narrow matmuls + reduce.
        return jnp.dot(ctx_flat.astype(bf16), wo_r[...],
                       preferred_element_type=f32) + bo_r[...]            # (Lq, D)

    x = x_ref[0]                       # (Lq, D) f32
    enc_bf = enc_ref[0].astype(bf16)   # (Lk, D) bf16, cast once

    # --- self attention + residual + LayerNorm (dropout = identity, eval mode)
    x_bf = x.astype(bf16)
    r = mha(x_bf, x_bf, dmask_ref[0],
            swq_ref, swk_ref, swv_ref, swo_ref, sbq_ref, sbk_ref, sbv_ref, sbo_ref,
            adec_ref)
    x = _layer_norm(x + r, ln1g_ref[...], ln1b_ref[...], eps)

    # --- encoder-decoder attention + residual + LayerNorm
    x_bf = x.astype(bf16)
    r = mha(x_bf, enc_bf, xmask_ref[0],
            cwq_ref, cwk_ref, cwv_ref, cwo_ref, cbq_ref, cbk_ref, cbv_ref, cbo_ref,
            axdec_ref)
    x = _layer_norm(x + r, ln2g_ref[...], ln2b_ref[...], eps)

    # --- feed forward + residual + LayerNorm
    # TODO(synk): Dropout inside the FFN and on the residuals is identity (inference mode).
    h = jnp.dot(x.astype(bf16), w1_ref[...], preferred_element_type=f32) + b1_ref[...]
    h = jnp.maximum(h, 0.0)
    r = jnp.dot(h.astype(bf16), w2_ref[...], preferred_element_type=f32) + b2_ref[...]
    x = _layer_norm(x + r, ln3g_ref[...], ln3b_ref[...], eps)

    out_ref[0] = x.astype(out_ref.dtype)


# ----------------------------------------------------------------- wrapper
def decoder_layer(x, enc_out, dec_mask, enc_dec_mask, params, n_heads, scale,
                  eps=1e-5, attn_probs_dtype=jnp.bfloat16):
    """x: (B, Lq, D) f32, enc_out: (B, Lk, D) f32,
    dec_mask: (B, Lq, Lq) f32, enc_dec_mask: (B, Lq, Lk) f32 (>0.5 => masked, shared over heads)."""
    B, Lq, D = x.shape
    Lk = enc_out.shape[1]
    H = n_heads
    inv_scale = 1.0 / float(scale)

    # Fold 1/scale into wq/bq on the host (one-time transform; removes a VPU multiply per block).
    def fold_scale(p):
        wq = (p["wq"].astype(jnp.float32) * inv_scale).astype(p["wq"].dtype)
        bq = p["bq"].astype(jnp.float32) * inv_scale
        return wq, bq

    sp, cp, fp = params["self_atten"], params["enc_dec_atten"], params["ff"]
    swq, sbq = fold_scale(sp)
    cwq, cbq = fold_scale(cp)

    operands = [
        x, enc_out, dec_mask, enc_dec_mask,
        swq, sp["wk"], sp["wv"], sp["wo"], sbq, sp["bk"], sp["bv"], sp["bo"],
        cwq, cp["wk"], cp["wv"], cp["wo"], cbq, cp["bk"], cp["bv"], cp["bo"],
        fp["w1"], fp["b1"], fp["w2"], fp["b2"],
        params["ln1_g"], params["ln1_b"], params["ln2_g"], params["ln2_b"],
        params["ln3_g"], params["ln3_b"],
    ]

    def batch_spec(arr):
        n = arr.ndim
        return pl.BlockSpec((1,) + arr.shape[1:], lambda b: (b,) + (0,) * (n - 1))

    def full_spec(arr):
        n = arr.ndim
        return pl.BlockSpec(arr.shape, lambda b: (0,) * n)

    in_specs = ([batch_spec(a) for a in operands[:4]]
                + [full_spec(a) for a in operands[4:]])

    out_shape = [
        jax.ShapeDtypeStruct((B, Lq, D), jnp.float32),
        jax.ShapeDtypeStruct((B, H, Lq, Lq), attn_probs_dtype),
        jax.ShapeDtypeStruct((B, H, Lq, Lk), attn_probs_dtype),
    ]
    out_specs = [
        pl.BlockSpec((1, Lq, D), lambda b: (b, 0, 0)),
        pl.BlockSpec((1, H, Lq, Lq), lambda b: (b, 0, 0, 0)),
        pl.BlockSpec((1, H, Lq, Lk), lambda b: (b, 0, 0, 0)),
    ]

    kernel = functools.partial(_decoder_layer_kernel, n_heads=H, eps=eps)
    out, a_dec, a_xdec = pl.pallas_call(
        kernel,
        grid=(B,),
        in_specs=in_specs,
        out_specs=out_specs,
        out_shape=out_shape,
        compiler_params=pltpu.CompilerParams(
            dimension_semantics=("parallel",),        # shards batch over TensorCores
            vmem_limit_bytes=48 * 1024 * 1024),
    )(*operands)
    return out, a_dec, a_xdec


# ----------------------------------------------------------------- plain-JAX reference
# Mirrors the kernel's bf16 cast points (bf16 matmul inputs, f32 accumulation) so the
# comparison isolates Pallas-implementation correctness.
def _ref_decoder_layer(x, enc_out, dec_mask, enc_dec_mask, params, H, scale, eps=1e-5):
    bf = jnp.bfloat16
    f32 = jnp.float32
    inv_scale = 1.0 / float(scale)

    def ln(y, g, b):
        m = y.mean(-1, keepdims=True)
        c = y - m
        v = (c * c).mean(-1, keepdims=True)
        return c * jax.lax.rsqrt(v + eps) * g[0] + b[0]

    def mha(xq, xkv, mask, p):
        B, Lq, D = xq.shape
        Lk = xkv.shape[1]
        dh = D // H
        Q = jnp.dot(xq.astype(bf), p["wq"], preferred_element_type=f32) + p["bq"][0]
        K = jnp.dot(xkv.astype(bf), p["wk"], preferred_element_type=f32) + p["bk"][0]
        V = jnp.dot(xkv.astype(bf), p["wv"], preferred_element_type=f32) + p["bv"][0]
        Q = Q * inv_scale
        Q = Q.reshape(B, Lq, H, dh).transpose(0, 2, 1, 3)
        K = K.reshape(B, Lk, H, dh).transpose(0, 2, 1, 3)
        V = V.reshape(B, Lk, H, dh).transpose(0, 2, 1, 3)
        s = jnp.einsum("bhqe,bhke->bhqk", Q.astype(bf), K.astype(bf),
                       preferred_element_type=f32)
        s = jnp.where(mask[:, None] > 0.5, -1e10, s)
        w = jax.nn.softmax(s, axis=-1)
        ctx = jnp.einsum("bhqk,bhke->bhqe", w.astype(bf), V.astype(bf),
                         preferred_element_type=f32)
        ctx = ctx.transpose(0, 2, 1, 3).reshape(B, Lq, D)
        out = jnp.dot(ctx.astype(bf), p["wo"], preferred_element_type=f32) + p["bo"][0]
        return out, w

    r, a1 = mha(x, x, dec_mask, params["self_atten"])
    x = ln(x + r, params["ln1_g"], params["ln1_b"])
    r, a2 = mha(x, enc_out, enc_dec_mask, params["enc_dec_atten"])
    x = ln(x + r, params["ln2_g"], params["ln2_b"])
    p = params["ff"]
    h = jnp.maximum(jnp.dot(x.astype(bf), p["w1"], preferred_element_type=f32) + p["b1"][0], 0.0)
    r = jnp.dot(h.astype(bf), p["w2"], preferred_element_type=f32) + p["b2"][0]
    x = ln(x + r, params["ln3_g"], params["ln3_b"])
    return x, a1, a2


# ------------------------------------------------------------------------ params + main
def _init_params(key, d_model, d_ff):
    keys = iter(jax.random.split(key, 32))

    def w(shape, dtype=jnp.bfloat16):
        return (0.02 * jax.random.normal(next(keys), shape, jnp.float32)).astype(dtype)

    def mha_p():
        return dict(wq=w((d_model, d_model)), wk=w((d_model, d_model)),
                    wv=w((d_model, d_model)), wo=w((d_model, d_model)),
                    bq=w((1, d_model), jnp.float32), bk=w((1, d_model), jnp.float32),
                    bv=w((1, d_model), jnp.float32), bo=w((1, d_model), jnp.float32))

    ones = jnp.ones((1, d_model), jnp.float32)
    zeros = jnp.zeros((1, d_model), jnp.float32)
    return dict(
        self_atten=mha_p(),
        enc_dec_atten=mha_p(),
        ff=dict(w1=w((d_model, d_ff)), b1=w((1, d_ff), jnp.float32),
                w2=w((d_ff, d_model)), b2=w((1, d_model), jnp.float32)),
        ln1_g=ones, ln1_b=zeros, ln2_g=ones, ln2_b=zeros, ln3_g=ones, ln3_b=zeros,
    )


if __name__ == "__main__":
    B, L_dec, L_enc = 2, 8, 8
    d_model, d_ff, n_heads = 32, 64, 4
    scale = float(np.sqrt(d_model / n_heads))

    key = jax.random.PRNGKey(0)
    kx, kenc, kp = jax.random.split(key, 3)
    x = jax.random.normal(kx, (B, L_dec, d_model), jnp.float32)
    enc_out = jax.random.normal(kenc, (B, L_enc, d_model), jnp.float32)
    params = _init_params(kp, d_model, d_ff)

    # Compact masks (shared across heads), value > 0.5 means "masked out".
    causal = jnp.triu(jnp.ones((L_dec, L_dec), jnp.float32), k=1)
    dec_mask = jnp.broadcast_to(causal, (B, L_dec, L_dec))
    enc_dec_mask = jnp.zeros((B, L_dec, L_enc), jnp.float32).at[:, :, -1].set(1.0)

    out, atten_dec, atten_enc_dec = decoder_layer(
        x, enc_out, dec_mask, enc_dec_mask, params, n_heads, scale)
    jax.block_until_ready((out, atten_dec, atten_enc_dec))

    ref_out, ref_a1, ref_a2 = _ref_decoder_layer(
        x, enc_out, dec_mask, enc_dec_mask, params, n_heads, scale)

    np.testing.assert_allclose(np.asarray(out), np.asarray(ref_out), rtol=2e-2, atol=2e-2)
    np.testing.assert_allclose(np.asarray(atten_dec.astype(jnp.float32)),
                               np.asarray(ref_a1), rtol=2e-2, atol=2e-2)
    np.testing.assert_allclose(np.asarray(atten_enc_dec.astype(jnp.float32)),
                               np.asarray(ref_a2), rtol=2e-2, atol=2e-2)

    print("KERNEL_OK")
</pallas_src>

<mosaic_0001>
module attributes {stable_mosaic.version = 11 : i64} {
  func.func @_decoder_layer_kernel(%arg0: i32, %arg1: memref<1x8x32xf32, #tpu.memory_space<vmem>>, %arg2: memref<1x8x32xf32, #tpu.memory_space<vmem>>, %arg3: memref<1x8x8xf32, #tpu.memory_space<vmem>>, %arg4: memref<1x8x8xf32, #tpu.memory_space<vmem>>, %arg5: memref<32x32xbf16, #tpu.memory_space<vmem>>, %arg6: memref<32x32xbf16, #tpu.memory_space<vmem>>, %arg7: memref<32x32xbf16, #tpu.memory_space<vmem>>, %arg8: memref<32x32xbf16, #tpu.memory_space<vmem>>, %arg9: memref<1x32xf32, #tpu.memory_space<vmem>>, %arg10: memref<1x32xf32, #tpu.memory_space<vmem>>, %arg11: memref<1x32xf32, #tpu.memory_space<vmem>>, %arg12: memref<1x32xf32, #tpu.memory_space<vmem>>, %arg13: memref<32x32xbf16, #tpu.memory_space<vmem>>, %arg14: memref<32x32xbf16, #tpu.memory_space<vmem>>, %arg15: memref<32x32xbf16, #tpu.memory_space<vmem>>, %arg16: memref<32x32xbf16, #tpu.memory_space<vmem>>, %arg17: memref<1x32xf32, #tpu.memory_space<vmem>>, %arg18: memref<1x32xf32, #tpu.memory_space<vmem>>, %arg19: memref<1x32xf32, #tpu.memory_space<vmem>>, %arg20: memref<1x32xf32, #tpu.memory_space<vmem>>, %arg21: memref<32x64xbf16, #tpu.memory_space<vmem>>, %arg22: memref<1x64xf32, #tpu.memory_space<vmem>>, %arg23: memref<64x32xbf16, #tpu.memory_space<vmem>>, %arg24: memref<1x32xf32, #tpu.memory_space<vmem>>, %arg25: memref<1x32xf32, #tpu.memory_space<vmem>>, %arg26: memref<1x32xf32, #tpu.memory_space<vmem>>, %arg27: memref<1x32xf32, #tpu.memory_space<vmem>>, %arg28: memref<1x32xf32, #tpu.memory_space<vmem>>, %arg29: memref<1x32xf32, #tpu.memory_space<vmem>>, %arg30: memref<1x32xf32, #tpu.memory_space<vmem>>, %arg31: memref<1x8x32xf32, #tpu.memory_space<vmem>>, %arg32: memref<1x4x8x8xbf16, #tpu.memory_space<vmem>>, %arg33: memref<1x4x8x8xbf16, #tpu.memory_space<vmem>>) attributes {dimension_semantics = [#tpu.dimension_semantics<parallel>], iteration_bounds = array<i64: 2>, scalar_prefetch = 0 : i64, scratch_operands = 0 : i64, tpu.core_type = #tpu.core_type<tc>, window_params = [{transform_indices = @transform_0, window_bounds = array<i64: 1, 8, 32>}, {transform_indices = @transform_1, window_bounds = array<i64: 1, 8, 32>}, {transform_indices = @transform_2, window_bounds = array<i64: 1, 8, 8>}, {transform_indices = @transform_3, window_bounds = array<i64: 1, 8, 8>}, {pipeline_mode = #tpu.pipeline_mode<synchronous>, transform_indices = @transform_4, window_bounds = array<i64: 32, 32>}, {pipeline_mode = #tpu.pipeline_mode<synchronous>, transform_indices = @transform_5, window_bounds = array<i64: 32, 32>}, {pipeline_mode = #tpu.pipeline_mode<synchronous>, transform_indices = @transform_6, window_bounds = array<i64: 32, 32>}, {pipeline_mode = #tpu.pipeline_mode<synchronous>, transform_indices = @transform_7, window_bounds = array<i64: 32, 32>}, {pipeline_mode = #tpu.pipeline_mode<synchronous>, transform_indices = @transform_8, window_bounds = array<i64: 1, 32>}, {pipeline_mode = #tpu.pipeline_mode<synchronous>, transform_indices = @transform_9, window_bounds = array<i64: 1, 32>}, {pipeline_mode = #tpu.pipeline_mode<synchronous>, transform_indices = @transform_10, window_bounds = array<i64: 1, 32>}, {pipeline_mode = #tpu.pipeline_mode<synchronous>, transform_indices = @transform_11, window_bounds = array<i64: 1, 32>}, {pipeline_mode = #tpu.pipeline_mode<synchronous>, transform_indices = @transform_12, window_bounds = array<i64: 32, 32>}, {pipeline_mode = #tpu.pipeline_mode<synchronous>, transform_indices = @transform_13, window_bounds = array<i64: 32, 32>}, {pipeline_mode = #tpu.pipeline_mode<synchronous>, transform_indices = @transform_14, window_bounds = array<i64: 32, 32>}, {pipeline_mode = #tpu.pipeline_mode<synchronous>, transform_indices = @transform_15, window_bounds = array<i64: 32, 32>}, {pipeline_mode = #tpu.pipeline_mode<synchronous>, transform_indices = @transform_16, window_bounds = array<i64: 1, 32>}, {pipeline_mode = #tpu.pipeline_mode<synchronous>, transform_indices = @transform_17, window_bounds = array<i64: 1, 32>}, {pipeline_mode = #tpu.pipeline_mode<synchronous>, transform_indices = @transform_18, window_bounds = array<i64: 1, 32>}, {pipeline_mode = #tpu.pipeline_mode<synchronous>, transform_indices = @transform_19, window_bounds = array<i64: 1, 32>}, {pipeline_mode = #tpu.pipeline_mode<synchronous>, transform_indices = @transform_20, window_bounds = array<i64: 32, 64>}, {pipeline_mode = #tpu.pipeline_mode<synchronous>, transform_indices = @transform_21, window_bounds = array<i64: 1, 64>}, {pipeline_mode = #tpu.pipeline_mode<synchronous>, transform_indices = @transform_22, window_bounds = array<i64: 64, 32>}, {pipeline_mode = #tpu.pipeline_mode<synchronous>, transform_indices = @transform_23, window_bounds = array<i64: 1, 32>}, {pipeline_mode = #tpu.pipeline_mode<synchronous>, transform_indices = @transform_24, window_bounds = array<i64: 1, 32>}, {pipeline_mode = #tpu.pipeline_mode<synchronous>, transform_indices = @transform_25, window_bounds = array<i64: 1, 32>}, {pipeline_mode = #tpu.pipeline_mode<synchronous>, transform_indices = @transform_26, window_bounds = array<i64: 1, 32>}, {pipeline_mode = #tpu.pipeline_mode<synchronous>, transform_indices = @transform_27, window_bounds = array<i64: 1, 32>}, {pipeline_mode = #tpu.pipeline_mode<synchronous>, transform_indices = @transform_28, window_bounds = array<i64: 1, 32>}, {pipeline_mode = #tpu.pipeline_mode<synchronous>, transform_indices = @transform_29, window_bounds = array<i64: 1, 32>}, {transform_indices = @transform_30, window_bounds = array<i64: 1, 8, 32>}, {transform_indices = @transform_31, window_bounds = array<i64: 1, 4, 8, 8>}, {transform_indices = @transform_32, window_bounds = array<i64: 1, 4, 8, 8>}]} {
    %c0 = arith.constant 0 : index
    %c0_0 = arith.constant 0 : index
    %c0_1 = arith.constant 0 : index
    %0 = vector.load %arg1[%c0, %c0_0, %c0_1] : memref<1x8x32xf32, #tpu.memory_space<vmem>>, vector<1x8x32xf32>
    %1 = vector.shape_cast %0 : vector<1x8x32xf32> to vector<8x32xf32>
    %c0_2 = arith.constant 0 : index
    %c0_3 = arith.constant 0 : index
    %c0_4 = arith.constant 0 : index
    %2 = vector.load %arg2[%c0_2, %c0_3, %c0_4] : memref<1x8x32xf32, #tpu.memory_space<vmem>>, vector<1x8x32xf32>
    %3 = vector.shape_cast %2 : vector<1x8x32xf32> to vector<8x32xf32>
    %4 = arith.truncf %3 : vector<8x32xf32> to vector<8x32xbf16>
    %5 = arith.truncf %1 : vector<8x32xf32> to vector<8x32xbf16>
    %c0_5 = arith.constant 0 : index
    %c0_6 = arith.constant 0 : index
    %c0_7 = arith.constant 0 : index
    %6 = vector.load %arg3[%c0_5, %c0_6, %c0_7] : memref<1x8x8xf32, #tpu.memory_space<vmem>>, vector<1x8x8xf32>
    %7 = vector.shape_cast %6 : vector<1x8x8xf32> to vector<8x8xf32>
    %c0_8 = arith.constant 0 : index
    %c0_9 = arith.constant 0 : index
    %8 = vector.load %arg5[%c0_8, %c0_9] : memref<32x32xbf16, #tpu.memory_space<vmem>>, vector<32x32xbf16>
    %cst = arith.constant dense<0.000000e+00> : vector<8x32xf32>
    %9 = tpu.matmul %5, %8, %cst {dimension_numbers = #tpu.dot_dimension_numbers<[1], [0], [0], [1], [0, 0, 1, 1], [], []>} : vector<8x32xbf16>, vector<32x32xbf16>, vector<8x32xf32> -> vector<8x32xf32>
    %c0_10 = arith.constant 0 : index
    %c0_11 = arith.constant 0 : index
    %10 = vector.load %arg9[%c0_10, %c0_11] : memref<1x32xf32, #tpu.memory_space<vmem>>, vector<1x32xf32>
    %11 = vector.broadcast %10 : vector<1x32xf32> to vector<8x32xf32>
    %12 = arith.addf %9, %11 : vector<8x32xf32>
    %c0_12 = arith.constant 0 : index
    %c0_13 = arith.constant 0 : index
    %13 = vector.load %arg6[%c0_12, %c0_13] : memref<32x32xbf16, #tpu.memory_space<vmem>>, vector<32x32xbf16>
    %cst_14 = arith.constant dense<0.000000e+00> : vector<8x32xf32>
    %14 = tpu.matmul %5, %13, %cst_14 {dimension_numbers = #tpu.dot_dimension_numbers<[1], [0], [0], [1], [0, 0, 1, 1], [], []>} : vector<8x32xbf16>, vector<32x32xbf16>, vector<8x32xf32> -> vector<8x32xf32>
    %c0_15 = arith.constant 0 : index
    %c0_16 = arith.constant 0 : index
    %15 = vector.load %arg10[%c0_15, %c0_16] : memref<1x32xf32, #tpu.memory_space<vmem>>, vector<1x32xf32>
    %16 = vector.broadcast %15 : vector<1x32xf32> to vector<8x32xf32>
    %17 = arith.addf %14, %16 : vector<8x32xf32>
    %c0_17 = arith.constant 0 : index
    %c0_18 = arith.constant 0 : index
    %18 = vector.load %arg7[%c0_17, %c0_18] : memref<32x32xbf16, #tpu.memory_space<vmem>>, vector<32x32xbf16>
    %cst_19 = arith.constant dense<0.000000e+00> : vector<8x32xf32>
    %19 = tpu.matmul %5, %18, %cst_19 {dimension_numbers = #tpu.dot_dimension_numbers<[1], [0], [0], [1], [0, 0, 1, 1], [], []>} : vector<8x32xbf16>, vector<32x32xbf16>, vector<8x32xf32> -> vector<8x32xf32>
    %c0_20 = arith.constant 0 : index
    %c0_21 = arith.constant 0 : index
    %20 = vector.load %arg11[%c0_20, %c0_21] : memref<1x32xf32, #tpu.memory_space<vmem>>, vector<1x32xf32>
    %21 = vector.broadcast %20 : vector<1x32xf32> to vector<8x32xf32>
    %22 = arith.addf %19, %21 : vector<8x32xf32>
    %23 = vector.extract_strided_slice %12 {offsets = [0, 0], sizes = [8, 8], strides = [1, 1]} : vector<8x32xf32> to vector<8x8xf32>
    %24 = vector.extract_strided_slice %12 {offsets = [0, 8], sizes = [8, 8], strides = [1, 1]} : vector<8x32xf32> to vector<8x8xf32>
    %25 = vector.extract_strided_slice %12 {offsets = [0, 16], sizes = [8, 8], strides = [1, 1]} : vector<8x32xf32> to vector<8x8xf32>
    %26 = vector.extract_strided_slice %12 {offsets = [0, 24], sizes = [8, 8], strides = [1, 1]} : vector<8x32xf32> to vector<8x8xf32>
    %27 = vector.shape_cast %23 : vector<8x8xf32> to vector<1x8x8xf32>
    %28 = vector.shape_cast %24 : vector<8x8xf32> to vector<1x8x8xf32>
    %29 = vector.shape_cast %25 : vector<8x8xf32> to vector<1x8x8xf32>
    %30 = vector.shape_cast %26 : vector<8x8xf32> to vector<1x8x8xf32>
    %31 = tpu.concatenate %27, %28, %29, %30 in 0 : vector<1x8x8xf32>, vector<1x8x8xf32>, vector<1x8x8xf32>, vector<1x8x8xf32> -> vector<4x8x8xf32>
    %32 = arith.truncf %31 : vector<4x8x8xf32> to vector<4x8x8xbf16>
    %33 = vector.extract_strided_slice %17 {offsets = [0, 0], sizes = [8, 8], strides = [1, 1]} : vector<8x32xf32> to vector<8x8xf32>
    %34 = vector.extract_strided_slice %17 {offsets = [0, 8], sizes = [8, 8], strides = [1, 1]} : vector<8x32xf32> to vector<8x8xf32>
    %35 = vector.extract_strided_slice %17 {offsets = [0, 16], sizes = [8, 8], strides = [1, 1]} : vector<8x32xf32> to vector<8x8xf32>
    %36 = vector.extract_strided_slice %17 {offsets = [0, 24], sizes = [8, 8], strides = [1, 1]} : vector<8x32xf32> to vector<8x8xf32>
    %37 = vector.shape_cast %33 : vector<8x8xf32> to vector<1x8x8xf32>
    %38 = vector.shape_cast %34 : vector<8x8xf32> to vector<1x8x8xf32>
    %39 = vector.shape_cast %35 : vector<8x8xf32> to vector<1x8x8xf32>
    %40 = vector.shape_cast %36 : vector<8x8xf32> to vector<1x8x8xf32>
    %41 = tpu.concatenate %37, %38, %39, %40 in 0 : vector<1x8x8xf32>, vector<1x8x8xf32>, vector<1x8x8xf32>, vector<1x8x8xf32> -> vector<4x8x8xf32>
    %42 = arith.truncf %41 : vector<4x8x8xf32> to vector<4x8x8xbf16>
    %43 = vector.extract_strided_slice %22 {offsets = [0, 0], sizes = [8, 8], strides = [1, 1]} : vector<8x32xf32> to vector<8x8xf32>
    %44 = vector.extract_strided_slice %22 {offsets = [0, 8], sizes = [8, 8], strides = [1, 1]} : vector<8x32xf32> to vector<8x8xf32>
    %45 = vector.extract_strided_slice %22 {offsets = [0, 16], sizes = [8, 8], strides = [1, 1]} : vector<8x32xf32> to vector<8x8xf32>
    %46 = vector.extract_strided_slice %22 {offsets = [0, 24], sizes = [8, 8], strides = [1, 1]} : vector<8x32xf32> to vector<8x8xf32>
    %47 = vector.shape_cast %43 : vector<8x8xf32> to vector<1x8x8xf32>
    %48 = vector.shape_cast %44 : vector<8x8xf32> to vector<1x8x8xf32>
    %49 = vector.shape_cast %45 : vector<8x8xf32> to vector<1x8x8xf32>
    %50 = vector.shape_cast %46 : vector<8x8xf32> to vector<1x8x8xf32>
    %51 = tpu.concatenate %47, %48, %49, %50 in 0 : vector<1x8x8xf32>, vector<1x8x8xf32>, vector<1x8x8xf32>, vector<1x8x8xf32> -> vector<4x8x8xf32>
    %52 = arith.truncf %51 : vector<4x8x8xf32> to vector<4x8x8xbf16>
    "tpu.trace_start"() <{level = 10 : i32, message = "hqe,hke->hqk"}> : () -> ()
    %cst_22 = arith.constant dense<0.000000e+00> : vector<4x8x8xf32>
    %53 = tpu.matmul %32, %42, %cst_22 {dimension_numbers = #tpu.dot_dimension_numbers<[2], [2], [1], [1], [0, 0, 0, 1, 1, 1], [0], [0]>} : vector<4x8x8xbf16>, vector<4x8x8xbf16>, vector<4x8x8xf32> -> vector<4x8x8xf32>
    "tpu.trace_stop"() : () -> ()
    %54 = vector.shape_cast %7 : vector<8x8xf32> to vector<1x8x8xf32>
    %cst_23 = arith.constant 5.000000e-01 : f32
    %55 = vector.broadcast %cst_23 : f32 to vector<1x8x8xf32>
    %56 = arith.cmpf ogt, %54, %55 : vector<1x8x8xf32>
    %cst_24 = arith.constant -1.000000e+10 : f32
    %57 = vector.shape_cast %56 : vector<1x8x8xi1> to vector<1x8x8xi1>
    %58 = vector.broadcast %57 : vector<1x8x8xi1> to vector<4x8x8xi1>
    %59 = vector.broadcast %cst_24 : f32 to vector<4x8x8xf32>
    %60 = arith.select %58, %59, %53 : vector<4x8x8xi1>, vector<4x8x8xf32>
    %cst_25 = arith.constant dense<0xFF800000> : vector<4x8xf32>
    %61 = vector.multi_reduction <maximumf>, %60, %cst_25 [2] : vector<4x8x8xf32> to vector<4x8xf32>
    %62 = vector.shape_cast %61 : vector<4x8xf32> to vector<4x8x1xf32>
    %63 = vector.broadcast %62 : vector<4x8x1xf32> to vector<4x8x8xf32>
    %64 = arith.subf %60, %63 : vector<4x8x8xf32>
    %65 = math.exp %64 : vector<4x8x8xf32>
    %cst_26 = arith.constant dense<0.000000e+00> : vector<4x8xf32>
    %66 = vector.multi_reduction <add>, %65, %cst_26 [2] : vector<4x8x8xf32> to vector<4x8xf32>
    %67 = vector.shape_cast %66 : vector<4x8xf32> to vector<4x8x1xf32>
    %68 = vector.broadcast %67 : vector<4x8x1xf32> to vector<4x8x8xf32>
    %69 = arith.divf %65, %68 : vector<4x8x8xf32>
    %70 = arith.truncf %69 : vector<4x8x8xf32> to vector<4x8x8xbf16>
    %c0_27 = arith.constant 0 : index
    %c0_28 = arith.constant 0 : index
    %c0_29 = arith.constant 0 : index
    %c0_30 = arith.constant 0 : index
    %71 = vector.load %arg32[%c0_27, %c0_28, %c0_29, %c0_30] : memref<1x4x8x8xbf16, #tpu.memory_space<vmem>>, vector<1x4x8x8xbf16>
    %72 = vector.shape_cast %71 : vector<1x4x8x8xbf16> to vector<4x8x8xbf16>
    %73 = vector.shape_cast %70 : vector<4x8x8xbf16> to vector<1x4x8x8xbf16>
    tpu.vector_store %arg32[%c0_27, %c0_28, %c0_29, %c0_30], %73 {strides = array<i32>} : memref<1x4x8x8xbf16, #tpu.memory_space<vmem>>, vector<1x4x8x8xbf16>,
    %74 = arith.truncf %69 : vector<4x8x8xf32> to vector<4x8x8xbf16>
    "tpu.trace_start"() <{level = 10 : i32, message = "hqk,hke->hqe"}> : () -> ()
    %cst_31 = arith.constant dense<0.000000e+00> : vector<4x8x8xf32>
    %75 = tpu.matmul %74, %52, %cst_31 {dimension_numbers = #tpu.dot_dimension_numbers<[2], [1], [1], [2], [0, 0, 0, 1, 1, 2], [0], [0]>} : vector<4x8x8xbf16>, vector<4x8x8xbf16>, vector<4x8x8xf32> -> vector<4x8x8xf32>
    "tpu.trace_stop"() : () -> ()
    %76 = vector.extract_strided_slice %75 {offsets = [0, 0, 0], sizes = [1, 8, 8], strides = [1, 1, 1]} : vector<4x8x8xf32> to vector<1x8x8xf32>
    %77 = vector.shape_cast %76 : vector<1x8x8xf32> to vector<8x8xf32>
    %78 = vector.extract_strided_slice %75 {offsets = [1, 0, 0], sizes = [1, 8, 8], strides = [1, 1, 1]} : vector<4x8x8xf32> to vector<1x8x8xf32>
    %79 = vector.shape_cast %78 : vector<1x8x8xf32> to vector<8x8xf32>
    %80 = vector.extract_strided_slice %75 {offsets = [2, 0, 0], sizes = [1, 8, 8], strides = [1, 1, 1]} : vector<4x8x8xf32> to vector<1x8x8xf32>
    %81 = vector.shape_cast %80 : vector<1x8x8xf32> to vector<8x8xf32>
    %82 = vector.extract_strided_slice %75 {offsets = [3, 0, 0], sizes = [1, 8, 8], strides = [1, 1, 1]} : vector<4x8x8xf32> to vector<1x8x8xf32>
    %83 = vector.shape_cast %82 : vector<1x8x8xf32> to vector<8x8xf32>
    %84 = tpu.concatenate %77, %79, %81, %83 in 1 : vector<8x8xf32>, vector<8x8xf32>, vector<8x8xf32>, vector<8x8xf32> -> vector<8x32xf32>
    %85 = arith.truncf %84 : vector<8x32xf32> to vector<8x32xbf16>
    %c0_32 = arith.constant 0 : index
    %c0_33 = arith.constant 0 : index
    %86 = vector.load %arg8[%c0_32, %c0_33] : memref<32x32xbf16, #tpu.memory_space<vmem>>, vector<32x32xbf16>
    %cst_34 = arith.constant dense<0.000000e+00> : vector<8x32xf32>
    %87 = tpu.matmul %85, %86, %cst_34 {dimension_numbers = #tpu.dot_dimension_numbers<[1], [0], [0], [1], [0, 0, 1, 1], [], []>} : vector<8x32xbf16>, vector<32x32xbf16>, vector<8x32xf32> -> vector<8x32xf32>
    %c0_35 = arith.constant 0 : index
    %c0_36 = arith.constant 0 : index
    %88 = vector.load %arg12[%c0_35, %c0_36] : memref<1x32xf32, #tpu.memory_space<vmem>>, vector<1x32xf32>
    %89 = vector.broadcast %88 : vector<1x32xf32> to vector<8x32xf32>
    %90 = arith.addf %87, %89 : vector<8x32xf32>
    %91 = arith.addf %1, %90 : vector<8x32xf32>
    %c0_37 = arith.constant 0 : index
    %c0_38 = arith.constant 0 : index
    %92 = vector.load %arg25[%c0_37, %c0_38] : memref<1x32xf32, #tpu.memory_space<vmem>>, vector<1x32xf32>
    %c0_39 = arith.constant 0 : index
    %c0_40 = arith.constant 0 : index
    %93 = vector.load %arg26[%c0_39, %c0_40] : memref<1x32xf32, #tpu.memory_space<vmem>>, vector<1x32xf32>
    %cst_41 = arith.constant dense<0.000000e+00> : vector<8xf32>
    %94 = vector.multi_reduction <add>, %91, %cst_41 [1] : vector<8x32xf32> to vector<8xf32>
    %95 = vector.shape_cast %94 : vector<8xf32> to vector<8x1xf32>
    %cst_42 = arith.constant 3.200000e+01 : f32
    %96 = vector.broadcast %cst_42 : f32 to vector<8x1xf32>
    %97 = arith.divf %95, %96 : vector<8x1xf32>
    %98 = vector.broadcast %97 : vector<8x1xf32> to vector<8x32xf32>
    %99 = arith.subf %91, %98 : vector<8x32xf32>
    %100 = arith.mulf %99, %99 : vector<8x32xf32>
    %cst_43 = arith.constant dense<0.000000e+00> : vector<8xf32>
    %101 = vector.multi_reduction <add>, %100, %cst_43 [1] : vector<8x32xf32> to vector<8xf32>
    %102 = vector.shape_cast %101 : vector<8xf32> to vector<8x1xf32>
    %cst_44 = arith.constant 3.200000e+01 : f32
    %103 = vector.broadcast %cst_44 : f32 to vector<8x1xf32>
    %104 = arith.divf %102, %103 : vector<8x1xf32>
    %cst_45 = arith.constant 9.99999974E-6 : f32
    %105 = vector.broadcast %cst_45 : f32 to vector<8x1xf32>
    %106 = arith.addf %104, %105 : vector<8x1xf32>
    %107 = math.rsqrt %106 : vector<8x1xf32>
    %108 = vector.broadcast %107 : vector<8x1xf32> to vector<8x32xf32>
    %109 = arith.mulf %99, %108 : vector<8x32xf32>
    %110 = vector.broadcast %92 : vector<1x32xf32> to vector<8x32xf32>
    %111 = arith.mulf %109, %110 : vector<8x32xf32>
    %112 = vector.broadcast %93 : vector<1x32xf32> to vector<8x32xf32>
    %113 = arith.addf %111, %112 : vector<8x32xf32>
    %114 = arith.truncf %113 : vector<8x32xf32> to vector<8x32xbf16>
    %c0_46 = arith.constant 0 : index
    %c0_47 = arith.constant 0 : index
    %c0_48 = arith.constant 0 : index
    %115 = vector.load %arg4[%c0_46, %c0_47, %c0_48] : memref<1x8x8xf32, #tpu.memory_space<vmem>>, vector<1x8x8xf32>
    %116 = vector.shape_cast %115 : vector<1x8x8xf32> to vector<8x8xf32>
    %c0_49 = arith.constant 0 : index
    %c0_50 = arith.constant 0 : index
    %117 = vector.load %arg13[%c0_49, %c0_50] : memref<32x32xbf16, #tpu.memory_space<vmem>>, vector<32x32xbf16>
    %cst_51 = arith.constant dense<0.000000e+00> : vector<8x32xf32>
    %118 = tpu.matmul %114, %117, %cst_51 {dimension_numbers = #tpu.dot_dimension_numbers<[1], [0], [0], [1], [0, 0, 1, 1], [], []>} : vector<8x32xbf16>, vector<32x32xbf16>, vector<8x32xf32> -> vector<8x32xf32>
    %c0_52 = arith.constant 0 : index
    %c0_53 = arith.constant 0 : index
    %119 = vector.load %arg17[%c0_52, %c0_53] : memref<1x32xf32, #tpu.memory_space<vmem>>, vector<1x32xf32>
    %120 = vector.broadcast %119 : vector<1x32xf32> to vector<8x32xf32>
    %121 = arith.addf %118, %120 : vector<8x32xf32>
    %c0_54 = arith.constant 0 : index
    %c0_55 = arith.constant 0 : index
    %122 = vector.load %arg14[%c0_54, %c0_55] : memref<32x32xbf16, #tpu.memory_space<vmem>>, vector<32x32xbf16>
    %cst_56 = arith.constant dense<0.000000e+00> : vector<8x32xf32>
    %123 = tpu.matmul %4, %122, %cst_56 {dimension_numbers = #tpu.dot_dimension_numbers<[1], [0], [0], [1], [0, 0, 1, 1], [], []>} : vector<8x32xbf16>, vector<32x32xbf16>, vector<8x32xf32> -> vector<8x32xf32>
    %c0_57 = arith.constant 0 : index
    %c0_58 = arith.constant 0 : index
    %124 = vector.load %arg18[%c0_57, %c0_58] : memref<1x32xf32, #tpu.memory_space<vmem>>, vector<1x32xf32>
    %125 = vector.broadcast %124 : vector<1x32xf32> to vector<8x32xf32>
    %126 = arith.addf %123, %125 : vector<8x32xf32>
    %c0_59 = arith.constant 0 : index
    %c0_60 = arith.constant 0 : index
    %127 = vector.load %arg15[%c0_59, %c0_60] : memref<32x32xbf16, #tpu.memory_space<vmem>>, vector<32x32xbf16>
    %cst_61 = arith.constant dense<0.000000e+00> : vector<8x32xf32>
    %128 = tpu.matmul %4, %127, %cst_61 {dimension_numbers = #tpu.dot_dimension_numbers<[1], [0], [0], [1], [0, 0, 1, 1], [], []>} : vector<8x32xbf16>, vector<32x32xbf16>, vector<8x32xf32> -> vector<8x32xf32>
    %c0_62 = arith.constant 0 : index
    %c0_63 = arith.constant 0 : index
    %129 = vector.load %arg19[%c0_62, %c0_63] : memref<1x32xf32, #tpu.memory_space<vmem>>, vector<1x32xf32>
    %130 = vector.broadcast %129 : vector<1x32xf32> to vector<8x32xf32>
    %131 = arith.addf %128, %130 : vector<8x32xf32>
    %132 = vector.extract_strided_slice %121 {offsets = [0, 0], sizes = [8, 8], strides = [1, 1]} : vector<8x32xf32> to vector<8x8xf32>
    %133 = vector.extract_strided_slice %121 {offsets = [0, 8], sizes = [8, 8], strides = [1, 1]} : vector<8x32xf32> to vector<8x8xf32>
    %134 = vector.extract_strided_slice %121 {offsets = [0, 16], sizes = [8, 8], strides = [1, 1]} : vector<8x32xf32> to vector<8x8xf32>
    %135 = vector.extract_strided_slice %121 {offsets = [0, 24], sizes = [8, 8], strides = [1, 1]} : vector<8x32xf32> to vector<8x8xf32>
    %136 = vector.shape_cast %132 : vector<8x8xf32> to vector<1x8x8xf32>
    %137 = vector.shape_cast %133 : vector<8x8xf32> to vector<1x8x8xf32>
    %138 = vector.shape_cast %134 : vector<8x8xf32> to vector<1x8x8xf32>
    %139 = vector.shape_cast %135 : vector<8x8xf32> to vector<1x8x8xf32>
    %140 = tpu.concatenate %136, %137, %138, %139 in 0 : vector<1x8x8xf32>, vector<1x8x8xf32>, vector<1x8x8xf32>, vector<1x8x8xf32> -> vector<4x8x8xf32>
    %141 = arith.truncf %140 : vector<4x8x8xf32> to vector<4x8x8xbf16>
    %142 = vector.extract_strided_slice %126 {offsets = [0, 0], sizes = [8, 8], strides = [1, 1]} : vector<8x32xf32> to vector<8x8xf32>
    %143 = vector.extract_strided_slice %126 {offsets = [0, 8], sizes = [8, 8], strides = [1, 1]} : vector<8x32xf32> to vector<8x8xf32>
    %144 = vector.extract_strided_slice %126 {offsets = [0, 16], sizes = [8, 8], strides = [1, 1]} : vector<8x32xf32> to vector<8x8xf32>
    %145 = vector.extract_strided_slice %126 {offsets = [0, 24], sizes = [8, 8], strides = [1, 1]} : vector<8x32xf32> to vector<8x8xf32>
    %146 = vector.shape_cast %142 : vector<8x8xf32> to vector<1x8x8xf32>
    %147 = vector.shape_cast %143 : vector<8x8xf32> to vector<1x8x8xf32>
    %148 = vector.shape_cast %144 : vector<8x8xf32> to vector<1x8x8xf32>
    %149 = vector.shape_cast %145 : vector<8x8xf32> to vector<1x8x8xf32>
    %150 = tpu.concatenate %146, %147, %148, %149 in 0 : vector<1x8x8xf32>, vector<1x8x8xf32>, vector<1x8x8xf32>, vector<1x8x8xf32> -> vector<4x8x8xf32>
    %151 = arith.truncf %150 : vector<4x8x8xf32> to vector<4x8x8xbf16>
    %152 = vector.extract_strided_slice %131 {offsets = [0, 0], sizes = [8, 8], strides = [1, 1]} : vector<8x32xf32> to vector<8x8xf32>
    %153 = vector.extract_strided_slice %131 {offsets = [0, 8], sizes = [8, 8], strides = [1, 1]} : vector<8x32xf32> to vector<8x8xf32>
    %154 = vector.extract_strided_slice %131 {offsets = [0, 16], sizes = [8, 8], strides = [1, 1]} : vector<8x32xf32> to vector<8x8xf32>
    %155 = vector.extract_strided_slice %131 {offsets = [0, 24], sizes = [8, 8], strides = [1, 1]} : vector<8x32xf32> to vector<8x8xf32>
    %156 = vector.shape_cast %152 : vector<8x8xf32> to vector<1x8x8xf32>
    %157 = vector.shape_cast %153 : vector<8x8xf32> to vector<1x8x8xf32>
    %158 = vector.shape_cast %154 : vector<8x8xf32> to vector<1x8x8xf32>
    %159 = vector.shape_cast %155 : vector<8x8xf32> to vector<1x8x8xf32>
    %160 = tpu.concatenate %156, %157, %158, %159 in 0 : vector<1x8x8xf32>, vector<1x8x8xf32>, vector<1x8x8xf32>, vector<1x8x8xf32> -> vector<4x8x8xf32>
    %161 = arith.truncf %160 : vector<4x8x8xf32> to vector<4x8x8xbf16>
    "tpu.trace_start"() <{level = 10 : i32, message = "hqe,hke->hqk"}> : () -> ()
    %cst_64 = arith.constant dense<0.000000e+00> : vector<4x8x8xf32>
    %162 = tpu.matmul %141, %151, %cst_64 {dimension_numbers = #tpu.dot_dimension_numbers<[2], [2], [1], [1], [0, 0, 0, 1, 1, 1], [0], [0]>} : vector<4x8x8xbf16>, vector<4x8x8xbf16>, vector<4x8x8xf32> -> vector<4x8x8xf32>
    "tpu.trace_stop"() : () -> ()
    %163 = vector.shape_cast %116 : vector<8x8xf32> to vector<1x8x8xf32>
    %cst_65 = arith.constant 5.000000e-01 : f32
    %164 = vector.broadcast %cst_65 : f32 to vector<1x8x8xf32>
    %165 = arith.cmpf ogt, %163, %164 : vector<1x8x8xf32>
    %cst_66 = arith.constant -1.000000e+10 : f32
    %166 = vector.shape_cast %165 : vector<1x8x8xi1> to vector<1x8x8xi1>
    %167 = vector.broadcast %166 : vector<1x8x8xi1> to vector<4x8x8xi1>
    %168 = vector.broadcast %cst_66 : f32 to vector<4x8x8xf32>
    %169 = arith.select %167, %168, %162 : vector<4x8x8xi1>, vector<4x8x8xf32>
    %cst_67 = arith.constant dense<0xFF800000> : vector<4x8xf32>
    %170 = vector.multi_reduction <maximumf>, %169, %cst_67 [2] : vector<4x8x8xf32> to vector<4x8xf32>
    %171 = vector.shape_cast %170 : vector<4x8xf32> to vector<4x8x1xf32>
    %172 = vector.broadcast %171 : vector<4x8x1xf32> to vector<4x8x8xf32>
    %173 = arith.subf %169, %172 : vector<4x8x8xf32>
    %174 = math.exp %173 : vector<4x8x8xf32>
    %cst_68 = arith.constant dense<0.000000e+00> : vector<4x8xf32>
    %175 = vector.multi_reduction <add>, %174, %cst_68 [2] : vector<4x8x8xf32> to vector<4x8xf32>
    %176 = vector.shape_cast %175 : vector<4x8xf32> to vector<4x8x1xf32>
    %177 = vector.broadcast %176 : vector<4x8x1xf32> to vector<4x8x8xf32>
    %178 = arith.divf %174, %177 : vector<4x8x8xf32>
    %179 = arith.truncf %178 : vector<4x8x8xf32> to vector<4x8x8xbf16>
    %c0_69 = arith.constant 0 : index
    %c0_70 = arith.constant 0 : index
    %c0_71 = arith.constant 0 : index
    %c0_72 = arith.constant 0 : index
    %180 = vector.load %arg33[%c0_69, %c0_70, %c0_71, %c0_72] : memref<1x4x8x8xbf16, #tpu.memory_space<vmem>>, vector<1x4x8x8xbf16>
    %181 = vector.shape_cast %180 : vector<1x4x8x8xbf16> to vector<4x8x8xbf16>
    %182 = vector.shape_cast %179 : vector<4x8x8xbf16> to vector<1x4x8x8xbf16>
    tpu.vector_store %arg33[%c0_69, %c0_70, %c0_71, %c0_72], %182 {strides = array<i32>} : memref<1x4x8x8xbf16, #tpu.memory_space<vmem>>, vector<1x4x8x8xbf16>,
    %183 = arith.truncf %178 : vector<4x8x8xf32> to vector<4x8x8xbf16>
    "tpu.trace_start"() <{level = 10 : i32, message = "hqk,hke->hqe"}> : () -> ()
    %cst_73 = arith.constant dense<0.000000e+00> : vector<4x8x8xf32>
    %184 = tpu.matmul %183, %161, %cst_73 {dimension_numbers = #tpu.dot_dimension_numbers<[2], [1], [1], [2], [0, 0, 0, 1, 1, 2], [0], [0]>} : vector<4x8x8xbf16>, vector<4x8x8xbf16>, vector<4x8x8xf32> -> vector<4x8x8xf32>
    "tpu.trace_stop"() : () -> ()
    %185 = vector.extract_strided_slice %184 {offsets = [0, 0, 0], sizes = [1, 8, 8], strides = [1, 1, 1]} : vector<4x8x8xf32> to vector<1x8x8xf32>
    %186 = vector.shape_cast %185 : vector<1x8x8xf32> to vector<8x8xf32>
    %187 = vector.extract_strided_slice %184 {offsets = [1, 0, 0], sizes = [1, 8, 8], strides = [1, 1, 1]} : vector<4x8x8xf32> to vector<1x8x8xf32>
    %188 = vector.shape_cast %187 : vector<1x8x8xf32> to vector<8x8xf32>
    %189 = vector.extract_strided_slice %184 {offsets = [2, 0, 0], sizes = [1, 8, 8], strides = [1, 1, 1]} : vector<4x8x8xf32> to vector<1x8x8xf32>
    %190 = vector.shape_cast %189 : vector<1x8x8xf32> to vector<8x8xf32>
    %191 = vector.extract_strided_slice %184 {offsets = [3, 0, 0], sizes = [1, 8, 8], strides = [1, 1, 1]} : vector<4x8x8xf32> to vector<1x8x8xf32>
    %192 = vector.shape_cast %191 : vector<1x8x8xf32> to vector<8x8xf32>
    %193 = tpu.concatenate %186, %188, %190, %192 in 1 : vector<8x8xf32>, vector<8x8xf32>, vector<8x8xf32>, vector<8x8xf32> -> vector<8x32xf32>
    %194 = arith.truncf %193 : vector<8x32xf32> to vector<8x32xbf16>
    %c0_74 = arith.constant 0 : index
    %c0_75 = arith.constant 0 : index
    %195 = vector.load %arg16[%c0_74, %c0_75] : memref<32x32xbf16, #tpu.memory_space<vmem>>, vector<32x32xbf16>
    %cst_76 = arith.constant dense<0.000000e+00> : vector<8x32xf32>
    %196 = tpu.matmul %194, %195, %cst_76 {dimension_numbers = #tpu.dot_dimension_numbers<[1], [0], [0], [1], [0, 0, 1, 1], [], []>} : vector<8x32xbf16>, vector<32x32xbf16>, vector<8x32xf32> -> vector<8x32xf32>
    %c0_77 = arith.constant 0 : index
    %c0_78 = arith.constant 0 : index
    %197 = vector.load %arg20[%c0_77, %c0_78] : memref<1x32xf32, #tpu.memory_space<vmem>>, vector<1x32xf32>
    %198 = vector.broadcast %197 : vector<1x32xf32> to vector<8x32xf32>
    %199 = arith.addf %196, %198 : vector<8x32xf32>
    %200 = arith.addf %113, %199 : vector<8x32xf32>
    %c0_79 = arith.constant 0 : index
    %c0_80 = arith.constant 0 : index
    %201 = vector.load %arg27[%c0_79, %c0_80] : memref<1x32xf32, #tpu.memory_space<vmem>>, vector<1x32xf32>
    %c0_81 = arith.constant 0 : index
    %c0_82 = arith.constant 0 : index
    %202 = vector.load %arg28[%c0_81, %c0_82] : memref<1x32xf32, #tpu.memory_space<vmem>>, vector<1x32xf32>
    %cst_83 = arith.constant dense<0.000000e+00> : vector<8xf32>
    %203 = vector.multi_reduction <add>, %200, %cst_83 [1] : vector<8x32xf32> to vector<8xf32>
    %204 = vector.shape_cast %203 : vector<8xf32> to vector<8x1xf32>
    %cst_84 = arith.constant 3.200000e+01 : f32
    %205 = vector.broadcast %cst_84 : f32 to vector<8x1xf32>
    %206 = arith.divf %204, %205 : vector<8x1xf32>
    %207 = vector.broadcast %206 : vector<8x1xf32> to vector<8x32xf32>
    %208 = arith.subf %200, %207 : vector<8x32xf32>
    %209 = arith.mulf %208, %208 : vector<8x32xf32>
    %cst_85 = arith.constant dense<0.000000e+00> : vector<8xf32>
    %210 = vector.multi_reduction <add>, %209, %cst_85 [1] : vector<8x32xf32> to vector<8xf32>
    %211 = vector.shape_cast %210 : vector<8xf32> to vector<8x1xf32>
    %cst_86 = arith.constant 3.200000e+01 : f32
    %212 = vector.broadcast %cst_86 : f32 to vector<8x1xf32>
    %213 = arith.divf %211, %212 : vector<8x1xf32>
    %cst_87 = arith.constant 9.99999974E-6 : f32
    %214 = vector.broadcast %cst_87 : f32 to vector<8x1xf32>
    %215 = arith.addf %213, %214 : vector<8x1xf32>
    %216 = math.rsqrt %215 : vector<8x1xf32>
    %217 = vector.broadcast %216 : vector<8x1xf32> to vector<8x32xf32>
    %218 = arith.mulf %208, %217 : vector<8x32xf32>
    %219 = vector.broadcast %201 : vector<1x32xf32> to vector<8x32xf32>
    %220 = arith.mulf %218, %219 : vector<8x32xf32>
    %221 = vector.broadcast %202 : vector<1x32xf32> to vector<8x32xf32>
    %222 = arith.addf %220, %221 : vector<8x32xf32>
    %223 = arith.truncf %222 : vector<8x32xf32> to vector<8x32xbf16>
    %c0_88 = arith.constant 0 : index
    %c0_89 = arith.constant 0 : index
    %224 = vector.load %arg21[%c0_88, %c0_89] : memref<32x64xbf16, #tpu.memory_space<vmem>>, vector<32x64xbf16>
    %cst_90 = arith.constant dense<0.000000e+00> : vector<8x64xf32>
    %225 = tpu.matmul %223, %224, %cst_90 {dimension_numbers = #tpu.dot_dimension_numbers<[1], [0], [0], [1], [0, 0, 1, 1], [], []>} : vector<8x32xbf16>, vector<32x64xbf16>, vector<8x64xf32> -> vector<8x64xf32>
    %c0_91 = arith.constant 0 : index
    %c0_92 = arith.constant 0 : index
    %226 = vector.load %arg22[%c0_91, %c0_92] : memref<1x64xf32, #tpu.memory_space<vmem>>, vector<1x64xf32>
    %227 = vector.broadcast %226 : vector<1x64xf32> to vector<8x64xf32>
    %228 = arith.addf %225, %227 : vector<8x64xf32>
    %cst_93 = arith.constant 0.000000e+00 : f32
    %229 = vector.broadcast %cst_93 : f32 to vector<8x64xf32>
    %230 = arith.maximumf %228, %229 : vector<8x64xf32>
    %231 = arith.truncf %230 : vector<8x64xf32> to vector<8x64xbf16>
    %c0_94 = arith.constant 0 : index
    %c0_95 = arith.constant 0 : index
    %232 = vector.load %arg23[%c0_94, %c0_95] : memref<64x32xbf16, #tpu.memory_space<vmem>>, vector<64x32xbf16>
    %cst_96 = arith.constant dense<0.000000e+00> : vector<8x32xf32>
    %233 = tpu.matmul %231, %232, %cst_96 {dimension_numbers = #tpu.dot_dimension_numbers<[1], [0], [0], [1], [0, 0, 1, 1], [], []>} : vector<8x64xbf16>, vector<64x32xbf16>, vector<8x32xf32> -> vector<8x32xf32>
    %c0_97 = arith.constant 0 : index
    %c0_98 = arith.constant 0 : index
    %234 = vector.load %arg24[%c0_97, %c0_98] : memref<1x32xf32, #tpu.memory_space<vmem>>, vector<1x32xf32>
    %235 = vector.broadcast %234 : vector<1x32xf32> to vector<8x32xf32>
    %236 = arith.addf %233, %235 : vector<8x32xf32>
    %237 = arith.addf %222, %236 : vector<8x32xf32>
    %c0_99 = arith.constant 0 : index
    %c0_100 = arith.constant 0 : index
    %238 = vector.load %arg29[%c0_99, %c0_100] : memref<1x32xf32, #tpu.memory_space<vmem>>, vector<1x32xf32>
    %c0_101 = arith.constant 0 : index
    %c0_102 = arith.constant 0 : index
    %239 = vector.load %arg30[%c0_101, %c0_102] : memref<1x32xf32, #tpu.memory_space<vmem>>, vector<1x32xf32>
    %cst_103 = arith.constant dense<0.000000e+00> : vector<8xf32>
    %240 = vector.multi_reduction <add>, %237, %cst_103 [1] : vector<8x32xf32> to vector<8xf32>
    %241 = vector.shape_cast %240 : vector<8xf32> to vector<8x1xf32>
    %cst_104 = arith.constant 3.200000e+01 : f32
    %242 = vector.broadcast %cst_104 : f32 to vector<8x1xf32>
    %243 = arith.divf %241, %242 : vector<8x1xf32>
    %244 = vector.broadcast %243 : vector<8x1xf32> to vector<8x32xf32>
    %245 = arith.subf %237, %244 : vector<8x32xf32>
    %246 = arith.mulf %245, %245 : vector<8x32xf32>
    %cst_105 = arith.constant dense<0.000000e+00> : vector<8xf32>
    %247 = vector.multi_reduction <add>, %246, %cst_105 [1] : vector<8x32xf32> to vector<8xf32>
    %248 = vector.shape_cast %247 : vector<8xf32> to vector<8x1xf32>
    %cst_106 = arith.constant 3.200000e+01 : f32
    %249 = vector.broadcast %cst_106 : f32 to vector<8x1xf32>
    %250 = arith.divf %248, %249 : vector<8x1xf32>
    %cst_107 = arith.constant 9.99999974E-6 : f32
    %251 = vector.broadcast %cst_107 : f32 to vector<8x1xf32>
    %252 = arith.addf %250, %251 : vector<8x1xf32>
    %253 = math.rsqrt %252 : vector<8x1xf32>
    %254 = vector.broadcast %253 : vector<8x1xf32> to vector<8x32xf32>
    %255 = arith.mulf %245, %254 : vector<8x32xf32>
    %256 = vector.broadcast %238 : vector<1x32xf32> to vector<8x32xf32>
    %257 = arith.mulf %255, %256 : vector<8x32xf32>
    %258 = vector.broadcast %239 : vector<1x32xf32> to vector<8x32xf32>
    %259 = arith.addf %257, %258 : vector<8x32xf32>
    %c0_108 = arith.constant 0 : index
    %c0_109 = arith.constant 0 : index
    %c0_110 = arith.constant 0 : index
    %260 = vector.load %arg31[%c0_108, %c0_109, %c0_110] : memref<1x8x32xf32, #tpu.memory_space<vmem>>, vector<1x8x32xf32>
    %261 = vector.shape_cast %260 : vector<1x8x32xf32> to vector<8x32xf32>
    %262 = vector.shape_cast %259 : vector<8x32xf32> to vector<1x8x32xf32>
    tpu.vector_store %arg31[%c0_108, %c0_109, %c0_110], %262 {strides = array<i32>} : memref<1x8x32xf32, #tpu.memory_space<vmem>>, vector<1x8x32xf32>,
    return
  }
  func.func @transform_0(%arg0: i32) -> (i32, i32, i32) {
    %c0_i32 = arith.constant 0 : i32
    %c0_i32_0 = arith.constant 0 : i32
    %c0_i32_1 = arith.constant 0 : i32
    return %arg0, %c0_i32, %c0_i32_0 : i32, i32, i32
  }
  func.func @transform_1(%arg0: i32) -> (i32, i32, i32) {
    %c0_i32 = arith.constant 0 : i32
    %c0_i32_0 = arith.constant 0 : i32
    %c0_i32_1 = arith.constant 0 : i32
    return %arg0, %c0_i32, %c0_i32_0 : i32, i32, i32
  }
  func.func @transform_2(%arg0: i32) -> (i32, i32, i32) {
    %c0_i32 = arith.constant 0 : i32
    %c0_i32_0 = arith.constant 0 : i32
    %c0_i32_1 = arith.constant 0 : i32
    return %arg0, %c0_i32, %c0_i32_0 : i32, i32, i32
  }
  func.func @transform_3(%arg0: i32) -> (i32, i32, i32) {
    %c0_i32 = arith.constant 0 : i32
    %c0_i32_0 = arith.constant 0 : i32
    %c0_i32_1 = arith.constant 0 : i32
    return %arg0, %c0_i32, %c0_i32_0 : i32, i32, i32
  }
  func.func @transform_4(%arg0: i32) -> (i32, i32) {
    %c0_i32 = arith.constant 0 : i32
    %c0_i32_0 = arith.constant 0 : i32
    %c0_i32_1 = arith.constant 0 : i32
    return %c0_i32, %c0_i32_0 : i32, i32
  }
  func.func @transform_5(%arg0: i32) -> (i32, i32) {
    %c0_i32 = arith.constant 0 : i32
    %c0_i32_0 = arith.constant 0 : i32
    %c0_i32_1 = arith.constant 0 : i32
    return %c0_i32, %c0_i32_0 : i32, i32
  }
  func.func @transform_6(%arg0: i32) -> (i32, i32) {
    %c0_i32 = arith.constant 0 : i32
    %c0_i32_0 = arith.constant 0 : i32
    %c0_i32_1 = arith.constant 0 : i32
    return %c0_i32, %c0_i32_0 : i32, i32
  }
  func.func @transform_7(%arg0: i32) -> (i32, i32) {
    %c0_i32 = arith.constant 0 : i32
    %c0_i32_0 = arith.constant 0 : i32
    %c0_i32_1 = arith.constant 0 : i32
    return %c0_i32, %c0_i32_0 : i32, i32
  }
  func.func @transform_8(%arg0: i32) -> (i32, i32) {
    %c0_i32 = arith.constant 0 : i32
    %c0_i32_0 = arith.constant 0 : i32
    %c0_i32_1 = arith.constant 0 : i32
    return %c0_i32, %c0_i32_0 : i32, i32
  }
  func.func @transform_9(%arg0: i32) -> (i32, i32) {
    %c0_i32 = arith.constant 0 : i32
    %c0_i32_0 = arith.constant 0 : i32
    %c0_i32_1 = arith.constant 0 : i32
    return %c0_i32, %c0_i32_0 : i32, i32
  }
  func.func @transform_10(%arg0: i32) -> (i32, i32) {
    %c0_i32 = arith.constant 0 : i32
    %c0_i32_0 = arith.constant 0 : i32
    %c0_i32_1 = arith.constant 0 : i32
    return %c0_i32, %c0_i32_0 : i32, i32
  }
  func.func @transform_11(%arg0: i32) -> (i32, i32) {
    %c0_i32 = arith.constant 0 : i32
    %c0_i32_0 = arith.constant 0 : i32
    %c0_i32_1 = arith.constant 0 : i32
    return %c0_i32, %c0_i32_0 : i32, i32
  }
  func.func @transform_12(%arg0: i32) -> (i32, i32) {
    %c0_i32 = arith.constant 0 : i32
    %c0_i32_0 = arith.constant 0 : i32
    %c0_i32_1 = arith.constant 0 : i32
    return %c0_i32, %c0_i32_0 : i32, i32
  }
  func.func @transform_13(%arg0: i32) -> (i32, i32) {
    %c0_i32 = arith.constant 0 : i32
    %c0_i32_0 = arith.constant 0 : i32
    %c0_i32_1 = arith.constant 0 : i32
    return %c0_i32, %c0_i32_0 : i32, i32
  }
  func.func @transform_14(%arg0: i32) -> (i32, i32) {
    %c0_i32 = arith.constant 0 : i32
    %c0_i32_0 = arith.constant 0 : i32
    %c0_i32_1 = arith.constant 0 : i32
    return %c0_i32, %c0_i32_0 : i32, i32
  }
  func.func @transform_15(%arg0: i32) -> (i32, i32) {
    %c0_i32 = arith.constant 0 : i32
    %c0_i32_0 = arith.constant 0 : i32
    %c0_i32_1 = arith.constant 0 : i32
    return %c0_i32, %c0_i32_0 : i32, i32
  }
  func.func @transform_16(%arg0: i32) -> (i32, i32) {
    %c0_i32 = arith.constant 0 : i32
    %c0_i32_0 = arith.constant 0 : i32
    %c0_i32_1 = arith.constant 0 : i32
    return %c0_i32, %c0_i32_0 : i32, i32
  }
  func.func @transform_17(%arg0: i32) -> (i32, i32) {
    %c0_i32 = arith.constant 0 : i32
    %c0_i32_0 = arith.constant 0 : i32
    %c0_i32_1 = arith.constant 0 : i32
    return %c0_i32, %c0_i32_0 : i32, i32
  }
  func.func @transform_18(%arg0: i32) -> (i32, i32) {
    %c0_i32 = arith.constant 0 : i32
    %c0_i32_0 = arith.constant 0 : i32
    %c0_i32_1 = arith.constant 0 : i32
    return %c0_i32, %c0_i32_0 : i32, i32
  }
  func.func @transform_19(%arg0: i32) -> (i32, i32) {
    %c0_i32 = arith.constant 0 : i32
    %c0_i32_0 = arith.constant 0 : i32
    %c0_i32_1 = arith.constant 0 : i32
    return %c0_i32, %c0_i32_0 : i32, i32
  }
  func.func @transform_20(%arg0: i32) -> (i32, i32) {
    %c0_i32 = arith.constant 0 : i32
    %c0_i32_0 = arith.constant 0 : i32
    %c0_i32_1 = arith.constant 0 : i32
    return %c0_i32, %c0_i32_0 : i32, i32
  }
  func.func @transform_21(%arg0: i32) -> (i32, i32) {
    %c0_i32 = arith.constant 0 : i32
    %c0_i32_0 = arith.constant 0 : i32
    %c0_i32_1 = arith.constant 0 : i32
    return %c0_i32, %c0_i32_0 : i32, i32
  }
  func.func @transform_22(%arg0: i32) -> (i32, i32) {
    %c0_i32 = arith.constant 0 : i32
    %c0_i32_0 = arith.constant 0 : i32
    %c0_i32_1 = arith.constant 0 : i32
    return %c0_i32, %c0_i32_0 : i32, i32
  }
  func.func @transform_23(%arg0: i32) -> (i32, i32) {
    %c0_i32 = arith.constant 0 : i32
    %c0_i32_0 = arith.constant 0 : i32
    %c0_i32_1 = arith.constant 0 : i32
    return %c0_i32, %c0_i32_0 : i32, i32
  }
  func.func @transform_24(%arg0: i32) -> (i32, i32) {
    %c0_i32 = arith.constant 0 : i32
    %c0_i32_0 = arith.constant 0 : i32
    %c0_i32_1 = arith.constant 0 : i32
    return %c0_i32, %c0_i32_0 : i32, i32
  }
  func.func @transform_25(%arg0: i32) -> (i32, i32) {
    %c0_i32 = arith.constant 0 : i32
    %c0_i32_0 = arith.constant 0 : i32
    %c0_i32_1 = arith.constant 0 : i32
    return %c0_i32, %c0_i32_0 : i32, i32
  }
  func.func @transform_26(%arg0: i32) -> (i32, i32) {
    %c0_i32 = arith.constant 0 : i32
    %c0_i32_0 = arith.constant 0 : i32
    %c0_i32_1 = arith.constant 0 : i32
    return %c0_i32, %c0_i32_0 : i32, i32
  }
  func.func @transform_27(%arg0: i32) -> (i32, i32) {
    %c0_i32 = arith.constant 0 : i32
    %c0_i32_0 = arith.constant 0 : i32
    %c0_i32_1 = arith.constant 0 : i32
    return %c0_i32, %c0_i32_0 : i32, i32
  }
  func.func @transform_28(%arg0: i32) -> (i32, i32) {
    %c0_i32 = arith.constant 0 : i32
    %c0_i32_0 = arith.constant 0 : i32
    %c0_i32_1 = arith.constant 0 : i32
    return %c0_i32, %c0_i32_0 : i32, i32
  }
  func.func @transform_29(%arg0: i32) -> (i32, i32) {
    %c0_i32 = arith.constant 0 : i32
    %c0_i32_0 = arith.constant 0 : i32
    %c0_i32_1 = arith.constant 0 : i32
    return %c0_i32, %c0_i32_0 : i32, i32
  }
  func.func @transform_30(%arg0: i32) -> (i32, i32, i32) {
    %c0_i32 = arith.constant 0 : i32
    %c0_i32_0 = arith.constant 0 : i32
    %c0_i32_1 = arith.constant 0 : i32
    return %arg0, %c0_i32, %c0_i32_0 : i32, i32, i32
  }
  func.func @transform_31(%arg0: i32) -> (i32, i32, i32, i32) {
    %c0_i32 = arith.constant 0 : i32
    %c0_i32_0 = arith.constant 0 : i32
    %c0_i32_1 = arith.constant 0 : i32
    %c0_i32_2 = arith.constant 0 : i32
    return %arg0, %c0_i32, %c0_i32_0, %c0_i32_1 : i32, i32, i32, i32
  }
  func.func @transform_32(%arg0: i32) -> (i32, i32, i32, i32) {
    %c0_i32 = arith.constant 0 : i32
    %c0_i32_0 = arith.constant 0 : i32
    %c0_i32_1 = arith.constant 0 : i32
    %c0_i32_2 = arith.constant 0 : i32
    return %arg0, %c0_i32, %c0_i32_0, %c0_i32_1 : i32, i32, i32, i32
  }
}

</mosaic_0001>

<llo_original>
// kernel: tpu_custom_call.1
$region0: #{tpu_custom_call.1}
  #allocation0 [shape = 'u32[]', space=smem, size = 0x4, offset = 0x4, fixed_abs, tag = 'smem constant byte address 0x4 - core index']
  #allocation1 [shape = 'u32[144,128]{1,0:T(1,128)}', space=vmem, size = 0x12000, scoped, tag = 'internal scratch']
  %s0 = inlined_call_operand.smem [shape: u32[33], index: -1, kind: input, shape index: {}]
  %s1 = sld [smem:[%s0]]
  %s2 = scalar_lea.smem %s0, 1
  %s3 = sld [smem:[%s2]]
  %s4 = scalar_lea.smem %s0, 2
  %s5 = sld [smem:[%s4]]
  %s6 = scalar_lea.smem %s0, 3
  %s7 = sld [smem:[%s6]]
  %s8 = scalar_lea.smem %s0, 4
  %s9 = sld [smem:[%s8]]
  %s10 = scalar_lea.smem %s0, 5
  %s11 = sld [smem:[%s10]]
  %s12 = scalar_lea.smem %s0, 6
  %s13 = sld [smem:[%s12]]
  %s14 = scalar_lea.smem %s0, 7
  %s15 = sld [smem:[%s14]]
  %s16 = scalar_lea.smem %s0, 8
  %s17 = sld [smem:[%s16]]
  %s18 = scalar_lea.smem %s0, 9
  %s19 = sld [smem:[%s18]]
  %s20 = scalar_lea.smem %s0, 10
  %s21 = sld [smem:[%s20]]
  %s22 = scalar_lea.smem %s0, 11
  %s23 = sld [smem:[%s22]]
  %s24 = scalar_lea.smem %s0, 12
  %s25 = sld [smem:[%s24]]
  %s26 = scalar_lea.smem %s0, 13
  %s27 = sld [smem:[%s26]]
  %s28 = scalar_lea.smem %s0, 14
  %s29 = sld [smem:[%s28]]
  %s30 = scalar_lea.smem %s0, 15
  %s31 = sld [smem:[%s30]]
  %s32 = scalar_lea.smem %s0, 16
  %s33 = sld [smem:[%s32]]
  %s34 = scalar_lea.smem %s0, 17
  %s35 = sld [smem:[%s34]]
  %s36 = scalar_lea.smem %s0, 18
  %s37 = sld [smem:[%s36]]
  %s38 = scalar_lea.smem %s0, 19
  %s39 = sld [smem:[%s38]]
  %s40 = scalar_lea.smem %s0, 20
  %s41 = sld [smem:[%s40]]
  %s42 = scalar_lea.smem %s0, 21
  %s43 = sld [smem:[%s42]]
  %s44 = scalar_lea.smem %s0, 22
  %s45 = sld [smem:[%s44]]
  %s46 = scalar_lea.smem %s0, 23
  %s47 = sld [smem:[%s46]]
  %s48 = scalar_lea.smem %s0, 24
  %s49 = sld [smem:[%s48]]
  %s50 = scalar_lea.smem %s0, 25
  %s51 = sld [smem:[%s50]]
  %s52 = scalar_lea.smem %s0, 26
  %s53 = sld [smem:[%s52]]
  %s54 = scalar_lea.smem %s0, 27
  %s55 = sld [smem:[%s54]]
  %s56 = scalar_lea.smem %s0, 28
  %s57 = sld [smem:[%s56]]
  %s58 = scalar_lea.smem %s0, 29
  %s59 = sld [smem:[%s58]]
  %s60 = scalar_lea.smem %s0, 30
  %s61 = sld [smem:[%s60]]
  %s62 = scalar_lea.smem %s0, 31
  %s63 = sld [smem:[%s62]]
  %s64 = scalar_lea.smem %s0, 32
  %s65 = sld [smem:[%s64]]
  %66 = xla_tuple %s61, %s63, %s65
  %s67 = sld [smem:[#allocation0]]
  $region221: #{tpu_custom_call.1} parent=0
    _
  %s69 = ssub.s32 1, %s67
  %s70 = scalar_select 0, %s69, %s67
  $region1: #{tpu_custom_call.1} parent=0
    #allocation2 [shape = 'u8[8192]{0}', space=vmem, size = 0x2000, scoped, tag = 'input window, operand 3']
    #allocation3 [shape = 's32[2]{0}', space=sflag, size = 0x8, scoped, tag = 'scoped memory for tpu_custom_call.1']
    #allocation4 [shape = 's32[2]{0}', space=sflag, size = 0x8, scoped, tag = 'scoped memory for tpu_custom_call.1']
    #allocation5 [shape = 'u8[8192]{0}', space=vmem, size = 0x2000, scoped, tag = 'input window, operand 4, single buffered']
    #allocation6 [shape = 's32[1]{0}', space=sflag, size = 0x4, scoped, tag = 'scoped memory for tpu_custom_call.1']
    #allocation7 [shape = 'u8[8192]{0}', space=vmem, size = 0x2000, scoped, tag = 'input window, operand 5, single buffered']
    #allocation8 [shape = 'u8[8192]{0}', space=vmem, size = 0x2000, scoped, tag = 'input window, operand 6, single buffered']
    #allocation9 [shape = 's32[1]{0}', space=sflag, size = 0x4, scoped, tag = 'scoped memory for tpu_custom_call.1']
    #allocation10 [shape = 'u8[8192]{0}', space=vmem, size = 0x2000, scoped, tag = 'input window, operand 7, single buffered']
    #allocation11 [shape = 'u8[512]{0}', space=vmem, size = 0x400, scoped, tag = 'input window, operand 8, single buffered']
    #allocation12 [shape = 's32[1]{0}', space=sflag, size = 0x4, scoped, tag = 'scoped memory for tpu_custom_call.1']
    #allocation13 [shape = 'u8[512]{0}', space=vmem, size = 0x400, scoped, tag = 'input window, operand 9, single buffered']
    #allocation14 [shape = 'u8[512]{0}', space=vmem, size = 0x400, scoped, tag = 'input window, operand 10, single buffered']
    #allocation15 [shape = 's32[1]{0}', space=sflag, size = 0x4, scoped, tag = 'scoped memory for tpu_custom_call.1']
    #allocation16 [shape = 'u8[512]{0}', space=vmem, size = 0x400, scoped, tag = 'input window, operand 11, single buffered']
    #allocation17 [shape = 'u8[8192]{0}', space=vmem, size = 0x2000, scoped, tag = 'input window, operand 14, single buffered']
    #allocation18 [shape = 's32[1]{0}', space=sflag, size = 0x4, scoped, tag = 'scoped memory for tpu_custom_call.1']
    #allocation19 [shape = 'u8[8192]{0}', space=vmem, size = 0x2000, scoped, tag = 'input window, operand 15, single buffered']
    #allocation20 [shape = 'u8[512]{0}', space=vmem, size = 0x400, scoped, tag = 'input window, operand 16, single buffered']
    #allocation21 [shape = 's32[1]{0}', space=sflag, size = 0x4, scoped, tag = 'scoped memory for tpu_custom_call.1']
    #allocation22 [shape = 'u8[512]{0}', space=vmem, size = 0x400, scoped, tag = 'input window, operand 17, single buffered']
    #allocation23 [shape = 'u8[8192]{0}', space=vmem, size = 0x2000, scoped, tag = 'output window, operand 0']
    #allocation24 [shape = 'u8[16384]{0}', space=vmem, size = 0x4000, scoped, tag = 'output window, operand 1']
    #allocation25 [shape = 's32[2]{0}', space=sflag, size = 0x8, scoped, tag = 'scoped memory for tpu_custom_call.1']
    #allocation26 [shape = 'u8[16384]{0}', space=vmem, size = 0x4000, scoped, tag = 'output window, operand 2']
    %71 = vsyncpa [#allocation3], 0
    %s72 = scalar_lea.sflag [#allocation3], 1
    %73 = vsyncpa %s72, 0
    %74 = vsyncpa [#allocation6], 0
    %75 = vsyncpa [#allocation9], 0
    %76 = vsyncpa [#allocation12], 0
    %77 = vsyncpa [#allocation15], 0
    %78 = vsyncpa [#allocation18], 0
    %79 = vsyncpa [#allocation21], 0
    %80 = vsyncpa [#allocation4], 0
    %s81 = scalar_lea.sflag [#allocation4], 1
    %82 = vsyncpa %s81, 0
    %83 = vsyncpa [#allocation25], 0
    %s84 = scalar_lea.sflag [#allocation25], 1
    %85 = vsyncpa %s84, 0
    loop: start=0, step=1, limit=4
    $region2: #{tpu_custom_call.1} parent=1 // loop_pre_header
      _
    $region3: #{tpu_custom_call.1} parent=1 // loop_header
      %s87 = sphi 0, %s91
      %p88 = scmp.ge.s32.totalorder %s87, 4
      %s97 = sphi 0, %s99
      %s100 = sphi 0, %s97
      %s101 = sphi 0, %s100
      %s117 = sphi 0, %s101
      %s123 = sphi 0, %s125
      %s126 = sphi 0, %s123
      %s127 = sphi 0, %s126
      %s143 = sphi 0, %s127
      %s149 = sphi 0, %s151
      %s152 = sphi 0, %s149
      %s153 = sphi 0, %s152
      %s169 = sphi 0, %s153
      %s175 = sphi 0, %s177
      %s178 = sphi 0, %s175
      %s179 = sphi 0, %s178
      %s195 = sphi 0, %s179
      %s199 = sphi 0, %s199
      %s201 = sphi 0, %s199
      %s202 = sphi 0, %s201
      %s216 = sphi 0, %s202
      %s220 = sphi 0, %s220
      %s222 = sphi 0, %s220
      %s223 = sphi 0, %s222
      %s237 = sphi 0, %s223
      %s241 = sphi 0, %s241
      %s243 = sphi 0, %s241
      %s244 = sphi 0, %s243
      %s258 = sphi 0, %s244
      %s262 = sphi 0, %s262
      %s264 = sphi 0, %s262
      %s265 = sphi 0, %s264
      %s279 = sphi 0, %s265
      %s283 = sphi 0, %s283
      %s285 = sphi 0, %s283
      %s286 = sphi 0, %s285
      %s300 = sphi 0, %s286
      %s304 = sphi 0, %s304
      %s306 = sphi 0, %s304
      %s307 = sphi 0, %s306
      %s321 = sphi 0, %s307
      %s325 = sphi 0, %s325
      %s327 = sphi 0, %s325
      %s328 = sphi 0, %s327
      %s342 = sphi 0, %s328
      %s346 = sphi 0, %s346
      %s348 = sphi 0, %s346
      %s349 = sphi 0, %s348
      %s363 = sphi 0, %s349
      %s367 = sphi 0, %s367
      %s369 = sphi 0, %s367
      %s370 = sphi 0, %s369
      %s384 = sphi 0, %s370
      %s388 = sphi 0, %s388
      %s390 = sphi 0, %s388
      %s391 = sphi 0, %s390
      %s405 = sphi 0, %s391
      %s409 = sphi 0, %s409
      %s411 = sphi 0, %s409
      %s412 = sphi 0, %s411
      %s426 = sphi 0, %s412
      %s430 = sphi 0, %s430
      %s432 = sphi 0, %s430
      %s433 = sphi 0, %s432
      %s447 = sphi 0, %s433
      %s451 = sphi 0, %s451
      %s453 = sphi 0, %s451
      %s454 = sphi 0, %s453
      %s468 = sphi 0, %s454
      %s472 = sphi 0, %s472
      %s474 = sphi 0, %s472
      %s475 = sphi 0, %s474
      %s489 = sphi 0, %s475
      %s493 = sphi 0, %s493
      %s495 = sphi 0, %s493
      %s496 = sphi 0, %s495
      %s510 = sphi 0, %s496
      %s514 = sphi 0, %s514
      %s516 = sphi 0, %s514
      %s517 = sphi 0, %s516
      %s531 = sphi 0, %s517
      %s535 = sphi 0, %s535
      %s537 = sphi 0, %s535
      %s538 = sphi 0, %s537
      %s552 = sphi 0, %s538
      %s556 = sphi 0, %s556
      %s558 = sphi 0, %s556
      %s559 = sphi 0, %s558
      %s573 = sphi 0, %s559
      %s577 = sphi 0, %s577
      %s579 = sphi 0, %s577
      %s580 = sphi 0, %s579
      %s594 = sphi 0, %s580
      %s598 = sphi 0, %s598
      %s600 = sphi 0, %s598
      %s601 = sphi 0, %s600
      %s615 = sphi 0, %s601
      %s619 = sphi 0, %s619
      %s621 = sphi 0, %s619
      %s622 = sphi 0, %s621
      %s636 = sphi 0, %s622
      %s640 = sphi 0, %s640
      %s642 = sphi 0, %s640
      %s643 = sphi 0, %s642
      %s657 = sphi 0, %s643
      %s661 = sphi 0, %s661
      %s663 = sphi 0, %s661
      %s664 = sphi 0, %s663
      %s678 = sphi 0, %s664
      %s682 = sphi 0, %s682
      %s684 = sphi 0, %s682
      %s685 = sphi 0, %s684
      %s699 = sphi 0, %s685
      %s703 = sphi 0, %s703
      %s705 = sphi 0, %s703
      %s706 = sphi 0, %s705
      %s720 = sphi 0, %s706
      %s724 = sphi 0, %s724
      %s726 = sphi 0, %s724
      %s727 = sphi 0, %s726
      %s741 = sphi 0, %s727
      %s747 = sphi 0, %s749
      %s750 = sphi 0, %s747
      %s751 = sphi 0, %s750
      %s767 = sphi 0, %s751
      %s773 = sphi 0, %s775
      %s776 = sphi 0, %s773
      %s777 = sphi 0, %s776
      %s793 = sphi 0, %s777
      %s799 = sphi 0, %s801
      %s802 = sphi 0, %s799
      %s803 = sphi 0, %s802
      %s819 = sphi 0, %s803
    $region4: #{tpu_custom_call.1} parent=1 // loop_header_branch
      %90 = sbr.rel (%p88) target = $region8
    $region5: #{tpu_custom_call.1} parent=1 // loop_body
      %s92 = ssub.s32 %s87, 1
      %s93 = ssub.s32 %s87, 2
      %s94 = sadd.s32 %s87, 1
      %s95 = ssub.s32 %s87, %s94
      %p96 = scmp.eq.s32.totalorder %s95, 0
      %s98 = sadd.s32 %s97, 1
      %s99 = scalar_select %p96, %s97, %s98
      %p102 = pneg %p96
      %p103 = scmp.eq.s32.totalorder %s87, 1
      %p104 = por %p102, %p103
      %p105 = scmp.ne.s32.totalorder %s97, %s100
      %p106 = scmp.eq.s32.totalorder %s87, 0
      %p107 = por %p105, %p106
      %p108 = scmp.ne.s32.totalorder %s97, %s100
      %p109 = scmp.eq.s32.totalorder %s92, 1
      %p110 = por %p108, %p109
      %p111 = scmp.ne.s32.totalorder %s100, %s101
      %p112 = scmp.eq.s32.totalorder %s92, 0
      %p113 = por %p111, %p112
      %p114 = scmp.ne.s32.totalorder %s100, %s101
      %p115 = scmp.eq.s32.totalorder %s93, 1
      %p116 = por %p114, %p115
      %p118 = scmp.ne.s32.totalorder %s101, %s117
      %p119 = scmp.eq.s32.totalorder %s93, 0
      %p120 = por %p118, %p119
      %s121 = ssub.s32 %s87, %s94
      %p122 = scmp.eq.s32.totalorder %s121, 0
      %s124 = sadd.s32 %s123, 1
      %s125 = scalar_select %p122, %s123, %s124
      %p128 = pneg %p122
      %p129 = scmp.eq.s32.totalorder %s87, 1
      %p130 = por %p128, %p129
      %p131 = scmp.ne.s32.totalorder %s123, %s126
      %p132 = scmp.eq.s32.totalorder %s87, 0
      %p133 = por %p131, %p132
      %p134 = scmp.ne.s32.totalorder %s123, %s126
      %p135 = scmp.eq.s32.totalorder %s92, 1
      %p136 = por %p134, %p135
      %p137 = scmp.ne.s32.totalorder %s126, %s127
      %p138 = scmp.eq.s32.totalorder %s92, 0
      %p139 = por %p137, %p138
      %p140 = scmp.ne.s32.totalorder %s126, %s127
      %p141 = scmp.eq.s32.totalorder %s93, 1
      %p142 = por %p140, %p141
      %p144 = scmp.ne.s32.totalorder %s127, %s143
      %p145 = scmp.eq.s32.totalorder %s93, 0
      %p146 = por %p144, %p145
      %s147 = ssub.s32 %s87, %s94
      %p148 = scmp.eq.s32.totalorder %s147, 0
      %s150 = sadd.s32 %s149, 1
      %s151 = scalar_select %p148, %s149, %s150
      %p154 = pneg %p148
      %p155 = scmp.eq.s32.totalorder %s87, 1
      %p156 = por %p154, %p155
      %p157 = scmp.ne.s32.totalorder %s149, %s152
      %p158 = scmp.eq.s32.totalorder %s87, 0
      %p159 = por %p157, %p158
      %p160 = scmp.ne.s32.totalorder %s149, %s152
      %p161 = scmp.eq.s32.totalorder %s92, 1
      %p162 = por %p160, %p161
      %p163 = scmp.ne.s32.totalorder %s152, %s153
      %p164 = scmp.eq.s32.totalorder %s92, 0
      %p165 = por %p163, %p164
      %p166 = scmp.ne.s32.totalorder %s152, %s153
      %p167 = scmp.eq.s32.totalorder %s93, 1
      %p168 = por %p166, %p167
      %p170 = scmp.ne.s32.totalorder %s153, %s169
      %p171 = scmp.eq.s32.totalorder %s93, 0
      %p172 = por %p170, %p171
      %s173 = ssub.s32 %s87, %s94
      %p174 = scmp.eq.s32.totalorder %s173, 0
      %s176 = sadd.s32 %s175, 1
      %s177 = scalar_select %p174, %s175, %s176
      %p180 = pneg %p174
      %p181 = scmp.eq.s32.totalorder %s87, 1
      %p182 = por %p180, %p181
      %p183 = scmp.ne.s32.totalorder %s175, %s178
      %p184 = scmp.eq.s32.totalorder %s87, 0
      %p185 = por %p183, %p184
      %p186 = scmp.ne.s32.totalorder %s175, %s178
      %p187 = scmp.eq.s32.totalorder %s92, 1
      %p188 = por %p186, %p187
      %p189 = scmp.ne.s32.totalorder %s178, %s179
      %p190 = scmp.eq.s32.totalorder %s92, 0
      %p191 = por %p189, %p190
      %p192 = scmp.ne.s32.totalorder %s178, %s179
      %p193 = scmp.eq.s32.totalorder %s93, 1
      %p194 = por %p192, %p193
      %p196 = scmp.ne.s32.totalorder %s179, %s195
      %p197 = scmp.eq.s32.totalorder %s93, 0
      %p198 = por %p196, %p197
      %s200 = sadd.s32 %s199, 1
      %p203 = scmp.eq.s32.totalorder %s87, 1
      %p204 = scmp.ne.s32.totalorder %s199, %s201
      %p205 = scmp.eq.s32.totalorder %s87, 0
      %p206 = por %p204, %p205
      %p207 = scmp.ne.s32.totalorder %s199, %s201
      %p208 = scmp.eq.s32.totalorder %s92, 1
      %p209 = por %p207, %p208
      %p210 = scmp.ne.s32.totalorder %s201, %s202
      %p211 = scmp.eq.s32.totalorder %s92, 0
      %p212 = por %p210, %p211
      %p213 = scmp.ne.s32.totalorder %s201, %s202
      %p214 = scmp.eq.s32.totalorder %s93, 1
      %p215 = por %p213, %p214
      %p217 = scmp.ne.s32.totalorder %s202, %s216
      %p218 = scmp.eq.s32.totalorder %s93, 0
      %p219 = por %p217, %p218
      %s221 = sadd.s32 %s220, 1
      %p224 = scmp.eq.s32.totalorder %s87, 1
      %p225 = scmp.ne.s32.totalorder %s220, %s222
      %p226 = scmp.eq.s32.totalorder %s87, 0
      %p227 = por %p225, %p226
      %p228 = scmp.ne.s32.totalorder %s220, %s222
      %p229 = scmp.eq.s32.totalorder %s92, 1
      %p230 = por %p228, %p229
      %p231 = scmp.ne.s32.totalorder %s222, %s223
      %p232 = scmp.eq.s32.totalorder %s92, 0
      %p233 = por %p231, %p232
      %p234 = scmp.ne.s32.totalorder %s222, %s223
      %p235 = scmp.eq.s32.totalorder %s93, 1
      %p236 = por %p234, %p235
      %p238 = scmp.ne.s32.totalorder %s223, %s237
      %p239 = scmp.eq.s32.totalorder %s93, 0
      %p240 = por %p238, %p239
      %s242 = sadd.s32 %s241, 1
      %p245 = scmp.eq.s32.totalorder %s87, 1
      %p246 = scmp.ne.s32.totalorder %s241, %s243
      %p247 = scmp.eq.s32.totalorder %s87, 0
      %p248 = por %p246, %p247
      %p249 = scmp.ne.s32.totalorder %s241, %s243
      %p250 = scmp.eq.s32.totalorder %s92, 1
      %p251 = por %p249, %p250
      %p252 = scmp.ne.s32.totalorder %s243, %s244
      %p253 = scmp.eq.s32.totalorder %s92, 0
      %p254 = por %p252, %p253
      %p255 = scmp.ne.s32.totalorder %s243, %s244
      %p256 = scmp.eq.s32.totalorder %s93, 1
      %p257 = por %p255, %p256
      %p259 = scmp.ne.s32.totalorder %s244, %s258
      %p260 = scmp.eq.s32.totalorder %s93, 0
      %p261 = por %p259, %p260
      %s263 = sadd.s32 %s262, 1
      %p266 = scmp.eq.s32.totalorder %s87, 1
      %p267 = scmp.ne.s32.totalorder %s262, %s264
      %p268 = scmp.eq.s32.totalorder %s87, 0
      %p269 = por %p267, %p268
      %p270 = scmp.ne.s32.totalorder %s262, %s264
      %p271 = scmp.eq.s32.totalorder %s92, 1
      %p272 = por %p270, %p271
      %p273 = scmp.ne.s32.totalorder %s264, %s265
      %p274 = scmp.eq.s32.totalorder %s92, 0
      %p275 = por %p273, %p274
      %p276 = scmp.ne.s32.totalorder %s264, %s265
      %p277 = scmp.eq.s32.totalorder %s93, 1
      %p278 = por %p276, %p277
      %p280 = scmp.ne.s32.totalorder %s265, %s279
      %p281 = scmp.eq.s32.totalorder %s93, 0
      %p282 = por %p280, %p281
      %s284 = sadd.s32 %s283, 1
      %p287 = scmp.eq.s32.totalorder %s87, 1
      %p288 = scmp.ne.s32.totalorder %s283, %s285
      %p289 = scmp.eq.s32.totalorder %s87, 0
      %p290 = por %p288, %p289
      %p291 = scmp.ne.s32.totalorder %s283, %s285
      %p292 = scmp.eq.s32.totalorder %s92, 1
      %p293 = por %p291, %p292
      %p294 = scmp.ne.s32.totalorder %s285, %s286
      %p295 = scmp.eq.s32.totalorder %s92, 0
      %p296 = por %p294, %p295
      %p297 = scmp.ne.s32.totalorder %s285, %s286
      %p298 = scmp.eq.s32.totalorder %s93, 1
      %p299 = por %p297, %p298
      %p301 = scmp.ne.s32.totalorder %s286, %s300
      %p302 = scmp.eq.s32.totalorder %s93, 0
      %p303 = por %p301, %p302
      %s305 = sadd.s32 %s304, 1
      %p308 = scmp.eq.s32.totalorder %s87, 1
      %p309 = scmp.ne.s32.totalorder %s304, %s306
      %p310 = scmp.eq.s32.totalorder %s87, 0
      %p311 = por %p309, %p310
      %p312 = scmp.ne.s32.totalorder %s304, %s306
      %p313 = scmp.eq.s32.totalorder %s92, 1
      %p314 = por %p312, %p313
      %p315 = scmp.ne.s32.totalorder %s306, %s307
      %p316 = scmp.eq.s32.totalorder %s92, 0
      %p317 = por %p315, %p316
      %p318 = scmp.ne.s32.totalorder %s306, %s307
      %p319 = scmp.eq.s32.totalorder %s93, 1
      %p320 = por %p318, %p319
      %p322 = scmp.ne.s32.totalorder %s307, %s321
      %p323 = scmp.eq.s32.totalorder %s93, 0
      %p324 = por %p322, %p323
      %s326 = sadd.s32 %s325, 1
      %p329 = scmp.eq.s32.totalorder %s87, 1
      %p330 = scmp.ne.s32.totalorder %s325, %s327
      %p331 = scmp.eq.s32.totalorder %s87, 0
      %p332 = por %p330, %p331
      %p333 = scmp.ne.s32.totalorder %s325, %s327
      %p334 = scmp.eq.s32.totalorder %s92, 1
      %p335 = por %p333, %p334
      %p336 = scmp.ne.s32.totalorder %s327, %s328
      %p337 = scmp.eq.s32.totalorder %s92, 0
      %p338 = por %p336, %p337
      %p339 = scmp.ne.s32.totalorder %s327, %s328
      %p340 = scmp.eq.s32.totalorder %s93, 1
      %p341 = por %p339, %p340
      %p343 = scmp.ne.s32.totalorder %s328, %s342
      %p344 = scmp.eq.s32.totalorder %s93, 0
      %p345 = por %p343, %p344
      %s347 = sadd.s32 %s346, 1
      %p350 = scmp.eq.s32.totalorder %s87, 1
      %p351 = scmp.ne.s32.totalorder %s346, %s348
      %p352 = scmp.eq.s32.totalorder %s87, 0
      %p353 = por %p351, %p352
      %p354 = scmp.ne.s32.totalorder %s346, %s348
      %p355 = scmp.eq.s32.totalorder %s92, 1
      %p356 = por %p354, %p355
      %p357 = scmp.ne.s32.totalorder %s348, %s349
      %p358 = scmp.eq.s32.totalorder %s92, 0
      %p359 = por %p357, %p358
      %p360 = scmp.ne.s32.totalorder %s348, %s349
      %p361 = scmp.eq.s32.totalorder %s93, 1
      %p362 = por %p360, %p361
      %p364 = scmp.ne.s32.totalorder %s349, %s363
      %p365 = scmp.eq.s32.totalorder %s93, 0
      %p366 = por %p364, %p365
      %s368 = sadd.s32 %s367, 1
      %p371 = scmp.eq.s32.totalorder %s87, 1
      %p372 = scmp.ne.s32.totalorder %s367, %s369
      %p373 = scmp.eq.s32.totalorder %s87, 0
      %p374 = por %p372, %p373
      %p375 = scmp.ne.s32.totalorder %s367, %s369
      %p376 = scmp.eq.s32.totalorder %s92, 1
      %p377 = por %p375, %p376
      %p378 = scmp.ne.s32.totalorder %s369, %s370
      %p379 = scmp.eq.s32.totalorder %s92, 0
      %p380 = por %p378, %p379
      %p381 = scmp.ne.s32.totalorder %s369, %s370
      %p382 = scmp.eq.s32.totalorder %s93, 1
      %p383 = por %p381, %p382
      %p385 = scmp.ne.s32.totalorder %s370, %s384
      %p386 = scmp.eq.s32.totalorder %s93, 0
      %p387 = por %p385, %p386
      %s389 = sadd.s32 %s388, 1
      %p392 = scmp.eq.s32.totalorder %s87, 1
      %p393 = scmp.ne.s32.totalorder %s388, %s390
      %p394 = scmp.eq.s32.totalorder %s87, 0
      %p395 = por %p393, %p394
      %p396 = scmp.ne.s32.totalorder %s388, %s390
      %p397 = scmp.eq.s32.totalorder %s92, 1
      %p398 = por %p396, %p397
      %p399 = scmp.ne.s32.totalorder %s390, %s391
      %p400 = scmp.eq.s32.totalorder %s92, 0
      %p401 = por %p399, %p400
      %p402 = scmp.ne.s32.totalorder %s390, %s391
      %p403 = scmp.eq.s32.totalorder %s93, 1
      %p404 = por %p402, %p403
      %p406 = scmp.ne.s32.totalorder %s391, %s405
      %p407 = scmp.eq.s32.totalorder %s93, 0
      %p408 = por %p406, %p407
      %s410 = sadd.s32 %s409, 1
      %p413 = scmp.eq.s32.totalorder %s87, 1
      %p414 = scmp.ne.s32.totalorder %s409, %s411
      %p415 = scmp.eq.s32.totalorder %s87, 0
      %p416 = por %p414, %p415
      %p417 = scmp.ne.s32.totalorder %s409, %s411
      %p418 = scmp.eq.s32.totalorder %s92, 1
      %p419 = por %p417, %p418
      %p420 = scmp.ne.s32.totalorder %s411, %s412
      %p421 = scmp.eq.s32.totalorder %s92, 0
      %p422 = por %p420, %p421
      %p423 = scmp.ne.s32.totalorder %s411, %s412
      %p424 = scmp.eq.s32.totalorder %s93, 1
      %p425 = por %p423, %p424
      %p427 = scmp.ne.s32.totalorder %s412, %s426
      %p428 = scmp.eq.s32.totalorder %s93, 0
      %p429 = por %p427, %p428
      %s431 = sadd.s32 %s430, 1
      %p434 = scmp.eq.s32.totalorder %s87, 1
      %p435 = scmp.ne.s32.totalorder %s430, %s432
      %p436 = scmp.eq.s32.totalorder %s87, 0
      %p437 = por %p435, %p436
      %p438 = scmp.ne.s32.totalorder %s430, %s432
      %p439 = scmp.eq.s32.totalorder %s92, 1
      %p440 = por %p438, %p439
      %p441 = scmp.ne.s32.totalorder %s432, %s433
      %p442 = scmp.eq.s32.totalorder %s92, 0
      %p443 = por %p441, %p442
      %p444 = scmp.ne.s32.totalorder %s432, %s433
      %p445 = scmp.eq.s32.totalorder %s93, 1
      %p446 = por %p444, %p445
      %p448 = scmp.ne.s32.totalorder %s433, %s447
      %p449 = scmp.eq.s32.totalorder %s93, 0
      %p450 = por %p448, %p449
      %s452 = sadd.s32 %s451, 1
      %p455 = scmp.eq.s32.totalorder %s87, 1
      %p456 = scmp.ne.s32.totalorder %s451, %s453
      %p457 = scmp.eq.s32.totalorder %s87, 0
      %p458 = por %p456, %p457
      %p459 = scmp.ne.s32.totalorder %s451, %s453
      %p460 = scmp.eq.s32.totalorder %s92, 1
      %p461 = por %p459, %p460
      %p462 = scmp.ne.s32.totalorder %s453, %s454
      %p463 = scmp.eq.s32.totalorder %s92, 0
      %p464 = por %p462, %p463
      %p465 = scmp.ne.s32.totalorder %s453, %s454
      %p466 = scmp.eq.s32.totalorder %s93, 1
      %p467 = por %p465, %p466
      %p469 = scmp.ne.s32.totalorder %s454, %s468
      %p470 = scmp.eq.s32.totalorder %s93, 0
      %p471 = por %p469, %p470
      %s473 = sadd.s32 %s472, 1
      %p476 = scmp.eq.s32.totalorder %s87, 1
      %p477 = scmp.ne.s32.totalorder %s472, %s474
      %p478 = scmp.eq.s32.totalorder %s87, 0
      %p479 = por %p477, %p478
      %p480 = scmp.ne.s32.totalorder %s472, %s474
      %p481 = scmp.eq.s32.totalorder %s92, 1
      %p482 = por %p480, %p481
      %p483 = scmp.ne.s32.totalorder %s474, %s475
      %p484 = scmp.eq.s32.totalorder %s92, 0
      %p485 = por %p483, %p484
      %p486 = scmp.ne.s32.totalorder %s474, %s475
      %p487 = scmp.eq.s32.totalorder %s93, 1
      %p488 = por %p486, %p487
      %p490 = scmp.ne.s32.totalorder %s475, %s489
      %p491 = scmp.eq.s32.totalorder %s93, 0
      %p492 = por %p490, %p491
      %s494 = sadd.s32 %s493, 1
      %p497 = scmp.eq.s32.totalorder %s87, 1
      %p498 = scmp.ne.s32.totalorder %s493, %s495
      %p499 = scmp.eq.s32.totalorder %s87, 0
      %p500 = por %p498, %p499
      %p501 = scmp.ne.s32.totalorder %s493, %s495
      %p502 = scmp.eq.s32.totalorder %s92, 1
      %p503 = por %p501, %p502
      %p504 = scmp.ne.s32.totalorder %s495, %s496
      %p505 = scmp.eq.s32.totalorder %s92, 0
      %p506 = por %p504, %p505
      %p507 = scmp.ne.s32.totalorder %s495, %s496
      %p508 = scmp.eq.s32.totalorder %s93, 1
      %p509 = por %p507, %p508
      %p511 = scmp.ne.s32.totalorder %s496, %s510
      %p512 = scmp.eq.s32.totalorder %s93, 0
      %p513 = por %p511, %p512
      %s515 = sadd.s32 %s514, 1
      %p518 = scmp.eq.s32.totalorder %s87, 1
      %p519 = scmp.ne.s32.totalorder %s514, %s516
      %p520 = scmp.eq.s32.totalorder %s87, 0
      %p521 = por %p519, %p520
      %p522 = scmp.ne.s32.totalorder %s514, %s516
      %p523 = scmp.eq.s32.totalorder %s92, 1
      %p524 = por %p522, %p523
      %p525 = scmp.ne.s32.totalorder %s516, %s517
      %p526 = scmp.eq.s32.totalorder %s92, 0
      %p527 = por %p525, %p526
      %p528 = scmp.ne.s32.totalorder %s516, %s517
      %p529 = scmp.eq.s32.totalorder %s93, 1
      %p530 = por %p528, %p529
      %p532 = scmp.ne.s32.totalorder %s517, %s531
      %p533 = scmp.eq.s32.totalorder %s93, 0
      %p534 = por %p532, %p533
      %s536 = sadd.s32 %s535, 1
      %p539 = scmp.eq.s32.totalorder %s87, 1
      %p540 = scmp.ne.s32.totalorder %s535, %s537
      %p541 = scmp.eq.s32.totalorder %s87, 0
      %p542 = por %p540, %p541
      %p543 = scmp.ne.s32.totalorder %s535, %s537
      %p544 = scmp.eq.s32.totalorder %s92, 1
      %p545 = por %p543, %p544
      %p546 = scmp.ne.s32.totalorder %s537, %s538
      %p547 = scmp.eq.s32.totalorder %s92, 0
      %p548 = por %p546, %p547
      %p549 = scmp.ne.s32.totalorder %s537, %s538
      %p550 = scmp.eq.s32.totalorder %s93, 1
      %p551 = por %p549, %p550
      %p553 = scmp.ne.s32.totalorder %s538, %s552
      %p554 = scmp.eq.s32.totalorder %s93, 0
      %p555 = por %p553, %p554
      %s557 = sadd.s32 %s556, 1
      %p560 = scmp.eq.s32.totalorder %s87, 1
      %p561 = scmp.ne.s32.totalorder %s556, %s558
      %p562 = scmp.eq.s32.totalorder %s87, 0
      %p563 = por %p561, %p562
      %p564 = scmp.ne.s32.totalorder %s556, %s558
      %p565 = scmp.eq.s32.totalorder %s92, 1
      %p566 = por %p564, %p565
      %p567 = scmp.ne.s32.totalorder %s558, %s559
      %p568 = scmp.eq.s32.totalorder %s92, 0
      %p569 = por %p567, %p568
      %p570 = scmp.ne.s32.totalorder %s558, %s559
      %p571 = scmp.eq.s32.totalorder %s93, 1
      %p572 = por %p570, %p571
      %p574 = scmp.ne.s32.totalorder %s559, %s573
      %p575 = scmp.eq.s32.totalorder %s93, 0
      %p576 = por %p574, %p575
      %s578 = sadd.s32 %s577, 1
      %p581 = scmp.eq.s32.totalorder %s87, 1
      %p582 = scmp.ne.s32.totalorder %s577, %s579
      %p583 = scmp.eq.s32.totalorder %s87, 0
      %p584 = por %p582, %p583
      %p585 = scmp.ne.s32.totalorder %s577, %s579
      %p586 = scmp.eq.s32.totalorder %s92, 1
      %p587 = por %p585, %p586
      %p588 = scmp.ne.s32.totalorder %s579, %s580
      %p589 = scmp.eq.s32.totalorder %s92, 0
      %p590 = por %p588, %p589
      %p591 = scmp.ne.s32.totalorder %s579, %s580
      %p592 = scmp.eq.s32.totalorder %s93, 1
      %p593 = por %p591, %p592
      %p595 = scmp.ne.s32.totalorder %s580, %s594
      %p596 = scmp.eq.s32.totalorder %s93, 0
      %p597 = por %p595, %p596
      %s599 = sadd.s32 %s598, 1
      %p602 = scmp.eq.s32.totalorder %s87, 1
      %p603 = scmp.ne.s32.totalorder %s598, %s600
      %p604 = scmp.eq.s32.totalorder %s87, 0
      %p605 = por %p603, %p604
      %p606 = scmp.ne.s32.totalorder %s598, %s600
      %p607 = scmp.eq.s32.totalorder %s92, 1
      %p608 = por %p606, %p607
      %p609 = scmp.ne.s32.totalorder %s600, %s601
      %p610 = scmp.eq.s32.totalorder %s92, 0
      %p611 = por %p609, %p610
      %p612 = scmp.ne.s32.totalorder %s600, %s601
      %p613 = scmp.eq.s32.totalorder %s93, 1
      %p614 = por %p612, %p613
      %p616 = scmp.ne.s32.totalorder %s601, %s615
      %p617 = scmp.eq.s32.totalorder %s93, 0
      %p618 = por %p616, %p617
      %s620 = sadd.s32 %s619, 1
      %p623 = scmp.eq.s32.totalorder %s87, 1
      %p624 = scmp.ne.s32.totalorder %s619, %s621
      %p625 = scmp.eq.s32.totalorder %s87, 0
      %p626 = por %p624, %p625
      %p627 = scmp.ne.s32.totalorder %s619, %s621
      %p628 = scmp.eq.s32.totalorder %s92, 1
      %p629 = por %p627, %p628
      %p630 = scmp.ne.s32.totalorder %s621, %s622
      %p631 = scmp.eq.s32.totalorder %s92, 0
      %p632 = por %p630, %p631
      %p633 = scmp.ne.s32.totalorder %s621, %s622
      %p634 = scmp.eq.s32.totalorder %s93, 1
      %p635 = por %p633, %p634
      %p637 = scmp.ne.s32.totalorder %s622, %s636
      %p638 = scmp.eq.s32.totalorder %s93, 0
      %p639 = por %p637, %p638
      %s641 = sadd.s32 %s640, 1
      %p644 = scmp.eq.s32.totalorder %s87, 1
      %p645 = scmp.ne.s32.totalorder %s640, %s642
      %p646 = scmp.eq.s32.totalorder %s87, 0
      %p647 = por %p645, %p646
      %p648 = scmp.ne.s32.totalorder %s640, %s642
      %p649 = scmp.eq.s32.totalorder %s92, 1
      %p650 = por %p648, %p649
      %p651 = scmp.ne.s32.totalorder %s642, %s643
      %p652 = scmp.eq.s32.totalorder %s92, 0
      %p653 = por %p651, %p652
      %p654 = scmp.ne.s32.totalorder %s642, %s643
      %p655 = scmp.eq.s32.totalorder %s93, 1
      %p656 = por %p654, %p655
      %p658 = scmp.ne.s32.totalorder %s643, %s657
      %p659 = scmp.eq.s32.totalorder %s93, 0
      %p660 = por %p658, %p659
      %s662 = sadd.s32 %s661, 1
      %p665 = scmp.eq.s32.totalorder %s87, 1
      %p666 = scmp.ne.s32.totalorder %s661, %s663
      %p667 = scmp.eq.s32.totalorder %s87, 0
      %p668 = por %p666, %p667
      %p669 = scmp.ne.s32.totalorder %s661, %s663
      %p670 = scmp.eq.s32.totalorder %s92, 1
      %p671 = por %p669, %p670
      %p672 = scmp.ne.s32.totalorder %s663, %s664
      %p673 = scmp.eq.s32.totalorder %s92, 0
      %p674 = por %p672, %p673
      %p675 = scmp.ne.s32.totalorder %s663, %s664
      %p676 = scmp.eq.s32.totalorder %s93, 1
      %p677 = por %p675, %p676
      %p679 = scmp.ne.s32.totalorder %s664, %s678
      %p680 = scmp.eq.s32.totalorder %s93, 0
      %p681 = por %p679, %p680
      %s683 = sadd.s32 %s682, 1
      %p686 = scmp.eq.s32.totalorder %s87, 1
      %p687 = scmp.ne.s32.totalorder %s682, %s684
      %p688 = scmp.eq.s32.totalorder %s87, 0
      %p689 = por %p687, %p688
      %p690 = scmp.ne.s32.totalorder %s682, %s684
      %p691 = scmp.eq.s32.totalorder %s92, 1
      %p692 = por %p690, %p691
      %p693 = scmp.ne.s32.totalorder %s684, %s685
      %p694 = scmp.eq.s32.totalorder %s92, 0
      %p695 = por %p693, %p694
      %p696 = scmp.ne.s32.totalorder %s684, %s685
      %p697 = scmp.eq.s32.totalorder %s93, 1
      %p698 = por %p696, %p697
      %p700 = scmp.ne.s32.totalorder %s685, %s699
      %p701 = scmp.eq.s32.totalorder %s93, 0
      %p702 = por %p700, %p701
      %s704 = sadd.s32 %s703, 1
      %p707 = scmp.eq.s32.totalorder %s87, 1
      %p708 = scmp.ne.s32.totalorder %s703, %s705
      %p709 = scmp.eq.s32.totalorder %s87, 0
      %p710 = por %p708, %p709
      %p711 = scmp.ne.s32.totalorder %s703, %s705
      %p712 = scmp.eq.s32.totalorder %s92, 1
      %p713 = por %p711, %p712
      %p714 = scmp.ne.s32.totalorder %s705, %s706
      %p715 = scmp.eq.s32.totalorder %s92, 0
      %p716 = por %p714, %p715
      %p717 = scmp.ne.s32.totalorder %s705, %s706
      %p718 = scmp.eq.s32.totalorder %s93, 1
      %p719 = por %p717, %p718
      %p721 = scmp.ne.s32.totalorder %s706, %s720
      %p722 = scmp.eq.s32.totalorder %s93, 0
      %p723 = por %p721, %p722
      %s725 = sadd.s32 %s724, 1
      %p728 = scmp.eq.s32.totalorder %s87, 1
      %p729 = scmp.ne.s32.totalorder %s724, %s726
      %p730 = scmp.eq.s32.totalorder %s87, 0
      %p731 = por %p729, %p730
      %p732 = scmp.ne.s32.totalorder %s724, %s726
      %p733 = scmp.eq.s32.totalorder %s92, 1
      %p734 = por %p732, %p733
      %p735 = scmp.ne.s32.totalorder %s726, %s727
      %p736 = scmp.eq.s32.totalorder %s92, 0
      %p737 = por %p735, %p736
      %p738 = scmp.ne.s32.totalorder %s726, %s727
      %p739 = scmp.eq.s32.totalorder %s93, 1
      %p740 = por %p738, %p739
      %p742 = scmp.ne.s32.totalorder %s727, %s741
      %p743 = scmp.eq.s32.totalorder %s93, 0
      %p744 = por %p742, %p743
      %s745 = ssub.s32 %s87, %s94
      %p746 = scmp.eq.s32.totalorder %s745, 0
      %s748 = sadd.s32 %s747, 1
      %s749 = scalar_select %p746, %s747, %s748
      %p752 = pneg %p746
      %p753 = scmp.eq.s32.totalorder %s87, 1
      %p754 = por %p752, %p753
      %p755 = scmp.ne.s32.totalorder %s747, %s750
      %p756 = scmp.eq.s32.totalorder %s87, 0
      %p757 = por %p755, %p756
      %p758 = scmp.ne.s32.totalorder %s747, %s750
      %p759 = scmp.eq.s32.totalorder %s92, 1
      %p760 = por %p758, %p759
      %p761 = scmp.ne.s32.totalorder %s750, %s751
      %p762 = scmp.eq.s32.totalorder %s92, 0
      %p763 = por %p761, %p762
      %p764 = scmp.ne.s32.totalorder %s750, %s751
      %p765 = scmp.eq.s32.totalorder %s93, 1
      %p766 = por %p764, %p765
      %p768 = scmp.ne.s32.totalorder %s751, %s767
      %p769 = scmp.eq.s32.totalorder %s93, 0
      %p770 = por %p768, %p769
      %s771 = ssub.s32 %s87, %s94
      %p772 = scmp.eq.s32.totalorder %s771, 0
      %s774 = sadd.s32 %s773, 1
      %s775 = scalar_select %p772, %s773, %s774
      %p778 = pneg %p772
      %p779 = scmp.eq.s32.totalorder %s87, 1
      %p780 = por %p778, %p779
      %p781 = scmp.ne.s32.totalorder %s773, %s776
      %p782 = scmp.eq.s32.totalorder %s87, 0
      %p783 = por %p781, %p782
      %p784 = scmp.ne.s32.totalorder %s773, %s776
      %p785 = scmp.eq.s32.totalorder %s92, 1
      %p786 = por %p784, %p785
      %p787 = scmp.ne.s32.totalorder %s776, %s777
      %p788 = scmp.eq.s32.totalorder %s92, 0
      %p789 = por %p787, %p788
      %p790 = scmp.ne.s32.totalorder %s776, %s777
      %p791 = scmp.eq.s32.totalorder %s93, 1
      %p792 = por %p790, %p791
      %p794 = scmp.ne.s32.totalorder %s777, %s793
      %p795 = scmp.eq.s32.totalorder %s93, 0
      %p796 = por %p794, %p795
      %s797 = ssub.s32 %s87, %s94
      %p798 = scmp.eq.s32.totalorder %s797, 0
      %s800 = sadd.s32 %s799, 1
      %s801 = scalar_select %p798, %s799, %s800
      %p804 = pneg %p798
      %p805 = scmp.eq.s32.totalorder %s87, 1
      %p806 = por %p804, %p805
      %p807 = scmp.ne.s32.totalorder %s799, %s802
      %p808 = scmp.eq.s32.totalorder %s87, 0
      %p809 = por %p807, %p808
      %p810 = scmp.ne.s32.totalorder %s799, %s802
      %p811 = scmp.eq.s32.totalorder %s92, 1
      %p812 = por %p810, %p811
      %p813 = scmp.ne.s32.totalorder %s802, %s803
      %p814 = scmp.eq.s32.totalorder %s92, 0
      %p815 = por %p813, %p814
      %p816 = scmp.ne.s32.totalorder %s802, %s803
      %p817 = scmp.eq.s32.totalorder %s93, 1
      %p818 = por %p816, %p817
      %p820 = scmp.ne.s32.totalorder %s803, %s819
      %p821 = scmp.eq.s32.totalorder %s93, 0
      %p822 = por %p820, %p821
      %p823 = scmp.le.s32.totalorder 1, %s87
      %p824 = scmp.lt.s32.totalorder %s87, 3
      %p825 = pnand %p823, %p824
      %p826 = pneg %p825
      // Predicated region
      $region9: #{tpu_custom_call.1} parent=5 // pred_check
        _
      $region10: #{tpu_custom_call.1} parent=5 // pred_check_branch
        %828 = sbr.rel (%p825) target = $region12
      $region11: #{tpu_custom_call.1} parent=5 // pred_region
        %s829 = ssub.s32 %s87, 1
        // Predicated region
        $region13: #{tpu_custom_call.1} parent=11 // pred_check
          %p830 = pneg %p212
        $region14: #{tpu_custom_call.1} parent=11 // pred_check_branch
          %832 = sbr.rel (%p830) target = $region16
        $region15: #{tpu_custom_call.1} parent=11 // pred_region
          %s834 = ssub.s32 256, 256
          %835 = vsyncadd [#allocation6], %s834
          %s836 = sshll.u32 [#allocation5], 4
          %s837 = int_to_ptr.vmem [resolvable:$true] %s836
          %842 = dma.hbm_to_vmem [thread:$0]  %s9, 256, %s837, [#allocation6], 64, 64, 4
        $region16: #{tpu_custom_call.1} parent=11 // pred_fallthru
          _
        // Predicated region
        $region17: #{tpu_custom_call.1} parent=11 // pred_check
          %p843 = pneg %p233
        $region18: #{tpu_custom_call.1} parent=11 // pred_check_branch
          %845 = sbr.rel (%p843) target = $region20
        $region19: #{tpu_custom_call.1} parent=11 // pred_region
          %s847 = ssub.s32 256, 256
          %848 = vsyncadd [#allocation6], %s847
          %s849 = sshll.u32 [#allocation7], 4
          %s850 = int_to_ptr.vmem [resolvable:$true] %s849
          %855 = dma.hbm_to_vmem [thread:$0]  %s11, 256, %s850, [#allocation6], 64, 64, 4
        $region20: #{tpu_custom_call.1} parent=11 // pred_fallthru
          _
        // Predicated region
        $region21: #{tpu_custom_call.1} parent=11 // pred_check
          %p856 = pneg %p254
        $region22: #{tpu_custom_call.1} parent=11 // pred_check_branch
          %858 = sbr.rel (%p856) target = $region24
        $region23: #{tpu_custom_call.1} parent=11 // pred_region
          %s860 = ssub.s32 256, 256
          %861 = vsyncadd [#allocation9], %s860
          %s862 = sshll.u32 [#allocation8], 4
          %s863 = int_to_ptr.vmem [resolvable:$true] %s862
          %868 = dma.hbm_to_vmem [thread:$0]  %s13, 256, %s863, [#allocation9], 64, 64, 4
        $region24: #{tpu_custom_call.1} parent=11 // pred_fallthru
          _
        // Predicated region
        $region25: #{tpu_custom_call.1} parent=11 // pred_check
          %p869 = pneg %p275
        $region26: #{tpu_custom_call.1} parent=11 // pred_check_branch
          %871 = sbr.rel (%p869) target = $region28
        $region27: #{tpu_custom_call.1} parent=11 // pred_region
          %s873 = ssub.s32 256, 256
          %874 = vsyncadd [#allocation9], %s873
          %s875 = sshll.u32 [#allocation10], 4
          %s876 = int_to_ptr.vmem [resolvable:$true] %s875
          %881 = dma.hbm_to_vmem [thread:$0]  %s15, 256, %s876, [#allocation9], 64, 64, 4
        $region28: #{tpu_custom_call.1} parent=11 // pred_fallthru
          _
        // Predicated region
        $region29: #{tpu_custom_call.1} parent=11 // pred_check
          %p882 = pneg %p296
        $region30: #{tpu_custom_call.1} parent=11 // pred_check_branch
          %884 = sbr.rel (%p882) target = $region32
        $region31: #{tpu_custom_call.1} parent=11 // pred_region
          %s886 = ssub.s32 16, 16
          %887 = vsyncadd [#allocation12], %s886
          %s889 = sshll.u32 [#allocation11], 4
          %s890 = int_to_ptr.vmem [resolvable:$true] %s889
          %892 = dma.hbm_to_vmem [thread:$0]  %s17, 16, %s890, [#allocation12]
        $region32: #{tpu_custom_call.1} parent=11 // pred_fallthru
          _
        // Predicated region
        $region33: #{tpu_custom_call.1} parent=11 // pred_check
          %p893 = pneg %p317
        $region34: #{tpu_custom_call.1} parent=11 // pred_check_branch
          %895 = sbr.rel (%p893) target = $region36
        $region35: #{tpu_custom_call.1} parent=11 // pred_region
          %s897 = ssub.s32 16, 16
          %898 = vsyncadd [#allocation12], %s897
          %s900 = sshll.u32 [#allocation13], 4
          %s901 = int_to_ptr.vmem [resolvable:$true] %s900
          %903 = dma.hbm_to_vmem [thread:$0]  %s19, 16, %s901, [#allocation12]
        $region36: #{tpu_custom_call.1} parent=11 // pred_fallthru
          _
        // Predicated region
        $region37: #{tpu_custom_call.1} parent=11 // pred_check
          %p904 = pneg %p338
        $region38: #{tpu_custom_call.1} parent=11 // pred_check_branch
          %906 = sbr.rel (%p904) target = $region40
        $region39: #{tpu_custom_call.1} parent=11 // pred_region
          %s908 = ssub.s32 16, 16
          %909 = vsyncadd [#allocation15], %s908
          %s911 = sshll.u32 [#allocation14], 4
          %s912 = int_to_ptr.vmem [resolvable:$true] %s911
          %914 = dma.hbm_to_vmem [thread:$0]  %s21, 16, %s912, [#allocation15]
        $region40: #{tpu_custom_call.1} parent=11 // pred_fallthru
          _
        // Predicated region
        $region41: #{tpu_custom_call.1} parent=11 // pred_check
          %p915 = pneg %p359
        $region42: #{tpu_custom_call.1} parent=11 // pred_check_branch
          %917 = sbr.rel (%p915) target = $region44
        $region43: #{tpu_custom_call.1} parent=11 // pred_region
          %s919 = ssub.s32 16, 16
          %920 = vsyncadd [#allocation15], %s919
          %s922 = sshll.u32 [#allocation16], 4
          %s923 = int_to_ptr.vmem [resolvable:$true] %s922
          %925 = dma.hbm_to_vmem [thread:$0]  %s23, 16, %s923, [#allocation15]
        $region44: #{tpu_custom_call.1} parent=11 // pred_fallthru
          _
        // Predicated region
        $region45: #{tpu_custom_call.1} parent=11 // pred_check
          %p926 = pneg %p380
        $region46: #{tpu_custom_call.1} parent=11 // pred_check_branch
          %928 = sbr.rel (%p926) target = $region48
        $region47: #{tpu_custom_call.1} parent=11 // pred_region
          _
        $region48: #{tpu_custom_call.1} parent=11 // pred_fallthru
          _
        // Predicated region
        $region49: #{tpu_custom_call.1} parent=11 // pred_check
          %p929 = pneg %p401
        $region50: #{tpu_custom_call.1} parent=11 // pred_check_branch
          %931 = sbr.rel (%p929) target = $region52
        $region51: #{tpu_custom_call.1} parent=11 // pred_region
          _
        $region52: #{tpu_custom_call.1} parent=11 // pred_fallthru
          _
        // Predicated region
        $region53: #{tpu_custom_call.1} parent=11 // pred_check
          %p932 = pneg %p422
        $region54: #{tpu_custom_call.1} parent=11 // pred_check_branch
          %934 = sbr.rel (%p932) target = $region56
        $region55: #{tpu_custom_call.1} parent=11 // pred_region
          %s936 = ssub.s32 256, 256
          %937 = vsyncadd [#allocation18], %s936
          %s938 = sshll.u32 [#allocation17], 4
          %s939 = int_to_ptr.vmem [resolvable:$true] %s938
          %944 = dma.hbm_to_vmem [thread:$0]  %s29, 256, %s939, [#allocation18], 64, 64, 4
        $region56: #{tpu_custom_call.1} parent=11 // pred_fallthru
          _
        // Predicated region
        $region57: #{tpu_custom_call.1} parent=11 // pred_check
          %p945 = pneg %p443
        $region58: #{tpu_custom_call.1} parent=11 // pred_check_branch
          %947 = sbr.rel (%p945) target = $region60
        $region59: #{tpu_custom_call.1} parent=11 // pred_region
          %s949 = ssub.s32 256, 256
          %950 = vsyncadd [#allocation18], %s949
          %s951 = sshll.u32 [#allocation19], 4
          %s952 = int_to_ptr.vmem [resolvable:$true] %s951
          %957 = dma.hbm_to_vmem [thread:$0]  %s31, 256, %s952, [#allocation18], 64, 64, 4
        $region60: #{tpu_custom_call.1} parent=11 // pred_fallthru
          _
        // Predicated region
        $region61: #{tpu_custom_call.1} parent=11 // pred_check
          %p958 = pneg %p464
        $region62: #{tpu_custom_call.1} parent=11 // pred_check_branch
          %960 = sbr.rel (%p958) target = $region64
        $region63: #{tpu_custom_call.1} parent=11 // pred_region
          %s962 = ssub.s32 16, 16
          %963 = vsyncadd [#allocation21], %s962
          %s965 = sshll.u32 [#allocation20], 4
          %s966 = int_to_ptr.vmem [resolvable:$true] %s965
          %968 = dma.hbm_to_vmem [thread:$0]  %s33, 16, %s966, [#allocation21]
        $region64: #{tpu_custom_call.1} parent=11 // pred_fallthru
          _
        // Predicated region
        $region65: #{tpu_custom_call.1} parent=11 // pred_check
          %p969 = pneg %p485
        $region66: #{tpu_custom_call.1} parent=11 // pred_check_branch
          %971 = sbr.rel (%p969) target = $region68
        $region67: #{tpu_custom_call.1} parent=11 // pred_region
          %s973 = ssub.s32 16, 16
          %974 = vsyncadd [#allocation21], %s973
          %s976 = sshll.u32 [#allocation22], 4
          %s977 = int_to_ptr.vmem [resolvable:$true] %s976
          %979 = dma.hbm_to_vmem [thread:$0]  %s35, 16, %s977, [#allocation21]
        $region68: #{tpu_custom_call.1} parent=11 // pred_fallthru
          _
        // Predicated region
        $region69: #{tpu_custom_call.1} parent=11 // pred_check
          %p980 = pneg %p506
        $region70: #{tpu_custom_call.1} parent=11 // pred_check_branch
          %982 = sbr.rel (%p980) target = $region72
        $region71: #{tpu_custom_call.1} parent=11 // pred_region
          _
        $region72: #{tpu_custom_call.1} parent=11 // pred_fallthru
          _
        // Predicated region
        $region73: #{tpu_custom_call.1} parent=11 // pred_check
          %p983 = pneg %p527
        $region74: #{tpu_custom_call.1} parent=11 // pred_check_branch
          %985 = sbr.rel (%p983) target = $region76
        $region75: #{tpu_custom_call.1} parent=11 // pred_region
          _
        $region76: #{tpu_custom_call.1} parent=11 // pred_fallthru
          _
        // Predicated region
        $region77: #{tpu_custom_call.1} parent=11 // pred_check
          %p986 = pneg %p548
        $region78: #{tpu_custom_call.1} parent=11 // pred_check_branch
          %988 = sbr.rel (%p986) target = $region80
        $region79: #{tpu_custom_call.1} parent=11 // pred_region
          _
        $region80: #{tpu_custom_call.1} parent=11 // pred_fallthru
          _
        // Predicated region
        $region81: #{tpu_custom_call.1} parent=11 // pred_check
          %p989 = pneg %p569
        $region82: #{tpu_custom_call.1} parent=11 // pred_check_branch
          %991 = sbr.rel (%p989) target = $region84
        $region83: #{tpu_custom_call.1} parent=11 // pred_region
          _
        $region84: #{tpu_custom_call.1} parent=11 // pred_fallthru
          _
        // Predicated region
        $region85: #{tpu_custom_call.1} parent=11 // pred_check
          %p992 = pneg %p590
        $region86: #{tpu_custom_call.1} parent=11 // pred_check_branch
          %994 = sbr.rel (%p992) target = $region88
        $region87: #{tpu_custom_call.1} parent=11 // pred_region
          _
        $region88: #{tpu_custom_call.1} parent=11 // pred_fallthru
          _
        // Predicated region
        $region89: #{tpu_custom_call.1} parent=11 // pred_check
          %p995 = pneg %p611
        $region90: #{tpu_custom_call.1} parent=11 // pred_check_branch
          %997 = sbr.rel (%p995) target = $region92
        $region91: #{tpu_custom_call.1} parent=11 // pred_region
          _
        $region92: #{tpu_custom_call.1} parent=11 // pred_fallthru
          _
        // Predicated region
        $region93: #{tpu_custom_call.1} parent=11 // pred_check
          %p998 = pneg %p632
        $region94: #{tpu_custom_call.1} parent=11 // pred_check_branch
          %1000 = sbr.rel (%p998) target = $region96
        $region95: #{tpu_custom_call.1} parent=11 // pred_region
          _
        $region96: #{tpu_custom_call.1} parent=11 // pred_fallthru
          _
        // Predicated region
        $region97: #{tpu_custom_call.1} parent=11 // pred_check
          %p1001 = pneg %p653
        $region98: #{tpu_custom_call.1} parent=11 // pred_check_branch
          %1003 = sbr.rel (%p1001) target = $region100
        $region99: #{tpu_custom_call.1} parent=11 // pred_region
          _
        $region100: #{tpu_custom_call.1} parent=11 // pred_fallthru
          _
        // Predicated region
        $region101: #{tpu_custom_call.1} parent=11 // pred_check
          %p1004 = pneg %p674
        $region102: #{tpu_custom_call.1} parent=11 // pred_check_branch
          %1006 = sbr.rel (%p1004) target = $region104
        $region103: #{tpu_custom_call.1} parent=11 // pred_region
          _
        $region104: #{tpu_custom_call.1} parent=11 // pred_fallthru
          _
        // Predicated region
        $region105: #{tpu_custom_call.1} parent=11 // pred_check
          %p1007 = pneg %p695
        $region106: #{tpu_custom_call.1} parent=11 // pred_check_branch
          %1009 = sbr.rel (%p1007) target = $region108
        $region107: #{tpu_custom_call.1} parent=11 // pred_region
          _
        $region108: #{tpu_custom_call.1} parent=11 // pred_fallthru
          _
        // Predicated region
        $region109: #{tpu_custom_call.1} parent=11 // pred_check
          %p1010 = pneg %p716
        $region110: #{tpu_custom_call.1} parent=11 // pred_check_branch
          %1012 = sbr.rel (%p1010) target = $region112
        $region111: #{tpu_custom_call.1} parent=11 // pred_region
          _
        $region112: #{tpu_custom_call.1} parent=11 // pred_fallthru
          _
        // Predicated region
        $region113: #{tpu_custom_call.1} parent=11 // pred_check
          %p1013 = pneg %p737
        $region114: #{tpu_custom_call.1} parent=11 // pred_check_branch
          %1015 = sbr.rel (%p1013) target = $region116
        $region115: #{tpu_custom_call.1} parent=11 // pred_region
          _
        $region116: #{tpu_custom_call.1} parent=11 // pred_fallthru
          _
      $region12: #{tpu_custom_call.1} parent=5 // pred_fallthru
        _
      %p1016 = scmp.lt.s32.totalorder %s87, 2
      // Predicated region
      $region117: #{tpu_custom_call.1} parent=5 // pred_check
        %p1017 = pneg %p1016
      $region118: #{tpu_custom_call.1} parent=5 // pred_check_branch
        %1019 = sbr.rel (%p1017) target = $region120
      $region119: #{tpu_custom_call.1} parent=5 // pred_region
        // Predicated region
        $region121: #{tpu_custom_call.1} parent=119 // pred_check
          %p1020 = pneg %p107
        $region122: #{tpu_custom_call.1} parent=119 // pred_check_branch
          %1022 = sbr.rel (%p1020) target = $region124
        $region123: #{tpu_custom_call.1} parent=119 // pred_region
          %p1023 = scmp.lt.s32.totalorder %s87, 1
          %s1024 = scalar_select %p1023, %s87, 1
          %s1025 = smul.addr %s1024, 8
          %s1026 = scalar_lea.vmem %s1, %s1025
        $region124: #{tpu_custom_call.1} parent=119 // pred_fallthru
          _
        // Predicated region
        $region125: #{tpu_custom_call.1} parent=119 // pred_check
          %p1027 = pneg %p133
        $region126: #{tpu_custom_call.1} parent=119 // pred_check_branch
          %1029 = sbr.rel (%p1027) target = $region128
        $region127: #{tpu_custom_call.1} parent=119 // pred_region
          %p1030 = scmp.lt.s32.totalorder %s87, 1
          %s1031 = scalar_select %p1030, %s87, 1
          %s1032 = smul.addr %s1031, 8
          %s1033 = scalar_lea.vmem %s3, %s1032
        $region128: #{tpu_custom_call.1} parent=119 // pred_fallthru
          _
        // Predicated region
        $region129: #{tpu_custom_call.1} parent=119 // pred_check
          %p1034 = pneg %p159
        $region130: #{tpu_custom_call.1} parent=119 // pred_check_branch
          %1036 = sbr.rel (%p1034) target = $region132
        $region131: #{tpu_custom_call.1} parent=119 // pred_region
          %p1037 = scmp.lt.s32.totalorder %s87, 1
          %s1038 = scalar_select %p1037, %s87, 1
          %s1039 = smul.addr %s1038, 8
          %s1040 = scalar_lea.vmem %s5, %s1039
        $region132: #{tpu_custom_call.1} parent=119 // pred_fallthru
          _
        // Predicated region
        $region133: #{tpu_custom_call.1} parent=119 // pred_check
          %p1041 = pneg %p185
        $region134: #{tpu_custom_call.1} parent=119 // pred_check_branch
          %1043 = sbr.rel (%p1041) target = $region136
        $region135: #{tpu_custom_call.1} parent=119 // pred_region
          %s1044 = sand.u32 %s175, 1
          %s1045 = scalar_lea.sflag [#allocation3], %s1044
          %s1046 = sand.u32 %s175, 1
          %s1047 = smul.addr %s1046, 8
          %s1048 = scalar_lea.vmem [#allocation2], %s1047
          %s1050 = ssub.s32 128, 128
          %1051 = vsyncadd %s1045, %s1050
          %s1052 = smul.addr %s87, 128
          %s1053 = scalar_lea.hbm %s7, %s1052
          %s1055 = sshll.u32 %s1048, 4
          %s1056 = int_to_ptr.vmem [resolvable:$true] %s1055
          %1058 = dma.hbm_to_vmem [thread:$0]  %s1053, 128, %s1056, %s1045
        $region136: #{tpu_custom_call.1} parent=119 // pred_fallthru
          _
      $region120: #{tpu_custom_call.1} parent=5 // pred_fallthru
        _
      %p1059 = scmp.le.s32.totalorder 1, %s87
      %p1060 = scmp.lt.s32.totalorder %s87, 3
      %p1061 = pnand %p1059, %p1060
      %p1062 = pneg %p1061
      // Predicated region
      $region137: #{tpu_custom_call.1} parent=5 // pred_check
        _
      $region138: #{tpu_custom_call.1} parent=5 // pred_check_branch
        %1064 = sbr.rel (%p1061) target = $region140
      $region139: #{tpu_custom_call.1} parent=5 // pred_region
        %s1065 = ssub.s32 %s87, 1
        %s1066 = sand.u32 %s178, 1
        %s1067 = scalar_lea.sflag [#allocation3], %s1066
        %s1068 = sand.u32 %s178, 1
        %s1069 = smul.addr %s1068, 8
        %s1070 = scalar_lea.vmem [#allocation2], %s1069
        // Predicated region
        $region141: #{tpu_custom_call.1} parent=139 // pred_check
          %p1071 = pneg %p191
        $region142: #{tpu_custom_call.1} parent=139 // pred_check_branch
          %1073 = sbr.rel (%p1071) target = $region144
        $region143: #{tpu_custom_call.1} parent=139 // pred_region
          %1074 = dma.done %s1067, 128
        $region144: #{tpu_custom_call.1} parent=139 // pred_fallthru
          _
        // Predicated region
        $region145: #{tpu_custom_call.1} parent=139 // pred_check
          %p1075 = pneg %p212
        $region146: #{tpu_custom_call.1} parent=139 // pred_check_branch
          %1077 = sbr.rel (%p1075) target = $region148
        $region147: #{tpu_custom_call.1} parent=139 // pred_region
          %1078 = dma.done [#allocation6], 256
        $region148: #{tpu_custom_call.1} parent=139 // pred_fallthru
          _
        // Predicated region
        $region149: #{tpu_custom_call.1} parent=139 // pred_check
          %p1079 = pneg %p233
        $region150: #{tpu_custom_call.1} parent=139 // pred_check_branch
          %1081 = sbr.rel (%p1079) target = $region152
        $region151: #{tpu_custom_call.1} parent=139 // pred_region
          %1082 = dma.done [#allocation6], 256
        $region152: #{tpu_custom_call.1} parent=139 // pred_fallthru
          _
        // Predicated region
        $region153: #{tpu_custom_call.1} parent=139 // pred_check
          %p1083 = pneg %p254
        $region154: #{tpu_custom_call.1} parent=139 // pred_check_branch
          %1085 = sbr.rel (%p1083) target = $region156
        $region155: #{tpu_custom_call.1} parent=139 // pred_region
          %1086 = dma.done [#allocation9], 256
        $region156: #{tpu_custom_call.1} parent=139 // pred_fallthru
          _
        // Predicated region
        $region157: #{tpu_custom_call.1} parent=139 // pred_check
          %p1087 = pneg %p275
        $region158: #{tpu_custom_call.1} parent=139 // pred_check_branch
          %1089 = sbr.rel (%p1087) target = $region160
        $region159: #{tpu_custom_call.1} parent=139 // pred_region
          %1090 = dma.done [#allocation9], 256
        $region160: #{tpu_custom_call.1} parent=139 // pred_fallthru
          _
        // Predicated region
        $region161: #{tpu_custom_call.1} parent=139 // pred_check
          %p1091 = pneg %p296
        $region162: #{tpu_custom_call.1} parent=139 // pred_check_branch
          %1093 = sbr.rel (%p1091) target = $region164
        $region163: #{tpu_custom_call.1} parent=139 // pred_region
          %1094 = dma.done [#allocation12], 16
        $region164: #{tpu_custom_call.1} parent=139 // pred_fallthru
          _
        // Predicated region
        $region165: #{tpu_custom_call.1} parent=139 // pred_check
          %p1095 = pneg %p317
        $region166: #{tpu_custom_call.1} parent=139 // pred_check_branch
          %1097 = sbr.rel (%p1095) target = $region168
        $region167: #{tpu_custom_call.1} parent=139 // pred_region
          %1098 = dma.done [#allocation12], 16
        $region168: #{tpu_custom_call.1} parent=139 // pred_fallthru
          _
        // Predicated region
        $region169: #{tpu_custom_call.1} parent=139 // pred_check
          %p1099 = pneg %p338
        $region170: #{tpu_custom_call.1} parent=139 // pred_check_branch
          %1101 = sbr.rel (%p1099) target = $region172
        $region171: #{tpu_custom_call.1} parent=139 // pred_region
          %1102 = dma.done [#allocation15], 16
        $region172: #{tpu_custom_call.1} parent=139 // pred_fallthru
          _
        // Predicated region
        $region173: #{tpu_custom_call.1} parent=139 // pred_check
          %p1103 = pneg %p359
        $region174: #{tpu_custom_call.1} parent=139 // pred_check_branch
          %1105 = sbr.rel (%p1103) target = $region176
        $region175: #{tpu_custom_call.1} parent=139 // pred_region
          %1106 = dma.done [#allocation15], 16
        $region176: #{tpu_custom_call.1} parent=139 // pred_fallthru
          _
        // Predicated region
        $region177: #{tpu_custom_call.1} parent=139 // pred_check
          %p1107 = pneg %p422
        $region178: #{tpu_custom_call.1} parent=139 // pred_check_branch
          %1109 = sbr.rel (%p1107) target = $region180
        $region179: #{tpu_custom_call.1} parent=139 // pred_region
          %1110 = dma.done [#allocation18], 256
        $region180: #{tpu_custom_call.1} parent=139 // pred_fallthru
          _
        // Predicated region
        $region181: #{tpu_custom_call.1} parent=139 // pred_check
          %p1111 = pneg %p443
        $region182: #{tpu_custom_call.1} parent=139 // pred_check_branch
          %1113 = sbr.rel (%p1111) target = $region184
        $region183: #{tpu_custom_call.1} parent=139 // pred_region
          %1114 = dma.done [#allocation18], 256
        $region184: #{tpu_custom_call.1} parent=139 // pred_fallthru
          _
        // Predicated region
        $region185: #{tpu_custom_call.1} parent=139 // pred_check
          %p1115 = pneg %p464
        $region186: #{tpu_custom_call.1} parent=139 // pred_check_branch
          %1117 = sbr.rel (%p1115) target = $region188
        $region187: #{tpu_custom_call.1} parent=139 // pred_region
          %1118 = dma.done [#allocation21], 16
        $region188: #{tpu_custom_call.1} parent=139 // pred_fallthru
          _
        // Predicated region
        $region189: #{tpu_custom_call.1} parent=139 // pred_check
          %p1119 = pneg %p485
        $region190: #{tpu_custom_call.1} parent=139 // pred_check_branch
          %1121 = sbr.rel (%p1119) target = $region192
        $region191: #{tpu_custom_call.1} parent=139 // pred_region
          %1122 = dma.done [#allocation21], 16
        $region192: #{tpu_custom_call.1} parent=139 // pred_fallthru
          _
        %p1123 = scmp.lt.s32.totalorder %s92, 1
        %s1124 = scalar_select %p1123, %s92, 1
        %s1125 = smul.addr %s1124, 8
        %s1126 = scalar_lea.vmem %s1, %s1125
        %p1127 = pneg %p113
        %p1128 = pneg %p110
        %p1129 = scmp.lt.s32.totalorder %s92, 1
        %s1130 = scalar_select %p1129, %s92, 1
        %s1131 = smul.addr %s1130, 8
        %s1132 = scalar_lea.vmem %s3, %s1131
        %p1133 = pneg %p139
        %p1134 = pneg %p136
        %p1135 = scmp.lt.s32.totalorder %s92, 1
        %s1136 = scalar_select %p1135, %s92, 1
        %s1137 = smul.addr %s1136, 8
        %s1138 = scalar_lea.vmem %s5, %s1137
        %p1139 = pneg %p165
        %p1140 = pneg %p162
        %s1141 = sand.u32 %s178, 1
        %s1142 = scalar_lea.sflag [#allocation3], %s1141
        %s1143 = sand.u32 %s178, 1
        %s1144 = smul.addr %s1143, 8
        %s1145 = scalar_lea.vmem [#allocation2], %s1144
        %p1146 = pneg %p191
        %p1147 = pneg %p188
        %p1148 = pneg %p212
        %p1149 = pneg %p209
        %p1150 = pneg %p233
        %p1151 = pneg %p230
        %p1152 = pneg %p254
        %p1153 = pneg %p251
        %p1154 = pneg %p275
        %p1155 = pneg %p272
        %p1156 = pneg %p296
        %p1157 = pneg %p293
        %p1158 = pneg %p317
        %p1159 = pneg %p314
        %p1160 = pneg %p338
        %p1161 = pneg %p335
        %p1162 = pneg %p359
        %p1163 = pneg %p356
        %p1164 = pneg %p380
        %p1165 = pneg %p377
        %p1166 = pneg %p401
        %p1167 = pneg %p398
        %p1168 = pneg %p422
        %p1169 = pneg %p419
        %p1170 = pneg %p443
        %p1171 = pneg %p440
        %p1172 = pneg %p464
        %p1173 = pneg %p461
        %p1174 = pneg %p485
        %p1175 = pneg %p482
        %p1176 = pneg %p506
        %p1177 = pneg %p503
        %p1178 = pneg %p527
        %p1179 = pneg %p524
        %p1180 = pneg %p548
        %p1181 = pneg %p545
        %p1182 = pneg %p569
        %p1183 = pneg %p566
        %p1184 = pneg %p590
        %p1185 = pneg %p587
        %p1186 = pneg %p611
        %p1187 = pneg %p608
        %p1188 = pneg %p632
        %p1189 = pneg %p629
        %p1190 = pneg %p653
        %p1191 = pneg %p650
        %p1192 = pneg %p674
        %p1193 = pneg %p671
        %p1194 = pneg %p695
        %p1195 = pneg %p692
        %p1196 = pneg %p716
        %p1197 = pneg %p713
        %p1198 = pneg %p737
        %p1199 = pneg %p734
        %p1200 = pneg %p763
        %p1201 = pneg %p760
        %s1202 = sand.u32 %s750, 1
        %s1203 = scalar_lea.sflag [#allocation4], %s1202
        %s1204 = sand.u32 %s750, 1
        %s1205 = smul.addr %s1204, 8
        %s1206 = scalar_lea.vmem [#allocation23], %s1205
        %p1207 = pneg %p789
        %p1208 = pneg %p786
        %s1209 = sand.u32 %s92, 1
        %s1210 = scalar_lea.sflag [#allocation25], %s1209
        %s1211 = sand.u32 %s776, 1
        %s1212 = smul.addr %s1211, 16
        %s1213 = scalar_lea.vmem [#allocation24], %s1212
        %p1214 = pneg %p815
        %p1215 = pneg %p812
        %s1216 = sand.u32 %s92, 1
        %s1217 = scalar_lea.sflag [#allocation25], %s1216
        %s1218 = sand.u32 %s802, 1
        %s1219 = smul.addr %s1218, 16
        %s1220 = scalar_lea.vmem [#allocation26], %s1219
        %p1221 = scmp.lt.s32.totalorder %s92, 1
        %s1222 = scalar_select %p1221, %s92, 1
        %s1223 = smul.addr %s1222, 8
        %s1224 = scalar_lea.vmem %s1, %s1223
        %p1225 = scmp.lt.s32.totalorder %s92, 1
        %s1226 = scalar_select %p1225, %s92, 1
        %s1227 = smul.addr %s1226, 8
        %s1228 = scalar_lea.vmem %s3, %s1227
        %p1229 = scmp.lt.s32.totalorder %s92, 1
        %s1230 = scalar_select %p1229, %s92, 1
        %s1231 = smul.addr %s1230, 8
        %s1232 = scalar_lea.vmem %s5, %s1231
        %v1234 = vld [vmem:[%s1224] sm:$0xff]
        %v1235 = vld [vmem:[%s1228] sm:$0xff]
        %v1236 = vpack.c.bf16 %v1235, %v1235
        %v1237 = vpack.c.bf16 %v1234, %v1234
        %v1238 = vld [vmem:[%s1232] sm:$0xff]
        %v1239 = vld [vmem:[#allocation5] sm:$0xf]
        %v1240 = vld [vmem:[#allocation5 + $0x4] sm:$0xf]
        %v1241 = vld [vmem:[#allocation5 + $0x8] sm:$0xf]
        %v1242 = vld [vmem:[#allocation5 + $0xc] sm:$0xf]
        %v1243 = vld [vmem:[#allocation11] sm:$0x1]
        %v1245 = vlaneseq
        %v1246 = vshrl.u32 %v1245, 7
        %v1247 = vsub.s32 0, %v1246
        %v1248 = vrot.slane %v1243, %v1247
        %v1254 = vunpack.c.l.b16 %v1239
        %v1255 = vunpack.c.l.b16 %v1240
        %v1256 = vunpack.c.l.b16 %v1241
        %v1257 = vunpack.c.l.b16 %v1242
        %v1258 = vpack.c.b16 %v1255, %v1254
        %v1259 = vpack.c.b16 %v1257, %v1256
        %vm1262 = vcmask 261120
        %v1264 = vsel %vm1262, %v1237, 0
        %1266 = vmatprep.subr.bf16.mxu0 0
        %1267 = vmatpush1.bf16.msra.mxu0 %v1258
        %1268 = vmatprep.subr.bf16.mxu0 0
        %1269 = vmatpush1.bf16.msra.mxu0 %v1259
        %1270 = vmatprep.subr.bf16.mxu0 0
        %1271 = vmatpush1.bf16.msra.mxu0 0
        %1272 = vmatprep.subr.bf16.mxu0 0
        %1273 = vmatpush1.bf16.msra.mxu0 0
        %1274 = vmatprep.subr.bf16.mxu0 0
        %1275 = vmatpush1.bf16.msra.mxu0 0
        %1276 = vmatprep.subr.bf16.mxu0 0
        %1277 = vmatpush1.bf16.msra.mxu0 0
        %1278 = vmatprep.subr.bf16.mxu0 0
        %1279 = vmatpush1.bf16.msra.mxu0 0
        %1280 = vmatprep.subr.bf16.mxu0 0
        %1281 = vmatpush1.bf16.msra.mxu0 0
        %1282 = vmatprep.subr.bf16.mxu0 0
        %1283 = vmatpush1.bf16.msra.mxu0 0
        %1284 = vmatprep.subr.bf16.mxu0 0
        %1285 = vmatpush1.bf16.msra.mxu0 0
        %1286 = vmatprep.subr.bf16.mxu0 0
        %1287 = vmatpush1.bf16.msra.mxu0 0
        %1288 = vmatprep.subr.bf16.mxu0 0
        %1289 = vmatpush1.bf16.msra.mxu0 0
        %1290 = vmatprep.subr.bf16.mxu0 0
        %1291 = vmatpush1.bf16.msra.mxu0 0
        %1292 = vmatprep.subr.bf16.mxu0 0
        %1293 = vmatpush1.bf16.msra.mxu0 0
        %1294 = vmatprep.subr.bf16.mxu0 0
        %1295 = vmatpush1.bf16.msra.mxu0 0
        %1296 = vmatprep.subr.bf16.mxu0 0
        %1297 = vmatpush1.bf16.msra.mxu0 0
        %1298 = vmatprep.mubr.bf16.mxu0 0
        %1299 = vmatmul.mubr.bf16.gmra.mrb[0].mxu0 %v1264
        %v1300 = vpop.f32.mrb[0].mxu0
        %v1301 = vadd.f32 %v1248, %v1300
        %v1302 = vpop.f32.mrb[0].mxu0
        %v1303 = vpop.f32.mrb[0].mxu0
        %v1304 = vpop.f32.mrb[0].mxu0
        %1305 = vdwg.mxu0
        %v1306 = vld [vmem:[#allocation7] sm:$0xf]
        %v1307 = vld [vmem:[#allocation7 + $0x4] sm:$0xf]
        %v1308 = vld [vmem:[#allocation7 + $0x8] sm:$0xf]
        %v1309 = vld [vmem:[#allocation7 + $0xc] sm:$0xf]
        %v1310 = vld [vmem:[#allocation13] sm:$0x1]
        %v1312 = vlaneseq
        %v1313 = vshrl.u32 %v1312, 7
        %v1314 = vsub.s32 0, %v1313
        %v1315 = vrot.slane %v1310, %v1314
        %v1321 = vunpack.c.l.b16 %v1306
        %v1322 = vunpack.c.l.b16 %v1307
        %v1323 = vunpack.c.l.b16 %v1308
        %v1324 = vunpack.c.l.b16 %v1309
        %v1325 = vpack.c.b16 %v1322, %v1321
        %v1326 = vpack.c.b16 %v1324, %v1323
        %1329 = vmatprep.subr.bf16.mxu0 0
        %1330 = vmatpush1.bf16.msra.mxu0 %v1325
        %1331 = vmatprep.subr.bf16.mxu0 0
        %1332 = vmatpush1.bf16.msra.mxu0 %v1326
        %1333 = vmatprep.subr.bf16.mxu0 0
        %1334 = vmatpush1.bf16.msra.mxu0 0
        %1335 = vmatprep.subr.bf16.mxu0 0
        %1336 = vmatpush1.bf16.msra.mxu0 0
        %1337 = vmatprep.subr.bf16.mxu0 0
        %1338 = vmatpush1.bf16.msra.mxu0 0
        %1339 = vmatprep.subr.bf16.mxu0 0
        %1340 = vmatpush1.bf16.msra.mxu0 0
        %1341 = vmatprep.subr.bf16.mxu0 0
        %1342 = vmatpush1.bf16.msra.mxu0 0
        %1343 = vmatprep.subr.bf16.mxu0 0
        %1344 = vmatpush1.bf16.msra.mxu0 0
        %1345 = vmatprep.subr.bf16.mxu0 0
        %1346 = vmatpush1.bf16.msra.mxu0 0
        %1347 = vmatprep.subr.bf16.mxu0 0
        %1348 = vmatpush1.bf16.msra.mxu0 0
        %1349 = vmatprep.subr.bf16.mxu0 0
        %1350 = vmatpush1.bf16.msra.mxu0 0
        %1351 = vmatprep.subr.bf16.mxu0 0
        %1352 = vmatpush1.bf16.msra.mxu0 0
        %1353 = vmatprep.subr.bf16.mxu0 0
        %1354 = vmatpush1.bf16.msra.mxu0 0
        %1355 = vmatprep.subr.bf16.mxu0 0
        %1356 = vmatpush1.bf16.msra.mxu0 0
        %1357 = vmatprep.subr.bf16.mxu0 0
        %1358 = vmatpush1.bf16.msra.mxu0 0
        %1359 = vmatprep.subr.bf16.mxu0 0
        %1360 = vmatpush1.bf16.msra.mxu0 0
        %1361 = vmatprep.mubr.bf16.mxu0 0
        %1362 = vmatmul.mubr.bf16.gmra.mrb[0].mxu0 %v1264
        %v1363 = vpop.f32.mrb[0].mxu0
        %v1364 = vadd.f32 %v1315, %v1363
        %v1365 = vpop.f32.mrb[0].mxu0
        %v1366 = vpop.f32.mrb[0].mxu0
        %v1367 = vpop.f32.mrb[0].mxu0
        %1368 = vdwg.mxu0
        %v1369 = vld [vmem:[#allocation8] sm:$0xf]
        %v1370 = vld [vmem:[#allocation8 + $0x4] sm:$0xf]
        %v1371 = vld [vmem:[#allocation8 + $0x8] sm:$0xf]
        %v1372 = vld [vmem:[#allocation8 + $0xc] sm:$0xf]
        %v1373 = vld [vmem:[#allocation14] sm:$0x1]
        %v1375 = vlaneseq
        %v1376 = vshrl.u32 %v1375, 7
        %v1377 = vsub.s32 0, %v1376
        %v1378 = vrot.slane %v1373, %v1377
        %v1384 = vunpack.c.l.b16 %v1369
        %v1385 = vunpack.c.l.b16 %v1370
        %v1386 = vunpack.c.l.b16 %v1371
        %v1387 = vunpack.c.l.b16 %v1372
        %v1388 = vpack.c.b16 %v1385, %v1384
        %v1389 = vpack.c.b16 %v1387, %v1386
        %1392 = vmatprep.subr.bf16.mxu0 0
        %1393 = vmatpush1.bf16.msra.mxu0 %v1388
        %1394 = vmatprep.subr.bf16.mxu0 0
        %1395 = vmatpush1.bf16.msra.mxu0 %v1389
        %1396 = vmatprep.subr.bf16.mxu0 0
        %1397 = vmatpush1.bf16.msra.mxu0 0
        %1398 = vmatprep.subr.bf16.mxu0 0
        %1399 = vmatpush1.bf16.msra.mxu0 0
        %1400 = vmatprep.subr.bf16.mxu0 0
        %1401 = vmatpush1.bf16.msra.mxu0 0
        %1402 = vmatprep.subr.bf16.mxu0 0
        %1403 = vmatpush1.bf16.msra.mxu0 0
        %1404 = vmatprep.subr.bf16.mxu0 0
        %1405 = vmatpush1.bf16.msra.mxu0 0
        %1406 = vmatprep.subr.bf16.mxu0 0
        %1407 = vmatpush1.bf16.msra.mxu0 0
        %1408 = vmatprep.subr.bf16.mxu0 0
        %1409 = vmatpush1.bf16.msra.mxu0 0
        %1410 = vmatprep.subr.bf16.mxu0 0
        %1411 = vmatpush1.bf16.msra.mxu0 0
        %1412 = vmatprep.subr.bf16.mxu0 0
        %1413 = vmatpush1.bf16.msra.mxu0 0
        %1414 = vmatprep.subr.bf16.mxu0 0
        %1415 = vmatpush1.bf16.msra.mxu0 0
        %1416 = vmatprep.subr.bf16.mxu0 0
        %1417 = vmatpush1.bf16.msra.mxu0 0
        %1418 = vmatprep.subr.bf16.mxu0 0
        %1419 = vmatpush1.bf16.msra.mxu0 0
        %1420 = vmatprep.subr.bf16.mxu0 0
        %1421 = vmatpush1.bf16.msra.mxu0 0
        %1422 = vmatprep.subr.bf16.mxu0 0
        %1423 = vmatpush1.bf16.msra.mxu0 0
        %1424 = vmatprep.mubr.bf16.mxu0 0
        %1425 = vmatmul.mubr.bf16.gmra.mrb[0].mxu0 %v1264
        %v1426 = vpop.f32.mrb[0].mxu0
        %v1427 = vadd.f32 %v1378, %v1426
        %v1428 = vpop.f32.mrb[0].mxu0
        %v1429 = vpop.f32.mrb[0].mxu0
        %v1430 = vpop.f32.mrb[0].mxu0
        %1431 = vdwg.mxu0
        %1433 = vrot.lane.b32.xlu0 %v1301, 120
        %v1434 = vpop.permute.xlu0 %1433
        %1436 = vrot.lane.b32.xlu0 %v1301, 112
        %v1437 = vpop.permute.xlu0 %1436
        %1439 = vrot.lane.b32.xlu0 %v1301, 104
        %v1440 = vpop.permute.xlu0 %1439
        %v1442 = vpack.c.bf16 %v1301, %v1301
        %v1443 = vpack.c.bf16 %v1434, %v1434
        %v1444 = vpack.c.bf16 %v1437, %v1437
        %v1445 = vpack.c.bf16 %v1440, %v1440
        %1447 = vrot.lane.b32.xlu0 %v1364, 120
        %v1448 = vpop.permute.xlu0 %1447
        %1450 = vrot.lane.b32.xlu0 %v1364, 112
        %v1451 = vpop.permute.xlu0 %1450
        %1453 = vrot.lane.b32.xlu0 %v1364, 104
        %v1454 = vpop.permute.xlu0 %1453
        %v1456 = vpack.c.bf16 %v1364, %v1364
        %v1457 = vpack.c.bf16 %v1448, %v1448
        %v1458 = vpack.c.bf16 %v1451, %v1451
        %v1459 = vpack.c.bf16 %v1454, %v1454
        %1461 = vrot.lane.b32.xlu0 %v1427, 120
        %v1462 = vpop.permute.xlu0 %1461
        %1464 = vrot.lane.b32.xlu0 %v1427, 112
        %v1465 = vpop.permute.xlu0 %1464
        %1467 = vrot.lane.b32.xlu0 %v1427, 104
        %v1468 = vpop.permute.xlu0 %1467
        %v1470 = vpack.c.bf16 %v1427, %v1427
        %v1471 = vpack.c.bf16 %v1462, %v1462
        %v1472 = vpack.c.bf16 %v1465, %v1465
        %v1473 = vpack.c.bf16 %v1468, %v1468
        %vm1474 = vcmask 64512
        %v1476 = vsel %vm1474, %v1442, 0
        %v1479 = vsel %vm1474, %v1456, 0
        %1481 = vmatprep.subr.bf16.mxu0 0
        %1482 = vmatpush1.bf16.xpose.msra.mxu0 %v1479
        %1483 = vmatprep.subr.bf16.mxu0 0
        %1484 = vmatpush1.bf16.xpose.msra.mxu0 0
        %1485 = vmatprep.subr.bf16.mxu0 0
        %1486 = vmatpush1.bf16.xpose.msra.mxu0 0
        %1487 = vmatprep.subr.bf16.mxu0 0
        %1488 = vmatpush1.bf16.xpose.msra.mxu0 0
        %1489 = vmatprep.subr.bf16.mxu0 0
        %1490 = vmatpush1.bf16.xpose.msra.mxu0 0
        %1491 = vmatprep.subr.bf16.mxu0 0
        %1492 = vmatpush1.bf16.xpose.msra.mxu0 0
        %1493 = vmatprep.subr.bf16.mxu0 0
        %1494 = vmatpush1.bf16.xpose.msra.mxu0 0
        %1495 = vmatprep.subr.bf16.mxu0 0
        %1496 = vmatpush1.bf16.xpose.msra.mxu0 0
        %1497 = vmatprep.subr.bf16.mxu0 0
        %1498 = vmatpush1.bf16.xpose.msra.mxu0 0
        %1499 = vmatprep.subr.bf16.mxu0 0
        %1500 = vmatpush1.bf16.xpose.msra.mxu0 0
        %1501 = vmatprep.subr.bf16.mxu0 0
        %1502 = vmatpush1.bf16.xpose.msra.mxu0 0
        %1503 = vmatprep.subr.bf16.mxu0 0
        %1504 = vmatpush1.bf16.xpose.msra.mxu0 0
        %1505 = vmatprep.subr.bf16.mxu0 0
        %1506 = vmatpush1.bf16.xpose.msra.mxu0 0
        %1507 = vmatprep.subr.bf16.mxu0 0
        %1508 = vmatpush1.bf16.xpose.msra.mxu0 0
        %1509 = vmatprep.subr.bf16.mxu0 0
        %1510 = vmatpush1.bf16.xpose.msra.mxu0 0
        %1511 = vmatprep.subr.bf16.mxu0 0
        %1512 = vmatpush1.bf16.xpose.msra.mxu0 0
        %1513 = vmatprep.mubr.bf16.mxu0 0
        %1514 = vmatmul.mubr.bf16.gmra.mrb[0].mxu0 %v1476
        %v1515 = vpop.f32.mrb[0].mxu0
        %v1516 = vadd.f32 0.0, %v1515
        %v1517 = vpop.f32.mrb[0].mxu0
        %v1518 = vpop.f32.mrb[0].mxu0
        %v1519 = vpop.f32.mrb[0].mxu0
        %1520 = vdwg.mxu0
        %v1522 = vsel %vm1474, %v1443, 0
        %v1525 = vsel %vm1474, %v1457, 0
        %1527 = vmatprep.subr.bf16.mxu0 0
        %1528 = vmatpush1.bf16.xpose.msra.mxu0 %v1525
        %1529 = vmatprep.subr.bf16.mxu0 0
        %1530 = vmatpush1.bf16.xpose.msra.mxu0 0
        %1531 = vmatprep.subr.bf16.mxu0 0
        %1532 = vmatpush1.bf16.xpose.msra.mxu0 0
        %1533 = vmatprep.subr.bf16.mxu0 0
        %1534 = vmatpush1.bf16.xpose.msra.mxu0 0
        %1535 = vmatprep.subr.bf16.mxu0 0
        %1536 = vmatpush1.bf16.xpose.msra.mxu0 0
        %1537 = vmatprep.subr.bf16.mxu0 0
        %1538 = vmatpush1.bf16.xpose.msra.mxu0 0
        %1539 = vmatprep.subr.bf16.mxu0 0
        %1540 = vmatpush1.bf16.xpose.msra.mxu0 0
        %1541 = vmatprep.subr.bf16.mxu0 0
        %1542 = vmatpush1.bf16.xpose.msra.mxu0 0
        %1543 = vmatprep.subr.bf16.mxu0 0
        %1544 = vmatpush1.bf16.xpose.msra.mxu0 0
        %1545 = vmatprep.subr.bf16.mxu0 0
        %1546 = vmatpush1.bf16.xpose.msra.mxu0 0
        %1547 = vmatprep.subr.bf16.mxu0 0
        %1548 = vmatpush1.bf16.xpose.msra.mxu0 0
        %1549 = vmatprep.subr.bf16.mxu0 0
        %1550 = vmatpush1.bf16.xpose.msra.mxu0 0
        %1551 = vmatprep.subr.bf16.mxu0 0
        %1552 = vmatpush1.bf16.xpose.msra.mxu0 0
        %1553 = vmatprep.subr.bf16.mxu0 0
        %1554 = vmatpush1.bf16.xpose.msra.mxu0 0
        %1555 = vmatprep.subr.bf16.mxu0 0
        %1556 = vmatpush1.bf16.xpose.msra.mxu0 0
        %1557 = vmatprep.subr.bf16.mxu0 0
        %1558 = vmatpush1.bf16.xpose.msra.mxu0 0
        %1559 = vmatprep.mubr.bf16.mxu0 0
        %1560 = vmatmul.mubr.bf16.gmra.mrb[0].mxu0 %v1522
        %v1561 = vpop.f32.mrb[0].mxu0
        %v1562 = vadd.f32 0.0, %v1561
        %v1563 = vpop.f32.mrb[0].mxu0
        %v1564 = vpop.f32.mrb[0].mxu0
        %v1565 = vpop.f32.mrb[0].mxu0
        %1566 = vdwg.mxu0
        %v1568 = vsel %vm1474, %v1444, 0
        %v1571 = vsel %vm1474, %v1458, 0
        %1573 = vmatprep.subr.bf16.mxu0 0
        %1574 = vmatpush1.bf16.xpose.msra.mxu0 %v1571
        %1575 = vmatprep.subr.bf16.mxu0 0
        %1576 = vmatpush1.bf16.xpose.msra.mxu0 0
        %1577 = vmatprep.subr.bf16.mxu0 0
        %1578 = vmatpush1.bf16.xpose.msra.mxu0 0
        %1579 = vmatprep.subr.bf16.mxu0 0
        %1580 = vmatpush1.bf16.xpose.msra.mxu0 0
        %1581 = vmatprep.subr.bf16.mxu0 0
        %1582 = vmatpush1.bf16.xpose.msra.mxu0 0
        %1583 = vmatprep.subr.bf16.mxu0 0
        %1584 = vmatpush1.bf16.xpose.msra.mxu0 0
        %1585 = vmatprep.subr.bf16.mxu0 0
        %1586 = vmatpush1.bf16.xpose.msra.mxu0 0
        %1587 = vmatprep.subr.bf16.mxu0 0
        %1588 = vmatpush1.bf16.xpose.msra.mxu0 0
        %1589 = vmatprep.subr.bf16.mxu0 0
        %1590 = vmatpush1.bf16.xpose.msra.mxu0 0
        %1591 = vmatprep.subr.bf16.mxu0 0
        %1592 = vmatpush1.bf16.xpose.msra.mxu0 0
        %1593 = vmatprep.subr.bf16.mxu0 0
        %1594 = vmatpush1.bf16.xpose.msra.mxu0 0
        %1595 = vmatprep.subr.bf16.mxu0 0
        %1596 = vmatpush1.bf16.xpose.msra.mxu0 0
        %1597 = vmatprep.subr.bf16.mxu0 0
        %1598 = vmatpush1.bf16.xpose.msra.mxu0 0
        %1599 = vmatprep.subr.bf16.mxu0 0
        %1600 = vmatpush1.bf16.xpose.msra.mxu0 0
        %1601 = vmatprep.subr.bf16.mxu0 0
        %1602 = vmatpush1.bf16.xpose.msra.mxu0 0
        %1603 = vmatprep.subr.bf16.mxu0 0
        %1604 = vmatpush1.bf16.xpose.msra.mxu0 0
        %1605 = vmatprep.mubr.bf16.mxu0 0
        %1606 = vmatmul.mubr.bf16.gmra.mrb[0].mxu0 %v1568
        %v1607 = vpop.f32.mrb[0].mxu0
        %v1608 = vadd.f32 0.0, %v1607
        %v1609 = vpop.f32.mrb[0].mxu0
        %v1610 = vpop.f32.mrb[0].mxu0
        %v1611 = vpop.f32.mrb[0].mxu0
        %1612 = vdwg.mxu0
        %v1614 = vsel %vm1474, %v1445, 0
        %v1617 = vsel %vm1474, %v1459, 0
        %1619 = vmatprep.subr.bf16.mxu0 0
        %1620 = vmatpush1.bf16.xpose.msra.mxu0 %v1617
        %1621 = vmatprep.subr.bf16.mxu0 0
        %1622 = vmatpush1.bf16.xpose.msra.mxu0 0
        %1623 = vmatprep.subr.bf16.mxu0 0
        %1624 = vmatpush1.bf16.xpose.msra.mxu0 0
        %1625 = vmatprep.subr.bf16.mxu0 0
        %1626 = vmatpush1.bf16.xpose.msra.mxu0 0
        %1627 = vmatprep.subr.bf16.mxu0 0
        %1628 = vmatpush1.bf16.xpose.msra.mxu0 0
        %1629 = vmatprep.subr.bf16.mxu0 0
        %1630 = vmatpush1.bf16.xpose.msra.mxu0 0
        %1631 = vmatprep.subr.bf16.mxu0 0
        %1632 = vmatpush1.bf16.xpose.msra.mxu0 0
        %1633 = vmatprep.subr.bf16.mxu0 0
        %1634 = vmatpush1.bf16.xpose.msra.mxu0 0
        %1635 = vmatprep.subr.bf16.mxu0 0
        %1636 = vmatpush1.bf16.xpose.msra.mxu0 0
        %1637 = vmatprep.subr.bf16.mxu0 0
        %1638 = vmatpush1.bf16.xpose.msra.mxu0 0
        %1639 = vmatprep.subr.bf16.mxu0 0
        %1640 = vmatpush1.bf16.xpose.msra.mxu0 0
        %1641 = vmatprep.subr.bf16.mxu0 0
        %1642 = vmatpush1.bf16.xpose.msra.mxu0 0
        %1643 = vmatprep.subr.bf16.mxu0 0
        %1644 = vmatpush1.bf16.xpose.msra.mxu0 0
        %1645 = vmatprep.subr.bf16.mxu0 0
        %1646 = vmatpush1.bf16.xpose.msra.mxu0 0
        %1647 = vmatprep.subr.bf16.mxu0 0
        %1648 = vmatpush1.bf16.xpose.msra.mxu0 0
        %1649 = vmatprep.subr.bf16.mxu0 0
        %1650 = vmatpush1.bf16.xpose.msra.mxu0 0
        %1651 = vmatprep.mubr.bf16.mxu0 0
        %1652 = vmatmul.mubr.bf16.gmra.mrb[0].mxu0 %v1614
        %v1653 = vpop.f32.mrb[0].mxu0
        %v1654 = vadd.f32 0.0, %v1653
        %v1655 = vpop.f32.mrb[0].mxu0
        %v1656 = vpop.f32.mrb[0].mxu0
        %v1657 = vpop.f32.mrb[0].mxu0
        %1658 = vdwg.mxu0
        %vm1659 = vcmp.gt.f32.partialorder %v1238, 0.5
        %v1660 = vsel %vm1659, 1, 0
        %vm1661 = vcmp.eq.s32.totalorder %v1660, 1
        %v1662 = vsel %vm1661, -1e+10, %v1516
        %v1663 = vsel %vm1661, -1e+10, %v1562
        %v1664 = vsel %vm1661, -1e+10, %v1608
        %v1665 = vsel %vm1661, -1e+10, %v1654
        %v1666 = vsel %vm1474, %v1662, -inf
        %1667 = vmax.xlane.f32.xlu0 %v1666
        %v1668 = vpop.xlane.xlu0 %1667
        %v1669 = vsel %vm1474, %v1663, -inf
        %1670 = vmax.xlane.f32.xlu0 %v1669
        %v1671 = vpop.xlane.xlu0 %1670
        %v1672 = vsel %vm1474, %v1664, -inf
        %1673 = vmax.xlane.f32.xlu0 %v1672
        %v1674 = vpop.xlane.xlu0 %1673
        %v1675 = vsel %vm1474, %v1665, -inf
        %1676 = vmax.xlane.f32.xlu0 %v1675
        %v1677 = vpop.xlane.xlu0 %1676
        %v1678 = vsub.f32 %v1662, %v1668
        %v1679 = vsub.f32 %v1663, %v1671
        %v1680 = vsub.f32 %v1664, %v1674
        %v1681 = vsub.f32 %v1665, %v1677
        %v1682 = vmul.f32 %v1678, 1.442695
        %v1683 = vpow.pop %v1682
        %v1684 = vmul.f32 %v1679, 1.442695
        %v1685 = vpow.pop %v1684
        %v1686 = vmul.f32 %v1680, 1.442695
        %v1687 = vpow.pop %v1686
        %v1688 = vmul.f32 %v1681, 1.442695
        %v1689 = vpow.pop %v1688
        %v1690 = vsel %vm1474, %v1683, 0.0
        %1691 = vadd.xlane.f32.xlu0 %v1690
        %v1692 = vpop.xlane.xlu0 %1691
        %v1693 = vsel %vm1474, %v1685, 0.0
        %1694 = vadd.xlane.f32.xlu0 %v1693
        %v1695 = vpop.xlane.xlu0 %1694
        %v1696 = vsel %vm1474, %v1687, 0.0
        %1697 = vadd.xlane.f32.xlu0 %v1696
        %v1698 = vpop.xlane.xlu0 %1697
        %v1699 = vsel %vm1474, %v1689, 0.0
        %1700 = vadd.xlane.f32.xlu0 %v1699
        %v1701 = vpop.xlane.xlu0 %1700
        %v1702 = vrcp.pop %v1692
        %v1703 = vmul.f32 %v1683, %v1702
        %v1704 = vrcp.pop %v1695
        %v1705 = vmul.f32 %v1685, %v1704
        %v1706 = vrcp.pop %v1698
        %v1707 = vmul.f32 %v1687, %v1706
        %v1708 = vrcp.pop %v1701
        %v1709 = vmul.f32 %v1689, %v1708
        %v1710 = vpack.c.bf16 %v1703, %v1703
        %v1711 = vpack.c.bf16 %v1705, %v1705
        %v1712 = vpack.c.bf16 %v1707, %v1707
        %v1713 = vpack.c.bf16 %v1709, %v1709
        %vm1714 = vcmask 60416
        %1715 = vst.msk [vmem:[%s1213] sm:$0xf] %vm1714, %v1710
        %1716 = vst.msk [vmem:[%s1213 + $0x4] sm:$0xf] %vm1714, %v1711
        %1717 = vst.msk [vmem:[%s1213 + $0x8] sm:$0xf] %vm1714, %v1712
        %1718 = vst.msk [vmem:[%s1213 + $0xc] sm:$0xf] %vm1714, %v1713
        %v1720 = vsel %vm1474, %v1710, 0
        %vm1722 = vcmask 1043456
        %v1724 = vsel %vm1722, %v1470, 0
        %1726 = vmatprep.subr.bf16.mxu0 0
        %1727 = vmatpush1.bf16.msra.mxu0 %v1724
        %1728 = vmatprep.subr.bf16.mxu0 0
        %1729 = vmatpush1.bf16.msra.mxu0 0
        %1730 = vmatprep.subr.bf16.mxu0 0
        %1731 = vmatpush1.bf16.msra.mxu0 0
        %1732 = vmatprep.subr.bf16.mxu0 0
        %1733 = vmatpush1.bf16.msra.mxu0 0
        %1734 = vmatprep.subr.bf16.mxu0 0
        %1735 = vmatpush1.bf16.msra.mxu0 0
        %1736 = vmatprep.subr.bf16.mxu0 0
        %1737 = vmatpush1.bf16.msra.mxu0 0
        %1738 = vmatprep.subr.bf16.mxu0 0
        %1739 = vmatpush1.bf16.msra.mxu0 0
        %1740 = vmatprep.subr.bf16.mxu0 0
        %1741 = vmatpush1.bf16.msra.mxu0 0
        %1742 = vmatprep.subr.bf16.mxu0 0
        %1743 = vmatpush1.bf16.msra.mxu0 0
        %1744 = vmatprep.subr.bf16.mxu0 0
        %1745 = vmatpush1.bf16.msra.mxu0 0
        %1746 = vmatprep.subr.bf16.mxu0 0
        %1747 = vmatpush1.bf16.msra.mxu0 0
        %1748 = vmatprep.subr.bf16.mxu0 0
        %1749 = vmatpush1.bf16.msra.mxu0 0
        %1750 = vmatprep.subr.bf16.mxu0 0
        %1751 = vmatpush1.bf16.msra.mxu0 0
        %1752 = vmatprep.subr.bf16.mxu0 0
        %1753 = vmatpush1.bf16.msra.mxu0 0
        %1754 = vmatprep.subr.bf16.mxu0 0
        %1755 = vmatpush1.bf16.msra.mxu0 0
        %1756 = vmatprep.subr.bf16.mxu0 0
        %1757 = vmatpush1.bf16.msra.mxu0 0
        %1758 = vmatprep.mubr.bf16.mxu0 0
        %1759 = vmatmul.mubr.bf16.gmra.mrb[0].mxu0 %v1720
        %v1760 = vpop.f32.mrb[0].mxu0
        %v1761 = vadd.f32 0.0, %v1760
        %v1762 = vpop.f32.mrb[0].mxu0
        %v1763 = vpop.f32.mrb[0].mxu0
        %v1764 = vpop.f32.mrb[0].mxu0
        %1765 = vdwg.mxu0
        %v1767 = vsel %vm1474, %v1711, 0
        %v1770 = vsel %vm1722, %v1471, 0
        %1772 = vmatprep.subr.bf16.mxu0 0
        %1773 = vmatpush1.bf16.msra.mxu0 %v1770
        %1774 = vmatprep.subr.bf16.mxu0 0
        %1775 = vmatpush1.bf16.msra.mxu0 0
        %1776 = vmatprep.subr.bf16.mxu0 0
        %1777 = vmatpush1.bf16.msra.mxu0 0
        %1778 = vmatprep.subr.bf16.mxu0 0
        %1779 = vmatpush1.bf16.msra.mxu0 0
        %1780 = vmatprep.subr.bf16.mxu0 0
        %1781 = vmatpush1.bf16.msra.mxu0 0
        %1782 = vmatprep.subr.bf16.mxu0 0
        %1783 = vmatpush1.bf16.msra.mxu0 0
        %1784 = vmatprep.subr.bf16.mxu0 0
        %1785 = vmatpush1.bf16.msra.mxu0 0
        %1786 = vmatprep.subr.bf16.mxu0 0
        %1787 = vmatpush1.bf16.msra.mxu0 0
        %1788 = vmatprep.subr.bf16.mxu0 0
        %1789 = vmatpush1.bf16.msra.mxu0 0
        %1790 = vmatprep.subr.bf16.mxu0 0
        %1791 = vmatpush1.bf16.msra.mxu0 0
        %1792 = vmatprep.subr.bf16.mxu0 0
        %1793 = vmatpush1.bf16.msra.mxu0 0
        %1794 = vmatprep.subr.bf16.mxu0 0
        %1795 = vmatpush1.bf16.msra.mxu0 0
        %1796 = vmatprep.subr.bf16.mxu0 0
        %1797 = vmatpush1.bf16.msra.mxu0 0
        %1798 = vmatprep.subr.bf16.mxu0 0
        %1799 = vmatpush1.bf16.msra.mxu0 0
        %1800 = vmatprep.subr.bf16.mxu0 0
        %1801 = vmatpush1.bf16.msra.mxu0 0
        %1802 = vmatprep.subr.bf16.mxu0 0
        %1803 = vmatpush1.bf16.msra.mxu0 0
        %1804 = vmatprep.mubr.bf16.mxu0 0
        %1805 = vmatmul.mubr.bf16.gmra.mrb[0].mxu0 %v1767
        %v1806 = vpop.f32.mrb[0].mxu0
        %v1807 = vadd.f32 0.0, %v1806
        %v1808 = vpop.f32.mrb[0].mxu0
        %v1809 = vpop.f32.mrb[0].mxu0
        %v1810 = vpop.f32.mrb[0].mxu0
        %1811 = vdwg.mxu0
        %v1813 = vsel %vm1474, %v1712, 0
        %v1816 = vsel %vm1722, %v1472, 0
        %1818 = vmatprep.subr.bf16.mxu0 0
        %1819 = vmatpush1.bf16.msra.mxu0 %v1816
        %1820 = vmatprep.subr.bf16.mxu0 0
        %1821 = vmatpush1.bf16.msra.mxu0 0
        %1822 = vmatprep.subr.bf16.mxu0 0
        %1823 = vmatpush1.bf16.msra.mxu0 0
        %1824 = vmatprep.subr.bf16.mxu0 0
        %1825 = vmatpush1.bf16.msra.mxu0 0
        %1826 = vmatprep.subr.bf16.mxu0 0
        %1827 = vmatpush1.bf16.msra.mxu0 0
        %1828 = vmatprep.subr.bf16.mxu0 0
        %1829 = vmatpush1.bf16.msra.mxu0 0
        %1830 = vmatprep.subr.bf16.mxu0 0
        %1831 = vmatpush1.bf16.msra.mxu0 0
        %1832 = vmatprep.subr.bf16.mxu0 0
        %1833 = vmatpush1.bf16.msra.mxu0 0
        %1834 = vmatprep.subr.bf16.mxu0 0
        %1835 = vmatpush1.bf16.msra.mxu0 0
        %1836 = vmatprep.subr.bf16.mxu0 0
        %1837 = vmatpush1.bf16.msra.mxu0 0
        %1838 = vmatprep.subr.bf16.mxu0 0
        %1839 = vmatpush1.bf16.msra.mxu0 0
        %1840 = vmatprep.subr.bf16.mxu0 0
        %1841 = vmatpush1.bf16.msra.mxu0 0
        %1842 = vmatprep.subr.bf16.mxu0 0
        %1843 = vmatpush1.bf16.msra.mxu0 0
        %1844 = vmatprep.subr.bf16.mxu0 0
        %1845 = vmatpush1.bf16.msra.mxu0 0
        %1846 = vmatprep.subr.bf16.mxu0 0
        %1847 = vmatpush1.bf16.msra.mxu0 0
        %1848 = vmatprep.subr.bf16.mxu0 0
        %1849 = vmatpush1.bf16.msra.mxu0 0
        %1850 = vmatprep.mubr.bf16.mxu0 0
        %1851 = vmatmul.mubr.bf16.gmra.mrb[0].mxu0 %v1813
        %v1852 = vpop.f32.mrb[0].mxu0
        %v1853 = vadd.f32 0.0, %v1852
        %v1854 = vpop.f32.mrb[0].mxu0
        %v1855 = vpop.f32.mrb[0].mxu0
        %v1856 = vpop.f32.mrb[0].mxu0
        %1857 = vdwg.mxu0
        %v1859 = vsel %vm1474, %v1713, 0
        %v1862 = vsel %vm1722, %v1473, 0
        %1864 = vmatprep.subr.bf16.mxu0 0
        %1865 = vmatpush1.bf16.msra.mxu0 %v1862
        %1866 = vmatprep.subr.bf16.mxu0 0
        %1867 = vmatpush1.bf16.msra.mxu0 0
        %1868 = vmatprep.subr.bf16.mxu0 0
        %1869 = vmatpush1.bf16.msra.mxu0 0
        %1870 = vmatprep.subr.bf16.mxu0 0
        %1871 = vmatpush1.bf16.msra.mxu0 0
        %1872 = vmatprep.subr.bf16.mxu0 0
        %1873 = vmatpush1.bf16.msra.mxu0 0
        %1874 = vmatprep.subr.bf16.mxu0 0
        %1875 = vmatpush1.bf16.msra.mxu0 0
        %1876 = vmatprep.subr.bf16.mxu0 0
        %1877 = vmatpush1.bf16.msra.mxu0 0
        %1878 = vmatprep.subr.bf16.mxu0 0
        %1879 = vmatpush1.bf16.msra.mxu0 0
        %1880 = vmatprep.subr.bf16.mxu0 0
        %1881 = vmatpush1.bf16.msra.mxu0 0
        %1882 = vmatprep.subr.bf16.mxu0 0
        %1883 = vmatpush1.bf16.msra.mxu0 0
        %1884 = vmatprep.subr.bf16.mxu0 0
        %1885 = vmatpush1.bf16.msra.mxu0 0
        %1886 = vmatprep.subr.bf16.mxu0 0
        %1887 = vmatpush1.bf16.msra.mxu0 0
        %1888 = vmatprep.subr.bf16.mxu0 0
        %1889 = vmatpush1.bf16.msra.mxu0 0
        %1890 = vmatprep.subr.bf16.mxu0 0
        %1891 = vmatpush1.bf16.msra.mxu0 0
        %1892 = vmatprep.subr.bf16.mxu0 0
        %1893 = vmatpush1.bf16.msra.mxu0 0
        %1894 = vmatprep.subr.bf16.mxu0 0
        %1895 = vmatpush1.bf16.msra.mxu0 0
        %1896 = vmatprep.mubr.bf16.mxu0 0
        %1897 = vmatmul.mubr.bf16.gmra.mrb[0].mxu0 %v1859
        %v1898 = vpop.f32.mrb[0].mxu0
        %v1899 = vadd.f32 0.0, %v1898
        %v1900 = vpop.f32.mrb[0].mxu0
        %v1901 = vpop.f32.mrb[0].mxu0
        %v1902 = vpop.f32.mrb[0].mxu0
        %1903 = vdwg.mxu0
        %1905 = vrot.lane.b32.xlu0 %v1807, 8
        %v1906 = vpop.permute.xlu0 %1905
        %1909 = vrot.lane.b32.xlu0 %v1853, 16
        %v1910 = vpop.permute.xlu0 %1909
        %1913 = vrot.lane.b32.xlu0 %v1899, 24
        %v1914 = vpop.permute.xlu0 %1913
        %v1916 = vsel %vm1474, %v1761, %v1906
        %vm1917 = vcmask 130048
        %v1918 = vsel %vm1917, %v1916, %v1910
        %vm1919 = vcmask 195584
        %v1920 = vsel %vm1919, %v1918, %v1914
        %v1921 = vpack.c.bf16 %v1920, %v1920
        %v1922 = vld [vmem:[#allocation10] sm:$0xf]
        %v1923 = vld [vmem:[#allocation10 + $0x4] sm:$0xf]
        %v1924 = vld [vmem:[#allocation10 + $0x8] sm:$0xf]
        %v1925 = vld [vmem:[#allocation10 + $0xc] sm:$0xf]
        %v1926 = vld [vmem:[#allocation16] sm:$0x1]
        %v1928 = vlaneseq
        %v1929 = vshrl.u32 %v1928, 7
        %v1930 = vsub.s32 0, %v1929
        %v1931 = vrot.slane %v1926, %v1930
        %v1937 = vunpack.c.l.b16 %v1922
        %v1938 = vunpack.c.l.b16 %v1923
        %v1939 = vunpack.c.l.b16 %v1924
        %v1940 = vunpack.c.l.b16 %v1925
        %v1941 = vpack.c.b16 %v1938, %v1937
        %v1942 = vpack.c.b16 %v1940, %v1939
        %v1946 = vsel %vm1262, %v1921, 0
        %1948 = vmatprep.subr.bf16.mxu0 0
        %1949 = vmatpush1.bf16.msra.mxu0 %v1941
        %1950 = vmatprep.subr.bf16.mxu0 0
        %1951 = vmatpush1.bf16.msra.mxu0 %v1942
        %1952 = vmatprep.subr.bf16.mxu0 0
        %1953 = vmatpush1.bf16.msra.mxu0 0
        %1954 = vmatprep.subr.bf16.mxu0 0
        %1955 = vmatpush1.bf16.msra.mxu0 0
        %1956 = vmatprep.subr.bf16.mxu0 0
        %1957 = vmatpush1.bf16.msra.mxu0 0
        %1958 = vmatprep.subr.bf16.mxu0 0
        %1959 = vmatpush1.bf16.msra.mxu0 0
        %1960 = vmatprep.subr.bf16.mxu0 0
        %1961 = vmatpush1.bf16.msra.mxu0 0
        %1962 = vmatprep.subr.bf16.mxu0 0
        %1963 = vmatpush1.bf16.msra.mxu0 0
        %1964 = vmatprep.subr.bf16.mxu0 0
        %1965 = vmatpush1.bf16.msra.mxu0 0
        %1966 = vmatprep.subr.bf16.mxu0 0
        %1967 = vmatpush1.bf16.msra.mxu0 0
        %1968 = vmatprep.subr.bf16.mxu0 0
        %1969 = vmatpush1.bf16.msra.mxu0 0
        %1970 = vmatprep.subr.bf16.mxu0 0
        %1971 = vmatpush1.bf16.msra.mxu0 0
        %1972 = vmatprep.subr.bf16.mxu0 0
        %1973 = vmatpush1.bf16.msra.mxu0 0
        %1974 = vmatprep.subr.bf16.mxu0 0
        %1975 = vmatpush1.bf16.msra.mxu0 0
        %1976 = vmatprep.subr.bf16.mxu0 0
        %1977 = vmatpush1.bf16.msra.mxu0 0
        %1978 = vmatprep.subr.bf16.mxu0 0
        %1979 = vmatpush1.bf16.msra.mxu0 0
        %1980 = vmatprep.mubr.bf16.mxu0 0
        %1981 = vmatmul.mubr.bf16.gmra.mrb[0].mxu0 %v1946
        %v1982 = vpop.f32.mrb[0].mxu0
        %v1983 = vadd.f32 %v1931, %v1982
        %v1984 = vpop.f32.mrb[0].mxu0
        %v1985 = vpop.f32.mrb[0].mxu0
        %v1986 = vpop.f32.mrb[0].mxu0
        %1987 = vdwg.mxu0
        %v1988 = vadd.f32 %v1234, %v1983
        %v1989 = vld [vmem:[%s49] sm:$0x1]
        %v1990 = vld [vmem:[%s51] sm:$0x1]
        %v1991 = vsel %vm1262, %v1988, 0.0
        %1992 = vadd.xlane.f32.xlu0 %v1991
        %v1993 = vpop.xlane.xlu0 %1992
        %v1994 = vrcp.pop 32.0
        %v1995 = vmul.f32 %v1993, %v1994
        %v1996 = vsub.f32 %v1988, %v1995
        %v1997 = vmul.f32 %v1996, %v1996
        %v1998 = vsel %vm1262, %v1997, 0.0
        %1999 = vadd.xlane.f32.xlu0 %v1998
        %v2000 = vpop.xlane.xlu0 %1999
        %v2001 = vmul.f32 %v2000, %v1994
        %v2002 = vadd.f32 %v2001, 1e-05
        %v2003 = vrsqrt.pop %v2002
        %v2004 = vmul.f32 %v1996, %v2003
        %v2006 = vlaneseq
        %v2007 = vshrl.u32 %v2006, 7
        %v2008 = vsub.s32 0, %v2007
        %v2009 = vrot.slane %v1989, %v2008
        %v2011 = vmul.f32 %v2004, %v2009
        %v2013 = vlaneseq
        %v2014 = vshrl.u32 %v2013, 7
        %v2015 = vsub.s32 0, %v2014
        %v2016 = vrot.slane %v1990, %v2015
        %v2018 = vadd.f32 %v2011, %v2016
        %v2019 = vpack.c.bf16 %v2018, %v2018
        %v2020 = vld [vmem:[%s1070] sm:$0xff]
        %v2021 = vld [vmem:[%s25] sm:$0xf]
        %v2022 = vld [vmem:[%s25 + $0x4] sm:$0xf]
        %v2023 = vld [vmem:[%s25 + $0x8] sm:$0xf]
        %v2024 = vld [vmem:[%s25 + $0xc] sm:$0xf]
        %v2025 = vld [vmem:[#allocation20] sm:$0x1]
        %v2027 = vlaneseq
        %v2028 = vshrl.u32 %v2027, 7
        %v2029 = vsub.s32 0, %v2028
        %v2030 = vrot.slane %v2025, %v2029
        %v2036 = vunpack.c.l.b16 %v2021
        %v2037 = vunpack.c.l.b16 %v2022
        %v2038 = vunpack.c.l.b16 %v2023
        %v2039 = vunpack.c.l.b16 %v2024
        %v2040 = vpack.c.b16 %v2037, %v2036
        %v2041 = vpack.c.b16 %v2039, %v2038
        %v2045 = vsel %vm1262, %v2019, 0
        %2047 = vmatprep.subr.bf16.mxu0 0
        %2048 = vmatpush1.bf16.msra.mxu0 %v2040
        %2049 = vmatprep.subr.bf16.mxu0 0
        %2050 = vmatpush1.bf16.msra.mxu0 %v2041
        %2051 = vmatprep.subr.bf16.mxu0 0
        %2052 = vmatpush1.bf16.msra.mxu0 0
        %2053 = vmatprep.subr.bf16.mxu0 0
        %2054 = vmatpush1.bf16.msra.mxu0 0
        %2055 = vmatprep.subr.bf16.mxu0 0
        %2056 = vmatpush1.bf16.msra.mxu0 0
        %2057 = vmatprep.subr.bf16.mxu0 0
        %2058 = vmatpush1.bf16.msra.mxu0 0
        %2059 = vmatprep.subr.bf16.mxu0 0
        %2060 = vmatpush1.bf16.msra.mxu0 0
        %2061 = vmatprep.subr.bf16.mxu0 0
        %2062 = vmatpush1.bf16.msra.mxu0 0
        %2063 = vmatprep.subr.bf16.mxu0 0
        %2064 = vmatpush1.bf16.msra.mxu0 0
        %2065 = vmatprep.subr.bf16.mxu0 0
        %2066 = vmatpush1.bf16.msra.mxu0 0
        %2067 = vmatprep.subr.bf16.mxu0 0
        %2068 = vmatpush1.bf16.msra.mxu0 0
        %2069 = vmatprep.subr.bf16.mxu0 0
        %2070 = vmatpush1.bf16.msra.mxu0 0
        %2071 = vmatprep.subr.bf16.mxu0 0
        %2072 = vmatpush1.bf16.msra.mxu0 0
        %2073 = vmatprep.subr.bf16.mxu0 0
        %2074 = vmatpush1.bf16.msra.mxu0 0
        %2075 = vmatprep.subr.bf16.mxu0 0
        %2076 = vmatpush1.bf16.msra.mxu0 0
        %2077 = vmatprep.subr.bf16.mxu0 0
        %2078 = vmatpush1.bf16.msra.mxu0 0
        %2079 = vmatprep.mubr.bf16.mxu0 0
        %2080 = vmatmul.mubr.bf16.gmra.mrb[0].mxu0 %v2045
        %v2081 = vpop.f32.mrb[0].mxu0
        %v2082 = vadd.f32 %v2030, %v2081
        %v2083 = vpop.f32.mrb[0].mxu0
        %v2084 = vpop.f32.mrb[0].mxu0
        %v2085 = vpop.f32.mrb[0].mxu0
        %2086 = vdwg.mxu0
        %v2087 = vld [vmem:[%s27] sm:$0xf]
        %v2088 = vld [vmem:[%s27 + $0x4] sm:$0xf]
        %v2089 = vld [vmem:[%s27 + $0x8] sm:$0xf]
        %v2090 = vld [vmem:[%s27 + $0xc] sm:$0xf]
        %v2091 = vld [vmem:[#allocation22] sm:$0x1]
        %v2093 = vlaneseq
        %v2094 = vshrl.u32 %v2093, 7
        %v2095 = vsub.s32 0, %v2094
        %v2096 = vrot.slane %v2091, %v2095
        %v2102 = vunpack.c.l.b16 %v2087
        %v2103 = vunpack.c.l.b16 %v2088
        %v2104 = vunpack.c.l.b16 %v2089
        %v2105 = vunpack.c.l.b16 %v2090
        %v2106 = vpack.c.b16 %v2103, %v2102
        %v2107 = vpack.c.b16 %v2105, %v2104
        %v2111 = vsel %vm1262, %v1236, 0
        %2113 = vmatprep.subr.bf16.mxu0 0
        %2114 = vmatpush1.bf16.msra.mxu0 %v2106
        %2115 = vmatprep.subr.bf16.mxu0 0
        %2116 = vmatpush1.bf16.msra.mxu0 %v2107
        %2117 = vmatprep.subr.bf16.mxu0 0
        %2118 = vmatpush1.bf16.msra.mxu0 0
        %2119 = vmatprep.subr.bf16.mxu0 0
        %2120 = vmatpush1.bf16.msra.mxu0 0
        %2121 = vmatprep.subr.bf16.mxu0 0
        %2122 = vmatpush1.bf16.msra.mxu0 0
        %2123 = vmatprep.subr.bf16.mxu0 0
        %2124 = vmatpush1.bf16.msra.mxu0 0
        %2125 = vmatprep.subr.bf16.mxu0 0
        %2126 = vmatpush1.bf16.msra.mxu0 0
        %2127 = vmatprep.subr.bf16.mxu0 0
        %2128 = vmatpush1.bf16.msra.mxu0 0
        %2129 = vmatprep.subr.bf16.mxu0 0
        %2130 = vmatpush1.bf16.msra.mxu0 0
        %2131 = vmatprep.subr.bf16.mxu0 0
        %2132 = vmatpush1.bf16.msra.mxu0 0
        %2133 = vmatprep.subr.bf16.mxu0 0
        %2134 = vmatpush1.bf16.msra.mxu0 0
        %2135 = vmatprep.subr.bf16.mxu0 0
        %2136 = vmatpush1.bf16.msra.mxu0 0
        %2137 = vmatprep.subr.bf16.mxu0 0
        %2138 = vmatpush1.bf16.msra.mxu0 0
        %2139 = vmatprep.subr.bf16.mxu0 0
        %2140 = vmatpush1.bf16.msra.mxu0 0
        %2141 = vmatprep.subr.bf16.mxu0 0
        %2142 = vmatpush1.bf16.msra.mxu0 0
        %2143 = vmatprep.subr.bf16.mxu0 0
        %2144 = vmatpush1.bf16.msra.mxu0 0
        %2145 = vmatprep.mubr.bf16.mxu0 0
        %2146 = vmatmul.mubr.bf16.gmra.mrb[0].mxu0 %v2111
        %v2147 = vpop.f32.mrb[0].mxu0
        %v2148 = vadd.f32 %v2096, %v2147
        %v2149 = vpop.f32.mrb[0].mxu0
        %v2150 = vpop.f32.mrb[0].mxu0
        %v2151 = vpop.f32.mrb[0].mxu0
        %2152 = vdwg.mxu0
        %v2153 = vld [vmem:[#allocation17] sm:$0xf]
        %v2154 = vld [vmem:[#allocation17 + $0x4] sm:$0xf]
        %v2155 = vld [vmem:[#allocation17 + $0x8] sm:$0xf]
        %v2156 = vld [vmem:[#allocation17 + $0xc] sm:$0xf]
        %v2157 = vld [vmem:[%s37] sm:$0x1]
        %v2159 = vlaneseq
        %v2160 = vshrl.u32 %v2159, 7
        %v2161 = vsub.s32 0, %v2160
        %v2162 = vrot.slane %v2157, %v2161
        %v2168 = vunpack.c.l.b16 %v2153
        %v2169 = vunpack.c.l.b16 %v2154
        %v2170 = vunpack.c.l.b16 %v2155
        %v2171 = vunpack.c.l.b16 %v2156
        %v2172 = vpack.c.b16 %v2169, %v2168
        %v2173 = vpack.c.b16 %v2171, %v2170
        %2176 = vmatprep.subr.bf16.mxu0 0
        %2177 = vmatpush1.bf16.msra.mxu0 %v2172
        %2178 = vmatprep.subr.bf16.mxu0 0
        %2179 = vmatpush1.bf16.msra.mxu0 %v2173
        %2180 = vmatprep.subr.bf16.mxu0 0
        %2181 = vmatpush1.bf16.msra.mxu0 0
        %2182 = vmatprep.subr.bf16.mxu0 0
        %2183 = vmatpush1.bf16.msra.mxu0 0
        %2184 = vmatprep.subr.bf16.mxu0 0
        %2185 = vmatpush1.bf16.msra.mxu0 0
        %2186 = vmatprep.subr.bf16.mxu0 0
        %2187 = vmatpush1.bf16.msra.mxu0 0
        %2188 = vmatprep.subr.bf16.mxu0 0
        %2189 = vmatpush1.bf16.msra.mxu0 0
        %2190 = vmatprep.subr.bf16.mxu0 0
        %2191 = vmatpush1.bf16.msra.mxu0 0
        %2192 = vmatprep.subr.bf16.mxu0 0
        %2193 = vmatpush1.bf16.msra.mxu0 0
        %2194 = vmatprep.subr.bf16.mxu0 0
        %2195 = vmatpush1.bf16.msra.mxu0 0
        %2196 = vmatprep.subr.bf16.mxu0 0
        %2197 = vmatpush1.bf16.msra.mxu0 0
        %2198 = vmatprep.subr.bf16.mxu0 0
        %2199 = vmatpush1.bf16.msra.mxu0 0
        %2200 = vmatprep.subr.bf16.mxu0 0
        %2201 = vmatpush1.bf16.msra.mxu0 0
        %2202 = vmatprep.subr.bf16.mxu0 0
        %2203 = vmatpush1.bf16.msra.mxu0 0
        %2204 = vmatprep.subr.bf16.mxu0 0
        %2205 = vmatpush1.bf16.msra.mxu0 0
        %2206 = vmatprep.subr.bf16.mxu0 0
        %2207 = vmatpush1.bf16.msra.mxu0 0
        %2208 = vmatprep.mubr.bf16.mxu0 0
        %2209 = vmatmul.mubr.bf16.gmra.mrb[0].mxu0 %v2111
        %v2210 = vpop.f32.mrb[0].mxu0
        %v2211 = vadd.f32 %v2162, %v2210
        %v2212 = vpop.f32.mrb[0].mxu0
        %v2213 = vpop.f32.mrb[0].mxu0
        %v2214 = vpop.f32.mrb[0].mxu0
        %2215 = vdwg.mxu0
        %2217 = vrot.lane.b32.xlu0 %v2082, 120
        %v2218 = vpop.permute.xlu0 %2217
        %2220 = vrot.lane.b32.xlu0 %v2082, 112
        %v2221 = vpop.permute.xlu0 %2220
        %2223 = vrot.lane.b32.xlu0 %v2082, 104
        %v2224 = vpop.permute.xlu0 %2223
        %v2226 = vpack.c.bf16 %v2082, %v2082
        %v2227 = vpack.c.bf16 %v2218, %v2218
        %v2228 = vpack.c.bf16 %v2221, %v2221
        %v2229 = vpack.c.bf16 %v2224, %v2224
        %2231 = vrot.lane.b32.xlu0 %v2148, 120
        %v2232 = vpop.permute.xlu0 %2231
        %2234 = vrot.lane.b32.xlu0 %v2148, 112
        %v2235 = vpop.permute.xlu0 %2234
        %2237 = vrot.lane.b32.xlu0 %v2148, 104
        %v2238 = vpop.permute.xlu0 %2237
        %v2240 = vpack.c.bf16 %v2148, %v2148
        %v2241 = vpack.c.bf16 %v2232, %v2232
        %v2242 = vpack.c.bf16 %v2235, %v2235
        %v2243 = vpack.c.bf16 %v2238, %v2238
        %2245 = vrot.lane.b32.xlu0 %v2211, 120
        %v2246 = vpop.permute.xlu0 %2245
        %2248 = vrot.lane.b32.xlu0 %v2211, 112
        %v2249 = vpop.permute.xlu0 %2248
        %2251 = vrot.lane.b32.xlu0 %v2211, 104
        %v2252 = vpop.permute.xlu0 %2251
        %v2254 = vpack.c.bf16 %v2211, %v2211
        %v2255 = vpack.c.bf16 %v2246, %v2246
        %v2256 = vpack.c.bf16 %v2249, %v2249
        %v2257 = vpack.c.bf16 %v2252, %v2252
        %v2259 = vsel %vm1474, %v2226, 0
        %v2262 = vsel %vm1474, %v2240, 0
        %2264 = vmatprep.subr.bf16.mxu0 0
        %2265 = vmatpush1.bf16.xpose.msra.mxu0 %v2262
        %2266 = vmatprep.subr.bf16.mxu0 0
        %2267 = vmatpush1.bf16.xpose.msra.mxu0 0
        %2268 = vmatprep.subr.bf16.mxu0 0
        %2269 = vmatpush1.bf16.xpose.msra.mxu0 0
        %2270 = vmatprep.subr.bf16.mxu0 0
        %2271 = vmatpush1.bf16.xpose.msra.mxu0 0
        %2272 = vmatprep.subr.bf16.mxu0 0
        %2273 = vmatpush1.bf16.xpose.msra.mxu0 0
        %2274 = vmatprep.subr.bf16.mxu0 0
        %2275 = vmatpush1.bf16.xpose.msra.mxu0 0
        %2276 = vmatprep.subr.bf16.mxu0 0
        %2277 = vmatpush1.bf16.xpose.msra.mxu0 0
        %2278 = vmatprep.subr.bf16.mxu0 0
        %2279 = vmatpush1.bf16.xpose.msra.mxu0 0
        %2280 = vmatprep.subr.bf16.mxu0 0
        %2281 = vmatpush1.bf16.xpose.msra.mxu0 0
        %2282 = vmatprep.subr.bf16.mxu0 0
        %2283 = vmatpush1.bf16.xpose.msra.mxu0 0
        %2284 = vmatprep.subr.bf16.mxu0 0
        %2285 = vmatpush1.bf16.xpose.msra.mxu0 0
        %2286 = vmatprep.subr.bf16.mxu0 0
        %2287 = vmatpush1.bf16.xpose.msra.mxu0 0
        %2288 = vmatprep.subr.bf16.mxu0 0
        %2289 = vmatpush1.bf16.xpose.msra.mxu0 0
        %2290 = vmatprep.subr.bf16.mxu0 0
        %2291 = vmatpush1.bf16.xpose.msra.mxu0 0
        %2292 = vmatprep.subr.bf16.mxu0 0
        %2293 = vmatpush1.bf16.xpose.msra.mxu0 0
        %2294 = vmatprep.subr.bf16.mxu0 0
        %2295 = vmatpush1.bf16.xpose.msra.mxu0 0
        %2296 = vmatprep.mubr.bf16.mxu0 0
        %2297 = vmatmul.mubr.bf16.gmra.mrb[0].mxu0 %v2259
        %v2298 = vpop.f32.mrb[0].mxu0
        %v2299 = vadd.f32 0.0, %v2298
        %v2300 = vpop.f32.mrb[0].mxu0
        %v2301 = vpop.f32.mrb[0].mxu0
        %v2302 = vpop.f32.mrb[0].mxu0
        %2303 = vdwg.mxu0
        %v2305 = vsel %vm1474, %v2227, 0
        %v2308 = vsel %vm1474, %v2241, 0
        %2310 = vmatprep.subr.bf16.mxu0 0
        %2311 = vmatpush1.bf16.xpose.msra.mxu0 %v2308
        %2312 = vmatprep.subr.bf16.mxu0 0
        %2313 = vmatpush1.bf16.xpose.msra.mxu0 0
        %2314 = vmatprep.subr.bf16.mxu0 0
        %2315 = vmatpush1.bf16.xpose.msra.mxu0 0
        %2316 = vmatprep.subr.bf16.mxu0 0
        %2317 = vmatpush1.bf16.xpose.msra.mxu0 0
        %2318 = vmatprep.subr.bf16.mxu0 0
        %2319 = vmatpush1.bf16.xpose.msra.mxu0 0
        %2320 = vmatprep.subr.bf16.mxu0 0
        %2321 = vmatpush1.bf16.xpose.msra.mxu0 0
        %2322 = vmatprep.subr.bf16.mxu0 0
        %2323 = vmatpush1.bf16.xpose.msra.mxu0 0
        %2324 = vmatprep.subr.bf16.mxu0 0
        %2325 = vmatpush1.bf16.xpose.msra.mxu0 0
        %2326 = vmatprep.subr.bf16.mxu0 0
        %2327 = vmatpush1.bf16.xpose.msra.mxu0 0
        %2328 = vmatprep.subr.bf16.mxu0 0
        %2329 = vmatpush1.bf16.xpose.msra.mxu0 0
        %2330 = vmatprep.subr.bf16.mxu0 0
        %2331 = vmatpush1.bf16.xpose.msra.mxu0 0
        %2332 = vmatprep.subr.bf16.mxu0 0
        %2333 = vmatpush1.bf16.xpose.msra.mxu0 0
        %2334 = vmatprep.subr.bf16.mxu0 0
        %2335 = vmatpush1.bf16.xpose.msra.mxu0 0
        %2336 = vmatprep.subr.bf16.mxu0 0
        %2337 = vmatpush1.bf16.xpose.msra.mxu0 0
        %2338 = vmatprep.subr.bf16.mxu0 0
        %2339 = vmatpush1.bf16.xpose.msra.mxu0 0
        %2340 = vmatprep.subr.bf16.mxu0 0
        %2341 = vmatpush1.bf16.xpose.msra.mxu0 0
        %2342 = vmatprep.mubr.bf16.mxu0 0
        %2343 = vmatmul.mubr.bf16.gmra.mrb[0].mxu0 %v2305
        %v2344 = vpop.f32.mrb[0].mxu0
        %v2345 = vadd.f32 0.0, %v2344
        %v2346 = vpop.f32.mrb[0].mxu0
        %v2347 = vpop.f32.mrb[0].mxu0
        %v2348 = vpop.f32.mrb[0].mxu0
        %2349 = vdwg.mxu0
        %v2351 = vsel %vm1474, %v2228, 0
        %v2354 = vsel %vm1474, %v2242, 0
        %2356 = vmatprep.subr.bf16.mxu0 0
        %2357 = vmatpush1.bf16.xpose.msra.mxu0 %v2354
        %2358 = vmatprep.subr.bf16.mxu0 0
        %2359 = vmatpush1.bf16.xpose.msra.mxu0 0
        %2360 = vmatprep.subr.bf16.mxu0 0
        %2361 = vmatpush1.bf16.xpose.msra.mxu0 0
        %2362 = vmatprep.subr.bf16.mxu0 0
        %2363 = vmatpush1.bf16.xpose.msra.mxu0 0
        %2364 = vmatprep.subr.bf16.mxu0 0
        %2365 = vmatpush1.bf16.xpose.msra.mxu0 0
        %2366 = vmatprep.subr.bf16.mxu0 0
        %2367 = vmatpush1.bf16.xpose.msra.mxu0 0
        %2368 = vmatprep.subr.bf16.mxu0 0
        %2369 = vmatpush1.bf16.xpose.msra.mxu0 0
        %2370 = vmatprep.subr.bf16.mxu0 0
        %2371 = vmatpush1.bf16.xpose.msra.mxu0 0
        %2372 = vmatprep.subr.bf16.mxu0 0
        %2373 = vmatpush1.bf16.xpose.msra.mxu0 0
        %2374 = vmatprep.subr.bf16.mxu0 0
        %2375 = vmatpush1.bf16.xpose.msra.mxu0 0
        %2376 = vmatprep.subr.bf16.mxu0 0
        %2377 = vmatpush1.bf16.xpose.msra.mxu0 0
        %2378 = vmatprep.subr.bf16.mxu0 0
        %2379 = vmatpush1.bf16.xpose.msra.mxu0 0
        %2380 = vmatprep.subr.bf16.mxu0 0
        %2381 = vmatpush1.bf16.xpose.msra.mxu0 0
        %2382 = vmatprep.subr.bf16.mxu0 0
        %2383 = vmatpush1.bf16.xpose.msra.mxu0 0
        %2384 = vmatprep.subr.bf16.mxu0 0
        %2385 = vmatpush1.bf16.xpose.msra.mxu0 0
        %2386 = vmatprep.subr.bf16.mxu0 0
        %2387 = vmatpush1.bf16.xpose.msra.mxu0 0
        %2388 = vmatprep.mubr.bf16.mxu0 0
        %2389 = vmatmul.mubr.bf16.gmra.mrb[0].mxu0 %v2351
        %v2390 = vpop.f32.mrb[0].mxu0
        %v2391 = vadd.f32 0.0, %v2390
        %v2392 = vpop.f32.mrb[0].mxu0
        %v2393 = vpop.f32.mrb[0].mxu0
        %v2394 = vpop.f32.mrb[0].mxu0
        %2395 = vdwg.mxu0
        %v2397 = vsel %vm1474, %v2229, 0
        %v2400 = vsel %vm1474, %v2243, 0
        %2402 = vmatprep.subr.bf16.mxu0 0
        %2403 = vmatpush1.bf16.xpose.msra.mxu0 %v2400
        %2404 = vmatprep.subr.bf16.mxu0 0
        %2405 = vmatpush1.bf16.xpose.msra.mxu0 0
        %2406 = vmatprep.subr.bf16.mxu0 0
        %2407 = vmatpush1.bf16.xpose.msra.mxu0 0
        %2408 = vmatprep.subr.bf16.mxu0 0
        %2409 = vmatpush1.bf16.xpose.msra.mxu0 0
        %2410 = vmatprep.subr.bf16.mxu0 0
        %2411 = vmatpush1.bf16.xpose.msra.mxu0 0
        %2412 = vmatprep.subr.bf16.mxu0 0
        %2413 = vmatpush1.bf16.xpose.msra.mxu0 0
        %2414 = vmatprep.subr.bf16.mxu0 0
        %2415 = vmatpush1.bf16.xpose.msra.mxu0 0
        %2416 = vmatprep.subr.bf16.mxu0 0
        %2417 = vmatpush1.bf16.xpose.msra.mxu0 0
        %2418 = vmatprep.subr.bf16.mxu0 0
        %2419 = vmatpush1.bf16.xpose.msra.mxu0 0
        %2420 = vmatprep.subr.bf16.mxu0 0
        %2421 = vmatpush1.bf16.xpose.msra.mxu0 0
        %2422 = vmatprep.subr.bf16.mxu0 0
        %2423 = vmatpush1.bf16.xpose.msra.mxu0 0
        %2424 = vmatprep.subr.bf16.mxu0 0
        %2425 = vmatpush1.bf16.xpose.msra.mxu0 0
        %2426 = vmatprep.subr.bf16.mxu0 0
        %2427 = vmatpush1.bf16.xpose.msra.mxu0 0
        %2428 = vmatprep.subr.bf16.mxu0 0
        %2429 = vmatpush1.bf16.xpose.msra.mxu0 0
        %2430 = vmatprep.subr.bf16.mxu0 0
        %2431 = vmatpush1.bf16.xpose.msra.mxu0 0
        %2432 = vmatprep.subr.bf16.mxu0 0
        %2433 = vmatpush1.bf16.xpose.msra.mxu0 0
        %2434 = vmatprep.mubr.bf16.mxu0 0
        %2435 = vmatmul.mubr.bf16.gmra.mrb[0].mxu0 %v2397
        %v2436 = vpop.f32.mrb[0].mxu0
        %v2437 = vadd.f32 0.0, %v2436
        %v2438 = vpop.f32.mrb[0].mxu0
        %v2439 = vpop.f32.mrb[0].mxu0
        %v2440 = vpop.f32.mrb[0].mxu0
        %2441 = vdwg.mxu0
        %vm2442 = vcmp.gt.f32.partialorder %v2020, 0.5
        %v2443 = vsel %vm2442, 1, 0
        %vm2444 = vcmp.eq.s32.totalorder %v2443, 1
        %v2445 = vsel %vm2444, -1e+10, %v2299
        %v2446 = vsel %vm2444, -1e+10, %v2345
        %v2447 = vsel %vm2444, -1e+10, %v2391
        %v2448 = vsel %vm2444, -1e+10, %v2437
        %v2449 = vsel %vm1474, %v2445, -inf
        %2450 = vmax.xlane.f32.xlu0 %v2449
        %v2451 = vpop.xlane.xlu0 %2450
        %v2452 = vsel %vm1474, %v2446, -inf
        %2453 = vmax.xlane.f32.xlu0 %v2452
        %v2454 = vpop.xlane.xlu0 %2453
        %v2455 = vsel %vm1474, %v2447, -inf
        %2456 = vmax.xlane.f32.xlu0 %v2455
        %v2457 = vpop.xlane.xlu0 %2456
        %v2458 = vsel %vm1474, %v2448, -inf
        %2459 = vmax.xlane.f32.xlu0 %v2458
        %v2460 = vpop.xlane.xlu0 %2459
        %v2461 = vsub.f32 %v2445, %v2451
        %v2462 = vsub.f32 %v2446, %v2454
        %v2463 = vsub.f32 %v2447, %v2457
        %v2464 = vsub.f32 %v2448, %v2460
        %v2465 = vmul.f32 %v2461, 1.442695
        %v2466 = vpow.pop %v2465
        %v2467 = vmul.f32 %v2462, 1.442695
        %v2468 = vpow.pop %v2467
        %v2469 = vmul.f32 %v2463, 1.442695
        %v2470 = vpow.pop %v2469
        %v2471 = vmul.f32 %v2464, 1.442695
        %v2472 = vpow.pop %v2471
        %v2473 = vsel %vm1474, %v2466, 0.0
        %2474 = vadd.xlane.f32.xlu0 %v2473
        %v2475 = vpop.xlane.xlu0 %2474
        %v2476 = vsel %vm1474, %v2468, 0.0
        %2477 = vadd.xlane.f32.xlu0 %v2476
        %v2478 = vpop.xlane.xlu0 %2477
        %v2479 = vsel %vm1474, %v2470, 0.0
        %2480 = vadd.xlane.f32.xlu0 %v2479
        %v2481 = vpop.xlane.xlu0 %2480
        %v2482 = vsel %vm1474, %v2472, 0.0
        %2483 = vadd.xlane.f32.xlu0 %v2482
        %v2484 = vpop.xlane.xlu0 %2483
        %v2485 = vrcp.pop %v2475
        %v2486 = vmul.f32 %v2466, %v2485
        %v2487 = vrcp.pop %v2478
        %v2488 = vmul.f32 %v2468, %v2487
        %v2489 = vrcp.pop %v2481
        %v2490 = vmul.f32 %v2470, %v2489
        %v2491 = vrcp.pop %v2484
        %v2492 = vmul.f32 %v2472, %v2491
        %v2493 = vpack.c.bf16 %v2486, %v2486
        %v2494 = vpack.c.bf16 %v2488, %v2488
        %v2495 = vpack.c.bf16 %v2490, %v2490
        %v2496 = vpack.c.bf16 %v2492, %v2492
        %2497 = vst.msk [vmem:[%s1220] sm:$0xf] %vm1714, %v2493
        %2498 = vst.msk [vmem:[%s1220 + $0x4] sm:$0xf] %vm1714, %v2494
        %2499 = vst.msk [vmem:[%s1220 + $0x8] sm:$0xf] %vm1714, %v2495
        %2500 = vst.msk [vmem:[%s1220 + $0xc] sm:$0xf] %vm1714, %v2496
        %v2502 = vsel %vm1474, %v2493, 0
        %v2505 = vsel %vm1722, %v2254, 0
        %2507 = vmatprep.subr.bf16.mxu0 0
        %2508 = vmatpush1.bf16.msra.mxu0 %v2505
        %2509 = vmatprep.subr.bf16.mxu0 0
        %2510 = vmatpush1.bf16.msra.mxu0 0
        %2511 = vmatprep.subr.bf16.mxu0 0
        %2512 = vmatpush1.bf16.msra.mxu0 0
        %2513 = vmatprep.subr.bf16.mxu0 0
        %2514 = vmatpush1.bf16.msra.mxu0 0
        %2515 = vmatprep.subr.bf16.mxu0 0
        %2516 = vmatpush1.bf16.msra.mxu0 0
        %2517 = vmatprep.subr.bf16.mxu0 0
        %2518 = vmatpush1.bf16.msra.mxu0 0
        %2519 = vmatprep.subr.bf16.mxu0 0
        %2520 = vmatpush1.bf16.msra.mxu0 0
        %2521 = vmatprep.subr.bf16.mxu0 0
        %2522 = vmatpush1.bf16.msra.mxu0 0
        %2523 = vmatprep.subr.bf16.mxu0 0
        %2524 = vmatpush1.bf16.msra.mxu0 0
        %2525 = vmatprep.subr.bf16.mxu0 0
        %2526 = vmatpush1.bf16.msra.mxu0 0
        %2527 = vmatprep.subr.bf16.mxu0 0
        %2528 = vmatpush1.bf16.msra.mxu0 0
        %2529 = vmatprep.subr.bf16.mxu0 0
        %2530 = vmatpush1.bf16.msra.mxu0 0
        %2531 = vmatprep.subr.bf16.mxu0 0
        %2532 = vmatpush1.bf16.msra.mxu0 0
        %2533 = vmatprep.subr.bf16.mxu0 0
        %2534 = vmatpush1.bf16.msra.mxu0 0
        %2535 = vmatprep.subr.bf16.mxu0 0
        %2536 = vmatpush1.bf16.msra.mxu0 0
        %2537 = vmatprep.subr.bf16.mxu0 0
        %2538 = vmatpush1.bf16.msra.mxu0 0
        %2539 = vmatprep.mubr.bf16.mxu0 0
        %2540 = vmatmul.mubr.bf16.gmra.mrb[0].mxu0 %v2502
        %v2541 = vpop.f32.mrb[0].mxu0
        %v2542 = vadd.f32 0.0, %v2541
        %v2543 = vpop.f32.mrb[0].mxu0
        %v2544 = vpop.f32.mrb[0].mxu0
        %v2545 = vpop.f32.mrb[0].mxu0
        %2546 = vdwg.mxu0
        %v2548 = vsel %vm1474, %v2494, 0
        %v2551 = vsel %vm1722, %v2255, 0
        %2553 = vmatprep.subr.bf16.mxu0 0
        %2554 = vmatpush1.bf16.msra.mxu0 %v2551
        %2555 = vmatprep.subr.bf16.mxu0 0
        %2556 = vmatpush1.bf16.msra.mxu0 0
        %2557 = vmatprep.subr.bf16.mxu0 0
        %2558 = vmatpush1.bf16.msra.mxu0 0
        %2559 = vmatprep.subr.bf16.mxu0 0
        %2560 = vmatpush1.bf16.msra.mxu0 0
        %2561 = vmatprep.subr.bf16.mxu0 0
        %2562 = vmatpush1.bf16.msra.mxu0 0
        %2563 = vmatprep.subr.bf16.mxu0 0
        %2564 = vmatpush1.bf16.msra.mxu0 0
        %2565 = vmatprep.subr.bf16.mxu0 0
        %2566 = vmatpush1.bf16.msra.mxu0 0
        %2567 = vmatprep.subr.bf16.mxu0 0
        %2568 = vmatpush1.bf16.msra.mxu0 0
        %2569 = vmatprep.subr.bf16.mxu0 0
        %2570 = vmatpush1.bf16.msra.mxu0 0
        %2571 = vmatprep.subr.bf16.mxu0 0
        %2572 = vmatpush1.bf16.msra.mxu0 0
        %2573 = vmatprep.subr.bf16.mxu0 0
        %2574 = vmatpush1.bf16.msra.mxu0 0
        %2575 = vmatprep.subr.bf16.mxu0 0
        %2576 = vmatpush1.bf16.msra.mxu0 0
        %2577 = vmatprep.subr.bf16.mxu0 0
        %2578 = vmatpush1.bf16.msra.mxu0 0
        %2579 = vmatprep.subr.bf16.mxu0 0
        %2580 = vmatpush1.bf16.msra.mxu0 0
        %2581 = vmatprep.subr.bf16.mxu0 0
        %2582 = vmatpush1.bf16.msra.mxu0 0
        %2583 = vmatprep.subr.bf16.mxu0 0
        %2584 = vmatpush1.bf16.msra.mxu0 0
        %2585 = vmatprep.mubr.bf16.mxu0 0
        %2586 = vmatmul.mubr.bf16.gmra.mrb[0].mxu0 %v2548
        %v2587 = vpop.f32.mrb[0].mxu0
        %v2588 = vadd.f32 0.0, %v2587
        %v2589 = vpop.f32.mrb[0].mxu0
        %v2590 = vpop.f32.mrb[0].mxu0
        %v2591 = vpop.f32.mrb[0].mxu0
        %2592 = vdwg.mxu0
        %v2594 = vsel %vm1474, %v2495, 0
        %v2597 = vsel %vm1722, %v2256, 0
        %2599 = vmatprep.subr.bf16.mxu0 0
        %2600 = vmatpush1.bf16.msra.mxu0 %v2597
        %2601 = vmatprep.subr.bf16.mxu0 0
        %2602 = vmatpush1.bf16.msra.mxu0 0
        %2603 = vmatprep.subr.bf16.mxu0 0
        %2604 = vmatpush1.bf16.msra.mxu0 0
        %2605 = vmatprep.subr.bf16.mxu0 0
        %2606 = vmatpush1.bf16.msra.mxu0 0
        %2607 = vmatprep.subr.bf16.mxu0 0
        %2608 = vmatpush1.bf16.msra.mxu0 0
        %2609 = vmatprep.subr.bf16.mxu0 0
        %2610 = vmatpush1.bf16.msra.mxu0 0
        %2611 = vmatprep.subr.bf16.mxu0 0
        %2612 = vmatpush1.bf16.msra.mxu0 0
        %2613 = vmatprep.subr.bf16.mxu0 0
        %2614 = vmatpush1.bf16.msra.mxu0 0
        %2615 = vmatprep.subr.bf16.mxu0 0
        %2616 = vmatpush1.bf16.msra.mxu0 0
        %2617 = vmatprep.subr.bf16.mxu0 0
        %2618 = vmatpush1.bf16.msra.mxu0 0
        %2619 = vmatprep.subr.bf16.mxu0 0
        %2620 = vmatpush1.bf16.msra.mxu0 0
        %2621 = vmatprep.subr.bf16.mxu0 0
        %2622 = vmatpush1.bf16.msra.mxu0 0
        %2623 = vmatprep.subr.bf16.mxu0 0
        %2624 = vmatpush1.bf16.msra.mxu0 0
        %2625 = vmatprep.subr.bf16.mxu0 0
        %2626 = vmatpush1.bf16.msra.mxu0 0
        %2627 = vmatprep.subr.bf16.mxu0 0
        %2628 = vmatpush1.bf16.msra.mxu0 0
        %2629 = vmatprep.subr.bf16.mxu0 0
        %2630 = vmatpush1.bf16.msra.mxu0 0
        %2631 = vmatprep.mubr.bf16.mxu0 0
        %2632 = vmatmul.mubr.bf16.gmra.mrb[0].mxu0 %v2594
        %v2633 = vpop.f32.mrb[0].mxu0
        %v2634 = vadd.f32 0.0, %v2633
        %v2635 = vpop.f32.mrb[0].mxu0
        %v2636 = vpop.f32.mrb[0].mxu0
        %v2637 = vpop.f32.mrb[0].mxu0
        %2638 = vdwg.mxu0
        %v2640 = vsel %vm1474, %v2496, 0
        %v2643 = vsel %vm1722, %v2257, 0
        %2645 = vmatprep.subr.bf16.mxu0 0
        %2646 = vmatpush1.bf16.msra.mxu0 %v2643
        %2647 = vmatprep.subr.bf16.mxu0 0
        %2648 = vmatpush1.bf16.msra.mxu0 0
        %2649 = vmatprep.subr.bf16.mxu0 0
        %2650 = vmatpush1.bf16.msra.mxu0 0
        %2651 = vmatprep.subr.bf16.mxu0 0
        %2652 = vmatpush1.bf16.msra.mxu0 0
        %2653 = vmatprep.subr.bf16.mxu0 0
        %2654 = vmatpush1.bf16.msra.mxu0 0
        %2655 = vmatprep.subr.bf16.mxu0 0
        %2656 = vmatpush1.bf16.msra.mxu0 0
        %2657 = vmatprep.subr.bf16.mxu0 0
        %2658 = vmatpush1.bf16.msra.mxu0 0
        %2659 = vmatprep.subr.bf16.mxu0 0
        %2660 = vmatpush1.bf16.msra.mxu0 0
        %2661 = vmatprep.subr.bf16.mxu0 0
        %2662 = vmatpush1.bf16.msra.mxu0 0
        %2663 = vmatprep.subr.bf16.mxu0 0
        %2664 = vmatpush1.bf16.msra.mxu0 0
        %2665 = vmatprep.subr.bf16.mxu0 0
        %2666 = vmatpush1.bf16.msra.mxu0 0
        %2667 = vmatprep.subr.bf16.mxu0 0
        %2668 = vmatpush1.bf16.msra.mxu0 0
        %2669 = vmatprep.subr.bf16.mxu0 0
        %2670 = vmatpush1.bf16.msra.mxu0 0
        %2671 = vmatprep.subr.bf16.mxu0 0
        %2672 = vmatpush1.bf16.msra.mxu0 0
        %2673 = vmatprep.subr.bf16.mxu0 0
        %2674 = vmatpush1.bf16.msra.mxu0 0
        %2675 = vmatprep.subr.bf16.mxu0 0
        %2676 = vmatpush1.bf16.msra.mxu0 0
        %2677 = vmatprep.mubr.bf16.mxu0 0
        %2678 = vmatmul.mubr.bf16.gmra.mrb[0].mxu0 %v2640
        %v2679 = vpop.f32.mrb[0].mxu0
        %v2680 = vadd.f32 0.0, %v2679
        %v2681 = vpop.f32.mrb[0].mxu0
        %v2682 = vpop.f32.mrb[0].mxu0
        %v2683 = vpop.f32.mrb[0].mxu0
        %2684 = vdwg.mxu0
        %2686 = vrot.lane.b32.xlu0 %v2588, 8
        %v2687 = vpop.permute.xlu0 %2686
        %2690 = vrot.lane.b32.xlu0 %v2634, 16
        %v2691 = vpop.permute.xlu0 %2690
        %2694 = vrot.lane.b32.xlu0 %v2680, 24
        %v2695 = vpop.permute.xlu0 %2694
        %v2697 = vsel %vm1474, %v2542, %v2687
        %v2698 = vsel %vm1917, %v2697, %v2691
        %v2699 = vsel %vm1919, %v2698, %v2695
        %v2700 = vpack.c.bf16 %v2699, %v2699
        %v2701 = vld [vmem:[#allocation19] sm:$0xf]
        %v2702 = vld [vmem:[#allocation19 + $0x4] sm:$0xf]
        %v2703 = vld [vmem:[#allocation19 + $0x8] sm:$0xf]
        %v2704 = vld [vmem:[#allocation19 + $0xc] sm:$0xf]
        %v2705 = vld [vmem:[%s39] sm:$0x1]
        %v2707 = vlaneseq
        %v2708 = vshrl.u32 %v2707, 7
        %v2709 = vsub.s32 0, %v2708
        %v2710 = vrot.slane %v2705, %v2709
        %v2716 = vunpack.c.l.b16 %v2701
        %v2717 = vunpack.c.l.b16 %v2702
        %v2718 = vunpack.c.l.b16 %v2703
        %v2719 = vunpack.c.l.b16 %v2704
        %v2720 = vpack.c.b16 %v2717, %v2716
        %v2721 = vpack.c.b16 %v2719, %v2718
        %v2725 = vsel %vm1262, %v2700, 0
        %2727 = vmatprep.subr.bf16.mxu0 0
        %2728 = vmatpush1.bf16.msra.mxu0 %v2720
        %2729 = vmatprep.subr.bf16.mxu0 0
        %2730 = vmatpush1.bf16.msra.mxu0 %v2721
        %2731 = vmatprep.subr.bf16.mxu0 0
        %2732 = vmatpush1.bf16.msra.mxu0 0
        %2733 = vmatprep.subr.bf16.mxu0 0
        %2734 = vmatpush1.bf16.msra.mxu0 0
        %2735 = vmatprep.subr.bf16.mxu0 0
        %2736 = vmatpush1.bf16.msra.mxu0 0
        %2737 = vmatprep.subr.bf16.mxu0 0
        %2738 = vmatpush1.bf16.msra.mxu0 0
        %2739 = vmatprep.subr.bf16.mxu0 0
        %2740 = vmatpush1.bf16.msra.mxu0 0
        %2741 = vmatprep.subr.bf16.mxu0 0
        %2742 = vmatpush1.bf16.msra.mxu0 0
        %2743 = vmatprep.subr.bf16.mxu0 0
        %2744 = vmatpush1.bf16.msra.mxu0 0
        %2745 = vmatprep.subr.bf16.mxu0 0
        %2746 = vmatpush1.bf16.msra.mxu0 0
        %2747 = vmatprep.subr.bf16.mxu0 0
        %2748 = vmatpush1.bf16.msra.mxu0 0
        %2749 = vmatprep.subr.bf16.mxu0 0
        %2750 = vmatpush1.bf16.msra.mxu0 0
        %2751 = vmatprep.subr.bf16.mxu0 0
        %2752 = vmatpush1.bf16.msra.mxu0 0
        %2753 = vmatprep.subr.bf16.mxu0 0
        %2754 = vmatpush1.bf16.msra.mxu0 0
        %2755 = vmatprep.subr.bf16.mxu0 0
        %2756 = vmatpush1.bf16.msra.mxu0 0
        %2757 = vmatprep.subr.bf16.mxu0 0
        %2758 = vmatpush1.bf16.msra.mxu0 0
        %2759 = vmatprep.mubr.bf16.mxu0 0
        %2760 = vmatmul.mubr.bf16.gmra.mrb[0].mxu0 %v2725
        %v2761 = vpop.f32.mrb[0].mxu0
        %v2762 = vadd.f32 %v2710, %v2761
        %v2763 = vpop.f32.mrb[0].mxu0
        %v2764 = vpop.f32.mrb[0].mxu0
        %v2765 = vpop.f32.mrb[0].mxu0
        %2766 = vdwg.mxu0
        %v2767 = vadd.f32 %v2018, %v2762
        %v2768 = vld [vmem:[%s53] sm:$0x1]
        %v2769 = vld [vmem:[%s55] sm:$0x1]
        %v2770 = vsel %vm1262, %v2767, 0.0
        %2771 = vadd.xlane.f32.xlu0 %v2770
        %v2772 = vpop.xlane.xlu0 %2771
        %v2773 = vmul.f32 %v2772, %v1994
        %v2774 = vsub.f32 %v2767, %v2773
        %v2775 = vmul.f32 %v2774, %v2774
        %v2776 = vsel %vm1262, %v2775, 0.0
        %2777 = vadd.xlane.f32.xlu0 %v2776
        %v2778 = vpop.xlane.xlu0 %2777
        %v2779 = vmul.f32 %v2778, %v1994
        %v2780 = vadd.f32 %v2779, 1e-05
        %v2781 = vrsqrt.pop %v2780
        %v2782 = vmul.f32 %v2774, %v2781
        %v2784 = vlaneseq
        %v2785 = vshrl.u32 %v2784, 7
        %v2786 = vsub.s32 0, %v2785
        %v2787 = vrot.slane %v2768, %v2786
        %v2789 = vmul.f32 %v2782, %v2787
        %v2791 = vlaneseq
        %v2792 = vshrl.u32 %v2791, 7
        %v2793 = vsub.s32 0, %v2792
        %v2794 = vrot.slane %v2769, %v2793
        %v2796 = vadd.f32 %v2789, %v2794
        %v2797 = vpack.c.bf16 %v2796, %v2796
        %v2798 = vld [vmem:[%s41] sm:$0xf]
        %v2799 = vld [vmem:[%s41 + $0x4] sm:$0xf]
        %v2800 = vld [vmem:[%s41 + $0x8] sm:$0xf]
        %v2801 = vld [vmem:[%s41 + $0xc] sm:$0xf]
        %v2802 = vld [vmem:[%s43] sm:$0x1]
        %v2804 = vlaneseq
        %v2805 = vshrl.u32 %v2804, 7
        %v2806 = vsub.s32 0, %v2805
        %v2807 = vrot.slane %v2802, %v2806
        %v2813 = vunpack.c.l.b16 %v2798
        %v2814 = vunpack.c.l.b16 %v2799
        %v2815 = vunpack.c.l.b16 %v2800
        %v2816 = vunpack.c.l.b16 %v2801
        %v2817 = vpack.c.b16 %v2814, %v2813
        %v2818 = vpack.c.b16 %v2816, %v2815
        %v2822 = vsel %vm1262, %v2797, 0
        %2824 = vmatprep.subr.bf16.mxu0 0
        %2825 = vmatpush1.bf16.msra.mxu0 %v2817
        %2826 = vmatprep.subr.bf16.mxu0 0
        %2827 = vmatpush1.bf16.msra.mxu0 %v2818
        %2828 = vmatprep.subr.bf16.mxu0 0
        %2829 = vmatpush1.bf16.msra.mxu0 0
        %2830 = vmatprep.subr.bf16.mxu0 0
        %2831 = vmatpush1.bf16.msra.mxu0 0
        %2832 = vmatprep.subr.bf16.mxu0 0
        %2833 = vmatpush1.bf16.msra.mxu0 0
        %2834 = vmatprep.subr.bf16.mxu0 0
        %2835 = vmatpush1.bf16.msra.mxu0 0
        %2836 = vmatprep.subr.bf16.mxu0 0
        %2837 = vmatpush1.bf16.msra.mxu0 0
        %2838 = vmatprep.subr.bf16.mxu0 0
        %2839 = vmatpush1.bf16.msra.mxu0 0
        %2840 = vmatprep.subr.bf16.mxu0 0
        %2841 = vmatpush1.bf16.msra.mxu0 0
        %2842 = vmatprep.subr.bf16.mxu0 0
        %2843 = vmatpush1.bf16.msra.mxu0 0
        %2844 = vmatprep.subr.bf16.mxu0 0
        %2845 = vmatpush1.bf16.msra.mxu0 0
        %2846 = vmatprep.subr.bf16.mxu0 0
        %2847 = vmatpush1.bf16.msra.mxu0 0
        %2848 = vmatprep.subr.bf16.mxu0 0
        %2849 = vmatpush1.bf16.msra.mxu0 0
        %2850 = vmatprep.subr.bf16.mxu0 0
        %2851 = vmatpush1.bf16.msra.mxu0 0
        %2852 = vmatprep.subr.bf16.mxu0 0
        %2853 = vmatpush1.bf16.msra.mxu0 0
        %2854 = vmatprep.subr.bf16.mxu0 0
        %2855 = vmatpush1.bf16.msra.mxu0 0
        %2856 = vmatprep.mubr.bf16.mxu0 0
        %2857 = vmatmul.mubr.bf16.gmra.mrb[0].mxu0 %v2822
        %v2858 = vpop.f32.mrb[0].mxu0
        %v2859 = vadd.f32 %v2807, %v2858
        %v2860 = vpop.f32.mrb[0].mxu0
        %v2861 = vpop.f32.mrb[0].mxu0
        %v2862 = vpop.f32.mrb[0].mxu0
        %2863 = vdwg.mxu0
        %v2864 = vmax.f32 %v2859, 0.0
        %v2865 = vpack.c.bf16 %v2864, %v2864
        %v2866 = vld [vmem:[%s45] sm:$0xf]
        %v2867 = vld [vmem:[%s45 + $0x4] sm:$0xf]
        %v2868 = vld [vmem:[%s45 + $0x8] sm:$0xf]
        %v2869 = vld [vmem:[%s45 + $0xc] sm:$0xf]
        %v2870 = vld [vmem:[%s45 + $0x10] sm:$0xf]
        %v2871 = vld [vmem:[%s45 + $0x14] sm:$0xf]
        %v2872 = vld [vmem:[%s45 + $0x18] sm:$0xf]
        %v2873 = vld [vmem:[%s45 + $0x1c] sm:$0xf]
        %v2874 = vld [vmem:[%s47] sm:$0x1]
        %v2876 = vlaneseq
        %v2877 = vshrl.u32 %v2876, 7
        %v2878 = vsub.s32 0, %v2877
        %v2879 = vrot.slane %v2874, %v2878
        %v2889 = vunpack.c.l.b16 %v2866
        %v2890 = vunpack.c.l.b16 %v2867
        %v2891 = vunpack.c.l.b16 %v2868
        %v2892 = vunpack.c.l.b16 %v2869
        %v2893 = vunpack.c.l.b16 %v2870
        %v2894 = vunpack.c.l.b16 %v2871
        %v2895 = vunpack.c.l.b16 %v2872
        %v2896 = vunpack.c.l.b16 %v2873
        %v2897 = vpack.c.b16 %v2890, %v2889
        %v2898 = vpack.c.b16 %v2892, %v2891
        %v2899 = vpack.c.b16 %v2894, %v2893
        %v2900 = vpack.c.b16 %v2896, %v2895
        %vm2905 = vcmask 523264
        %v2907 = vsel %vm2905, %v2865, 0
        %2909 = vmatprep.subr.bf16.mxu0 0
        %2910 = vmatpush1.bf16.msra.mxu0 %v2897
        %2911 = vmatprep.subr.bf16.mxu0 0
        %2912 = vmatpush1.bf16.msra.mxu0 %v2898
        %2913 = vmatprep.subr.bf16.mxu0 0
        %2914 = vmatpush1.bf16.msra.mxu0 %v2899
        %2915 = vmatprep.subr.bf16.mxu0 0
        %2916 = vmatpush1.bf16.msra.mxu0 %v2900
        %2917 = vmatprep.subr.bf16.mxu0 0
        %2918 = vmatpush1.bf16.msra.mxu0 0
        %2919 = vmatprep.subr.bf16.mxu0 0
        %2920 = vmatpush1.bf16.msra.mxu0 0
        %2921 = vmatprep.subr.bf16.mxu0 0
        %2922 = vmatpush1.bf16.msra.mxu0 0
        %2923 = vmatprep.subr.bf16.mxu0 0
        %2924 = vmatpush1.bf16.msra.mxu0 0
        %2925 = vmatprep.subr.bf16.mxu0 0
        %2926 = vmatpush1.bf16.msra.mxu0 0
        %2927 = vmatprep.subr.bf16.mxu0 0
        %2928 = vmatpush1.bf16.msra.mxu0 0
        %2929 = vmatprep.subr.bf16.mxu0 0
        %2930 = vmatpush1.bf16.msra.mxu0 0
        %2931 = vmatprep.subr.bf16.mxu0 0
        %2932 = vmatpush1.bf16.msra.mxu0 0
        %2933 = vmatprep.subr.bf16.mxu0 0
        %2934 = vmatpush1.bf16.msra.mxu0 0
        %2935 = vmatprep.subr.bf16.mxu0 0
        %2936 = vmatpush1.bf16.msra.mxu0 0
        %2937 = vmatprep.subr.bf16.mxu0 0
        %2938 = vmatpush1.bf16.msra.mxu0 0
        %2939 = vmatprep.subr.bf16.mxu0 0
        %2940 = vmatpush1.bf16.msra.mxu0 0
        %2941 = vmatprep.mubr.bf16.mxu0 0
        %2942 = vmatmul.mubr.bf16.gmra.mrb[0].mxu0 %v2907
        %v2943 = vpop.f32.mrb[0].mxu0
        %v2944 = vadd.f32 %v2879, %v2943
        %v2945 = vpop.f32.mrb[0].mxu0
        %v2946 = vpop.f32.mrb[0].mxu0
        %v2947 = vpop.f32.mrb[0].mxu0
        %2948 = vdwg.mxu0
        %v2949 = vadd.f32 %v2796, %v2944
        %v2950 = vld [vmem:[%s57] sm:$0x1]
        %v2951 = vld [vmem:[%s59] sm:$0x1]
        %v2952 = vsel %vm1262, %v2949, 0.0
        %2953 = vadd.xlane.f32.xlu0 %v2952
        %v2954 = vpop.xlane.xlu0 %2953
        %v2955 = vmul.f32 %v2954, %v1994
        %v2956 = vsub.f32 %v2949, %v2955
        %v2957 = vmul.f32 %v2956, %v2956
        %v2958 = vsel %vm1262, %v2957, 0.0
        %2959 = vadd.xlane.f32.xlu0 %v2958
        %v2960 = vpop.xlane.xlu0 %2959
        %v2961 = vmul.f32 %v2960, %v1994
        %v2962 = vadd.f32 %v2961, 1e-05
        %v2963 = vrsqrt.pop %v2962
        %v2964 = vmul.f32 %v2956, %v2963
        %v2966 = vlaneseq
        %v2967 = vshrl.u32 %v2966, 7
        %v2968 = vsub.s32 0, %v2967
        %v2969 = vrot.slane %v2950, %v2968
        %v2971 = vmul.f32 %v2964, %v2969
        %v2973 = vlaneseq
        %v2974 = vshrl.u32 %v2973, 7
        %v2975 = vsub.s32 0, %v2974
        %v2976 = vrot.slane %v2951, %v2975
        %v2978 = vadd.f32 %v2971, %v2976
        %2979 = vst.msk [vmem:[%s1206] sm:$0xff] %vm1262, %v2978
        %s2980 = sand.u32 %s750, 1
        %s2981 = scalar_lea.sflag [#allocation4], %s2980
        %s2982 = sand.u32 %s750, 1
        %s2983 = smul.addr %s2982, 8
        %s2984 = scalar_lea.vmem [#allocation23], %s2983
        %s2985 = sand.u32 %s92, 1
        %s2986 = scalar_lea.sflag [#allocation25], %s2985
        %s2987 = sand.u32 %s776, 1
        %s2988 = smul.addr %s2987, 16
        %s2989 = scalar_lea.vmem [#allocation24], %s2988
        %s2990 = sand.u32 %s92, 1
        %s2991 = scalar_lea.sflag [#allocation25], %s2990
        %s2992 = sand.u32 %s802, 1
        %s2993 = smul.addr %s2992, 16
        %s2994 = scalar_lea.vmem [#allocation26], %s2993
        // Predicated region
        $region193: #{tpu_custom_call.1} parent=139 // pred_check
          %p2995 = pneg %p760
        $region194: #{tpu_custom_call.1} parent=139 // pred_check_branch
          %2997 = sbr.rel (%p2995) target = $region196
        $region195: #{tpu_custom_call.1} parent=139 // pred_region
          %s2999 = ssub.s32 128, 128
          %3000 = vsyncadd %s2981, %s2999
          %s3001 = smul.addr %s92, 128
          %s3002 = scalar_lea.hbm %s61, %s3001
          %s3004 = sshll.u32 %s2984, 4
          %s3005 = int_to_ptr.vmem [resolvable:$true] %s3004
          %3007 = dma.vmem_to_hbm [thread:$0]  %s3005, 128, %s3002, %s2981
        $region196: #{tpu_custom_call.1} parent=139 // pred_fallthru
          _
        // Predicated region
        $region197: #{tpu_custom_call.1} parent=139 // pred_check
          %p3008 = pneg %p786
        $region198: #{tpu_custom_call.1} parent=139 // pred_check_branch
          %3010 = sbr.rel (%p3008) target = $region200
        $region199: #{tpu_custom_call.1} parent=139 // pred_region
          %s3012 = ssub.s32 256, 256
          %3013 = vsyncadd %s2986, %s3012
          %s3014 = smul.addr %s92, 4
          %s3015 = smul.addr %s3014, 64
          %s3016 = scalar_lea.hbm %s63, %s3015
          %s3017 = sshll.u32 %s2989, 4
          %s3018 = int_to_ptr.vmem [resolvable:$true] %s3017
          %3023 = dma.vmem_to_hbm [thread:$0]  %s3018, 256, %s3016, %s2986, 64, 64, 4
        $region200: #{tpu_custom_call.1} parent=139 // pred_fallthru
          _
        // Predicated region
        $region201: #{tpu_custom_call.1} parent=139 // pred_check
          %p3024 = pneg %p812
        $region202: #{tpu_custom_call.1} parent=139 // pred_check_branch
          %3026 = sbr.rel (%p3024) target = $region204
        $region203: #{tpu_custom_call.1} parent=139 // pred_region
          %s3028 = ssub.s32 256, 256
          %3029 = vsyncadd %s2991, %s3028
          %s3030 = smul.addr %s92, 4
          %s3031 = smul.addr %s3030, 64
          %s3032 = scalar_lea.hbm %s65, %s3031
          %s3033 = sshll.u32 %s2994, 4
          %s3034 = int_to_ptr.vmem [resolvable:$true] %s3033
          %3039 = dma.vmem_to_hbm [thread:$0]  %s3034, 256, %s3032, %s2991, 64, 64, 4
        $region204: #{tpu_custom_call.1} parent=139 // pred_fallthru
          _
      $region140: #{tpu_custom_call.1} parent=5 // pred_fallthru
        _
      %p3040 = scmp.le.s32.totalorder 2, %s87
      // Predicated region
      $region205: #{tpu_custom_call.1} parent=5 // pred_check
        %p3041 = pneg %p3040
      $region206: #{tpu_custom_call.1} parent=5 // pred_check_branch
        %3043 = sbr.rel (%p3041) target = $region208
      $region207: #{tpu_custom_call.1} parent=5 // pred_region
        %s3044 = ssub.s32 %s87, 2
        // Predicated region
        $region209: #{tpu_custom_call.1} parent=207 // pred_check
          %p3045 = pneg %p766
        $region210: #{tpu_custom_call.1} parent=207 // pred_check_branch
          %3047 = sbr.rel (%p3045) target = $region212
        $region211: #{tpu_custom_call.1} parent=207 // pred_region
          %s3048 = sand.u32 %s751, 1
          %s3049 = scalar_lea.sflag [#allocation4], %s3048
          %s3050 = sand.u32 %s751, 1
          %s3051 = smul.addr %s3050, 8
          %s3052 = scalar_lea.vmem [#allocation23], %s3051
          %3053 = dma.done %s3049, 128
        $region212: #{tpu_custom_call.1} parent=207 // pred_fallthru
          _
        // Predicated region
        $region213: #{tpu_custom_call.1} parent=207 // pred_check
          %p3054 = pneg %p792
        $region214: #{tpu_custom_call.1} parent=207 // pred_check_branch
          %3056 = sbr.rel (%p3054) target = $region216
        $region215: #{tpu_custom_call.1} parent=207 // pred_region
          %s3057 = sand.u32 %s93, 1
          %s3058 = scalar_lea.sflag [#allocation25], %s3057
          %s3059 = sand.u32 %s777, 1
          %s3060 = smul.addr %s3059, 16
          %s3061 = scalar_lea.vmem [#allocation24], %s3060
          %3062 = dma.done %s3058, 256
        $region216: #{tpu_custom_call.1} parent=207 // pred_fallthru
          _
        // Predicated region
        $region217: #{tpu_custom_call.1} parent=207 // pred_check
          %p3063 = pneg %p818
        $region218: #{tpu_custom_call.1} parent=207 // pred_check_branch
          %3065 = sbr.rel (%p3063) target = $region220
        $region219: #{tpu_custom_call.1} parent=207 // pred_region
          %s3066 = sand.u32 %s93, 1
          %s3067 = scalar_lea.sflag [#allocation25], %s3066
          %s3068 = sand.u32 %s803, 1
          %s3069 = smul.addr %s3068, 16
          %s3070 = scalar_lea.vmem [#allocation26], %s3069
          %3071 = dma.done %s3067, 256
        $region220: #{tpu_custom_call.1} parent=207 // pred_fallthru
          _
      $region208: #{tpu_custom_call.1} parent=5 // pred_fallthru
        _
    $region6: #{tpu_custom_call.1} parent=1 // loop_footer
      %s91 = sadd.s32 1, %s87
    $region7: #{tpu_custom_call.1} parent=1 // loop_footer_branch
      %86 = sbr.rel target = $region3
    $region8: #{tpu_custom_call.1} parent=1 // loop_exit
      _
    %3072 = vsyncpa [#allocation3], 1
    %s3073 = scalar_lea.sflag [#allocation3], 1
    %3074 = vsyncpa %s3073, 1
    %3075 = vsyncpa [#allocation6], 1
    %3076 = vsyncpa [#allocation9], 1
    %3077 = vsyncpa [#allocation12], 1
    %3078 = vsyncpa [#allocation15], 1
    %3079 = vsyncpa [#allocation18], 1
    %3080 = vsyncpa [#allocation21], 1
    %3081 = vsyncpa [#allocation4], 1
    %s3082 = scalar_lea.sflag [#allocation4], 1
    %3083 = vsyncpa %s3082, 1
    %3084 = vsyncpa [#allocation25], 1
    %s3085 = scalar_lea.sflag [#allocation25], 1
    %3086 = vsyncpa %s3085, 1

</llo_original>
